<compile_context>
chip_gen: v7x
topology: tpu7x:2x2x1
jax: 0.10.0
libtpu: 0.0.40
codegen_flags: <defaults>
</compile_context>

<pallas_src>
import math

import jax
import jax.numpy as jnp
from jax import lax
from jax.experimental import pallas as pl
from jax.experimental.pallas import tpu as pltpu

_BN_EPS = 1e-5
_LANE = 128
_ALIGN = 16          # bf16 sublane packing is 16 rows/tile; align every blob entry


def _align(n):
    return ((n + _ALIGN - 1) // _ALIGN) * _ALIGN


def _full_spec(shape):
    return pl.BlockSpec(tuple(shape), lambda i, _nd=len(shape): (0,) * _nd)


def _mm(a, w_bf16):
    # bf16 MXU matmul (weights pre-cast once in the wrapper), f32 accumulate.
    return jnp.dot(a.astype(jnp.bfloat16), w_bf16,
                   preferred_element_type=jnp.float32)


class _Packer:
    """Packs many small (K, N<=128) matrices into one (rows, 128) VMEM blob."""

    def __init__(self, dtype):
        self.dtype = dtype
        self.pieces = []
        self.rows = 0

    def add(self, mat):
        mat = jnp.asarray(mat, self.dtype)
        K, N = mat.shape
        off = self.rows
        padK = _align(K) - K
        self.pieces.append(jnp.pad(mat, ((0, padK), (0, _LANE - N))))
        self.rows += K + padK
        return off, K, N

    def finish(self):
        if not self.pieces:
            return jnp.zeros((_ALIGN, _LANE), self.dtype)
        return jnp.concatenate(self.pieces, axis=0)


# ---------------------------------------------------------------- in-kernel ops
def _conv3_tap(A, B, L, ch, Wtap, bias):
    """k=3 / pad=1 conv over rows ordered (batch, position) as ONE matmul on a
    lane-concatenated tap-im2col (prev|cur|next) — no shift matrices."""
    z = jnp.zeros((1, ch), jnp.float32)
    prev_parts, next_parts = [], []
    for b in range(B):
        s = b * L
        prev_parts += [z, A[s:s + L - 1, :]]
        next_parts += [A[s + 1:s + L, :], z]
    prev = jnp.concatenate(prev_parts, axis=0)
    nxt = jnp.concatenate(next_parts, axis=0)
    taps = jnp.concatenate([prev, A, nxt], axis=1)          # (B*L, 3*ch)
    return _mm(taps, Wtap) + bias


def _make_scale_kernel(program, B, n_prev, cls_info, out_cols):
    """One fused kernel per scale; `program` is a static op-descriptor list."""

    def kernel(*refs):
        cols_ref, w_ref, aux_ref = refs[0], refs[1], refs[2]
        feat_refs = refs[3:3 + n_prev]
        out_ref = refs[-1]

        def W(off, K, N):                 # bf16 weight slice (static, free)
            return w_ref[off:off + K, :N]

        def F(off, K, N):                 # f32 aux slice
            return aux_ref[off:off + K, :N]

        A = None
        for op in program:
            kind = op[0]
            if kind == "tsenc":
                _, C, L, kw2, k2, Wwin, tsw_off, tsb_off = op
                Nf = kw2 + k2
                enc = (jnp.dot(cols_ref[...], F(tsw_off, Wwin, Nf),
                               preferred_element_type=jnp.float32)
                       + F(tsb_off, 1, Nf))
                # in-register top-k (sorted desc) over the kw2 Fourier channels
                cur = jnp.abs(enc[:, :kw2])
                M = cur.shape[0]
                iota = lax.broadcasted_iota(jnp.int32, (M, kw2), 1)
                iota = iota.astype(jnp.float32)
                vals, idxs = [], []
                for _ in range(k2):
                    v = jnp.max(cur, axis=1, keepdims=True)
                    hit = cur == v
                    # TODO(synk): torch.topk tie-break order may differ; lowest
                    # index wins here (indices are consumed as float features).
                    ix = jnp.min(jnp.where(hit, iota, float(kw2)),
                                 axis=1, keepdims=True)
                    vals.append(v)
                    idxs.append(ix)
                    cur = jnp.where(iota == ix, -1.0, cur)
                feat = jnp.concatenate(vals + idxs + [enc[:, kw2:Nf]], axis=1)
                BL = B * L
                # rows ordered (sensor, batch, pos) -> (batch*pos, sensor*6k)
                A = jnp.concatenate(
                    [feat[c * BL:(c + 1) * BL, :] for c in range(C)], axis=1)
            elif kind == "dense_relu":               # fusion Conv2d + BN + ReLU
                _, w_off, K, N, b_off = op
                A = jnp.maximum(_mm(A, W(w_off, K, N)) + F(b_off, 1, N), 0.0)
            elif kind == "res":                      # resConv1dBlock (BN folded)
                _, L, ch, layers = op
                for (w1o, b1o, w2o, b2o) in layers:
                    t = jnp.maximum(
                        _conv3_tap(A, B, L, ch, W(w1o, 3 * ch, 2 * ch),
                                   F(b1o, 1, 2 * ch)), 0.0)
                    y = _conv3_tap(t, B, L, 2 * ch, W(w2o, 6 * ch, ch),
                                   F(b2o, 1, ch))
                    A = jnp.maximum(y + A, 0.0)
            elif kind == "conv1x1":                  # no BN, no ReLU
                _, w_off, K, N, b_off = op
                A = _mm(A, W(w_off, K, N)) + F(b_off, 1, N)
            elif kind == "pool":                     # AvgPool1d(2) on the VPU
                _, L = op
                L2 = L // 2
                pieces = []
                for b in range(B):
                    for l2 in range(L2):
                        r = b * L + 2 * l2
                        pieces.append(A[r:r + 1, :] + A[r + 1:r + 2, :])
                A = 0.5 * jnp.concatenate(pieces, axis=0)
            elif kind == "end":                      # end Linear + ReLU
                _, L_end, ch, w_off, K, N, b_off = op
                if L_end > 1:                        # flatten (B*L,ch)->(B,L*ch)
                    rows = []
                    for b in range(B):
                        s = b * L_end
                        rows.append(jnp.concatenate(
                            [A[s + l:s + l + 1, :] for l in range(L_end)],
                            axis=1))
                    A = jnp.concatenate(rows, axis=0)
                A = jnp.maximum(_mm(A, W(w_off, K, N)) + F(b_off, 1, N), 0.0)

        if cls_info is None:
            # non-final scale: lane-dense 128-wide padded store
            H = A.shape[1]
            if H < out_cols:
                A = jnp.concatenate(
                    [A, jnp.zeros((A.shape[0], out_cols - H), jnp.float32)],
                    axis=1)
            out_ref[...] = A
        else:                                        # fused final classifier
            cls_w_offs, cls_b_off, H, out_pad = cls_info
            acc = F(cls_b_off, 1, out_pad)
            for i in range(n_prev):
                acc = acc + _mm(feat_refs[i][:, :H],
                                W(cls_w_offs[i], H, out_pad))
            acc = acc + _mm(A, W(cls_w_offs[n_prev], H, out_pad))
            out_ref[...] = acc

    return kernel


def _scale_call(program, B, cols, wblob, aux, feats_prev, cls_info, out_cols):
    # TODO(synk): on v7x the second TensorCore idles with grid=(1,); running the
    # independent scales on a parallel grid axis would need uniform padding.
    kernel = _make_scale_kernel(tuple(program), B, len(feats_prev), cls_info,
                                out_cols)
    arrays = [cols, wblob, aux] + list(feats_prev)
    return pl.pallas_call(
        kernel,
        out_shape=jax.ShapeDtypeStruct((B, out_cols), jnp.float32),
        grid=(1,),
        in_specs=[_full_spec(a.shape) for a in arrays],
        out_specs=_full_spec((B, out_cols)),
        compiler_params=pltpu.CompilerParams(
            dimension_semantics=("arbitrary",)),
    )(*arrays)


# ---------------------------------------------------------------- parameters
def _bn_params(n):
    return dict(gamma=jnp.ones((n,), jnp.float32), beta=jnp.zeros((n,), jnp.float32),
                mean=jnp.zeros((n,), jnp.float32), var=jnp.ones((n,), jnp.float32))


def _bn_fold_mat(w_mat, b, bn):
    # TODO(synk): BatchNorm reproduced in eval mode (running stats at init);
    # train-mode batch statistics would need an extra cross-batch reduction.
    s = bn["gamma"] / jnp.sqrt(bn["var"] + _BN_EPS)
    t = bn["beta"] - bn["mean"] * s
    return w_mat * s[None, :], b * s + t


def _bn_fold_taps(w, b, bn):
    # w: (Cout, Cin, 3) -> tap-concatenated (3*Cin, Cout), BN folded.
    s = bn["gamma"] / jnp.sqrt(bn["var"] + _BN_EPS)
    t = bn["beta"] - bn["mean"] * s
    wf = w * s[:, None, None]
    Wtap = jnp.transpose(wf, (2, 1, 0)).reshape(-1, wf.shape[0])
    bf = (b * s + t).reshape(1, -1)
    return Wtap, bf


def _uniform(key, shape, fan_in):
    bound = 1.0 / math.sqrt(fan_in)
    return jax.random.uniform(key, shape, jnp.float32, -bound, bound)


def build_params(key, cfg):
    T, C, H = cfg["input_size"], cfg["sensor_num"], cfg["hidden_channel"]
    keys = iter(jax.random.split(key, 4096))
    scales = []
    for W, S, k in zip(cfg["window_list"], cfg["stride_list"], cfg["k_list"]):
        kw = W // 2
        basis = jnp.arange(W, dtype=jnp.float32) * (2.0 * math.pi / W)
        rows = []
        for r in range(2 * kw):                      # deterministic Fourier init (FIC)
            f = r // 2 + 1
            rows.append(jnp.cos(f * basis) if r % 2 == 0 else jnp.sin(-f * basis))
        fic_w = jnp.stack(rows, axis=0).T            # (W, 2*kw)

        rpc_w = _uniform(next(keys), (2 * k, W), W).T          # (W, 2k)
        rpc_b = _uniform(next(keys), (2 * k,), W)

        nfc = 6 * k
        fuse_w = _uniform(next(keys), (H, C, nfc), C * nfc)    # Conv2d weight
        fuse_b = _uniform(next(keys), (H,), C * nfc)
        fuse_bn = _bn_params(H)

        branch = []
        cs = 1 + (T - W) // S
        scale = 1
        while cs >= 3:
            ch = H * scale
            layers = []
            for _ in range(cfg["layer_num"]):
                layers.append(dict(
                    w1=_uniform(next(keys), (2 * ch, ch, 3), ch * 3),
                    b1=_uniform(next(keys), (2 * ch,), ch * 3),
                    bn1=_bn_params(2 * ch),
                    w2=_uniform(next(keys), (ch, 2 * ch, 3), 2 * ch * 3),
                    b2=_uniform(next(keys), (ch,), 2 * ch * 3),
                    bn2=_bn_params(ch)))
            branch.append(("res", layers))
            if scale < 2:
                branch.append(("conv1x1", dict(
                    w=_uniform(next(keys), (2 * H * scale, H * scale), H * scale),
                    b=_uniform(next(keys), (2 * H * scale,), H * scale))))
                scale *= 2
            branch.append(("pool", None))
            cs = 1 + (cs - 2) // 2
        lin_in = H * cs * scale
        end_w = _uniform(next(keys), (H, lin_in), lin_in)      # PyTorch layout
        end_b = _uniform(next(keys), (H,), lin_in)
        scales.append(dict(window=W, stride=S, k=k,
                           fic_w=fic_w, rpc_w=rpc_w, rpc_b=rpc_b,
                           fuse_w=fuse_w, fuse_b=fuse_b, fuse_bn=fuse_bn,
                           branch=branch, end_w=end_w, end_b=end_b))
    cls_in = H * len(cfg["window_list"])
    cls_w = _uniform(next(keys), (cfg["out_dim"], cls_in), cls_in).T   # (cls_in, out)
    cls_b = _uniform(next(keys), (cfg["out_dim"],), cls_in)
    return dict(scales=scales, cls_w=cls_w, cls_b=cls_b, hidden=H)


# ---------------------------------------------------------------- forward
def _im2col_1d(x2d, window, stride):
    _, T = x2d.shape
    L = 1 + (T - window) // stride
    idx = jnp.arange(L)[:, None] * stride + jnp.arange(window)[None, :]
    return x2d[:, idx], L                             # (rows, L, window)


def units_forward(params, x):
    # TODO(synk): all weight prep below constant-folds because `params` is a
    # Python closure; hoist into a one-time prepare step if it becomes traced.
    B, T, C = x.shape
    H = params["hidden"]
    n_scales = len(params["scales"])
    out_dim = params["cls_b"].shape[0]
    assert out_dim <= _LANE
    feats = []
    logits = None
    for si, sp in enumerate(params["scales"]):
        Wwin, St, k = sp["window"], sp["stride"], sp["k"]
        kw2 = sp["fic_w"].shape[1]
        k2 = 2 * k
        # im2col rows ordered (sensor, batch, pos) -> in-kernel regroup is
        # C contiguous slices + one lane concat (no transpose / gather).
        xp = jnp.transpose(x, (2, 0, 1)).reshape(C * B, T)
        cols, L = _im2col_1d(xp, Wwin, St)
        cols = cols.reshape(C * B * L, Wwin).astype(jnp.float32)

        wp = _Packer(jnp.bfloat16)    # all MXU weights, pre-cast once
        ap = _Packer(jnp.float32)     # f32 TSEnc weights + every bias
        program = []

        # TSEnc: fused FIC + RPC weight (kept f32; K is tiny, topk-sensitive)
        w_cat = jnp.concatenate([sp["fic_w"], sp["rpc_w"]], axis=1)
        b_cat = jnp.concatenate([jnp.zeros((kw2,), jnp.float32),
                                 sp["rpc_b"]]).reshape(1, kw2 + k2)
        tsw_off, _, _ = ap.add(w_cat)
        tsb_off, _, _ = ap.add(b_cat)
        program.append(("tsenc", C, L, kw2, k2, Wwin, tsw_off, tsb_off))

        # fusion Conv2d (BN folded) + ReLU
        fw = sp["fuse_w"].reshape(H, C * 6 * k).T
        fw, fb = _bn_fold_mat(fw, sp["fuse_b"], sp["fuse_bn"])
        w_off, K, N = wp.add(fw)
        b_off, _, _ = ap.add(fb.reshape(1, H))
        program.append(("dense_relu", w_off, K, N, b_off))

        Lc, ch = L, H
        for kind, p in sp["branch"]:
            if kind == "res":
                layers = []
                for lp in p:
                    W1, b1 = _bn_fold_taps(lp["w1"], lp["b1"], lp["bn1"])
                    W2, b2 = _bn_fold_taps(lp["w2"], lp["b2"], lp["bn2"])
                    w1o, _, _ = wp.add(W1)
                    b1o, _, _ = ap.add(b1)
                    w2o, _, _ = wp.add(W2)
                    b2o, _, _ = ap.add(b2)
                    layers.append((w1o, b1o, w2o, b2o))
                program.append(("res", Lc, ch, tuple(layers)))
            elif kind == "conv1x1":
                w_off, K, N = wp.add(p["w"].T)
                b_off, _, _ = ap.add(p["b"].reshape(1, -1))
                program.append(("conv1x1", w_off, K, N, b_off))
                ch *= 2
            else:                                     # AvgPool1d(2)
                program.append(("pool", Lc))
                Lc = Lc // 2

        # end Linear: one matmul on the flattened (B, L_end*ch) activation;
        # weight permuted so row order is (pos, channel).
        L_end, ch_end = Lc, ch
        Wend = jnp.transpose(sp["end_w"].reshape(H, ch_end, L_end),
                             (2, 1, 0)).reshape(L_end * ch_end, H)
        w_off, K, N = wp.add(Wend)
        b_off, _, _ = ap.add(sp["end_b"].reshape(1, H))
        program.append(("end", L_end, ch_end, w_off, K, N, b_off))

        cls_info = None
        feats_prev = []
        if si == n_scales - 1:
            # fuse the final classifier into the last scale's kernel
            cls_w_offs = []
            for i in range(n_scales):
                cw = params["cls_w"][i * H:(i + 1) * H, :]
                cw = jnp.pad(cw, ((0, 0), (0, _LANE - out_dim)))
                o, _, _ = wp.add(cw)
                cls_w_offs.append(o)
            cb = jnp.pad(params["cls_b"], (0, _LANE - out_dim)).reshape(1, _LANE)
            cls_b_off, _, _ = ap.add(cb)
            cls_info = (tuple(cls_w_offs), cls_b_off, H, _LANE)
            feats_prev = feats

        out = _scale_call(program, B, cols, wp.finish(), ap.finish(),
                          feats_prev, cls_info, _LANE)
        if si < n_scales - 1:
            feats.append(out)                         # (B, 128) lane-dense
        else:
            logits = out[:, :out_dim]
    return logits


if __name__ == "__main__":
    cfg = dict(input_size=32, sensor_num=4, out_dim=5, layer_num=1,
               window_list=[8, 16], stride_list=[2, 4], k_list=[2, 3],
               hidden_channel=32)
    key = jax.random.PRNGKey(0)
    kp, kx = jax.random.split(key)
    params = build_params(kp, cfg)
    x = jax.random.normal(kx, (2, cfg["input_size"], cfg["sensor_num"]),
                          jnp.float32)
    fwd = jax.jit(lambda inp: units_forward(params, inp))
    out = fwd(x)
    jax.block_until_ready(out)
    assert out.shape == (2, cfg["out_dim"]), out.shape
    print("KERNEL_OK")
</pallas_src>

<mosaic_0001>
module attributes {stable_mosaic.version = 11 : i64} {
  func.func @kernel(%arg0: i32, %arg1: memref<104x8xf32, #tpu.memory_space<vmem>>, %arg2: memref<1584x128xbf16, #tpu.memory_space<vmem>>, %arg3: memref<176x128xf32, #tpu.memory_space<vmem>>, %arg4: memref<2x128xf32, #tpu.memory_space<vmem>>) attributes {dimension_semantics = [#tpu.dimension_semantics<arbitrary>], iteration_bounds = array<i64: 1>, scalar_prefetch = 0 : i64, scratch_operands = 0 : i64, tpu.core_type = #tpu.core_type<tc>, window_params = [{pipeline_mode = #tpu.pipeline_mode<synchronous>, transform_indices = @transform_0, window_bounds = array<i64: 104, 8>}, {pipeline_mode = #tpu.pipeline_mode<synchronous>, transform_indices = @transform_1, window_bounds = array<i64: 1584, 128>}, {pipeline_mode = #tpu.pipeline_mode<synchronous>, transform_indices = @transform_2, window_bounds = array<i64: 176, 128>}, {pipeline_mode = #tpu.pipeline_mode<synchronous>, transform_indices = @transform_3, window_bounds = array<i64: 2, 128>}]} {
    %c0 = arith.constant 0 : index
    %c0_0 = arith.constant 0 : index
    %0 = vector.load %arg1[%c0, %c0_0] : memref<104x8xf32, #tpu.memory_space<vmem>>, vector<104x8xf32>
    %c0_1 = arith.constant 0 : index
    %c0_2 = arith.constant 0 : index
    %1 = vector.load %arg3[%c0_1, %c0_2] : memref<176x128xf32, #tpu.memory_space<vmem>>, vector<8x12xf32>
    %cst = arith.constant dense<0.000000e+00> : vector<104x12xf32>
    %2 = tpu.matmul %0, %1, %cst {dimension_numbers = #tpu.dot_dimension_numbers<[1], [0], [0], [1], [0, 0, 1, 1], [], []>} : vector<104x8xf32>, vector<8x12xf32>, vector<104x12xf32> -> vector<104x12xf32>
    %c16 = arith.constant 16 : index
    %c0_3 = arith.constant 0 : index
    %3 = vector.load %arg3[%c16, %c0_3] : memref<176x128xf32, #tpu.memory_space<vmem>>, vector<1x12xf32>
    %4 = vector.broadcast %3 : vector<1x12xf32> to vector<104x12xf32>
    %5 = arith.addf %2, %4 : vector<104x12xf32>
    %6 = vector.extract_strided_slice %5 {offsets = [0, 0], sizes = [104, 8], strides = [1, 1]} : vector<104x12xf32> to vector<104x8xf32>
    %7 = math.absf %6 : vector<104x8xf32>
    %8 = tpu.iota {dimensions = array<i32: 1>} : vector<104x8xi32>
    %9 = arith.sitofp %8 : vector<104x8xi32> to vector<104x8xf32>
    %cst_4 = arith.constant dense<0xFF800000> : vector<104xf32>
    %10 = vector.multi_reduction <maximumf>, %7, %cst_4 [1] : vector<104x8xf32> to vector<104xf32>
    %11 = vector.shape_cast %10 : vector<104xf32> to vector<104x1xf32>
    %12 = vector.broadcast %11 : vector<104x1xf32> to vector<104x8xf32>
    %13 = arith.cmpf oeq, %7, %12 : vector<104x8xf32>
    %cst_5 = arith.constant 8.000000e+00 : f32
    %14 = vector.broadcast %cst_5 : f32 to vector<104x8xf32>
    %15 = arith.select %13, %9, %14 : vector<104x8xi1>, vector<104x8xf32>
    %cst_6 = arith.constant dense<0x7F800000> : vector<104xf32>
    %16 = vector.multi_reduction <minimumf>, %15, %cst_6 [1] : vector<104x8xf32> to vector<104xf32>
    %17 = vector.shape_cast %16 : vector<104xf32> to vector<104x1xf32>
    %18 = vector.broadcast %17 : vector<104x1xf32> to vector<104x8xf32>
    %19 = arith.cmpf oeq, %9, %18 : vector<104x8xf32>
    %cst_7 = arith.constant -1.000000e+00 : f32
    %20 = vector.broadcast %cst_7 : f32 to vector<104x8xf32>
    %21 = arith.select %19, %20, %7 : vector<104x8xi1>, vector<104x8xf32>
    %cst_8 = arith.constant dense<0xFF800000> : vector<104xf32>
    %22 = vector.multi_reduction <maximumf>, %21, %cst_8 [1] : vector<104x8xf32> to vector<104xf32>
    %23 = vector.shape_cast %22 : vector<104xf32> to vector<104x1xf32>
    %24 = vector.broadcast %23 : vector<104x1xf32> to vector<104x8xf32>
    %25 = arith.cmpf oeq, %21, %24 : vector<104x8xf32>
    %cst_9 = arith.constant 8.000000e+00 : f32
    %26 = vector.broadcast %cst_9 : f32 to vector<104x8xf32>
    %27 = arith.select %25, %9, %26 : vector<104x8xi1>, vector<104x8xf32>
    %cst_10 = arith.constant dense<0x7F800000> : vector<104xf32>
    %28 = vector.multi_reduction <minimumf>, %27, %cst_10 [1] : vector<104x8xf32> to vector<104xf32>
    %29 = vector.shape_cast %28 : vector<104xf32> to vector<104x1xf32>
    %30 = vector.broadcast %29 : vector<104x1xf32> to vector<104x8xf32>
    %31 = arith.cmpf oeq, %9, %30 : vector<104x8xf32>
    %cst_11 = arith.constant -1.000000e+00 : f32
    %32 = vector.broadcast %cst_11 : f32 to vector<104x8xf32>
    %33 = arith.select %31, %32, %21 : vector<104x8xi1>, vector<104x8xf32>
    %cst_12 = arith.constant dense<0xFF800000> : vector<104xf32>
    %34 = vector.multi_reduction <maximumf>, %33, %cst_12 [1] : vector<104x8xf32> to vector<104xf32>
    %35 = vector.shape_cast %34 : vector<104xf32> to vector<104x1xf32>
    %36 = vector.broadcast %35 : vector<104x1xf32> to vector<104x8xf32>
    %37 = arith.cmpf oeq, %33, %36 : vector<104x8xf32>
    %cst_13 = arith.constant 8.000000e+00 : f32
    %38 = vector.broadcast %cst_13 : f32 to vector<104x8xf32>
    %39 = arith.select %37, %9, %38 : vector<104x8xi1>, vector<104x8xf32>
    %cst_14 = arith.constant dense<0x7F800000> : vector<104xf32>
    %40 = vector.multi_reduction <minimumf>, %39, %cst_14 [1] : vector<104x8xf32> to vector<104xf32>
    %41 = vector.shape_cast %40 : vector<104xf32> to vector<104x1xf32>
    %42 = vector.broadcast %41 : vector<104x1xf32> to vector<104x8xf32>
    %43 = arith.cmpf oeq, %9, %42 : vector<104x8xf32>
    %cst_15 = arith.constant -1.000000e+00 : f32
    %44 = vector.broadcast %cst_15 : f32 to vector<104x8xf32>
    %45 = arith.select %43, %44, %33 : vector<104x8xi1>, vector<104x8xf32>
    %cst_16 = arith.constant dense<0xFF800000> : vector<104xf32>
    %46 = vector.multi_reduction <maximumf>, %45, %cst_16 [1] : vector<104x8xf32> to vector<104xf32>
    %47 = vector.shape_cast %46 : vector<104xf32> to vector<104x1xf32>
    %48 = vector.broadcast %47 : vector<104x1xf32> to vector<104x8xf32>
    %49 = arith.cmpf oeq, %45, %48 : vector<104x8xf32>
    %cst_17 = arith.constant 8.000000e+00 : f32
    %50 = vector.broadcast %cst_17 : f32 to vector<104x8xf32>
    %51 = arith.select %49, %9, %50 : vector<104x8xi1>, vector<104x8xf32>
    %cst_18 = arith.constant dense<0x7F800000> : vector<104xf32>
    %52 = vector.multi_reduction <minimumf>, %51, %cst_18 [1] : vector<104x8xf32> to vector<104xf32>
    %53 = vector.shape_cast %52 : vector<104xf32> to vector<104x1xf32>
    %54 = vector.extract_strided_slice %5 {offsets = [0, 8], sizes = [104, 4], strides = [1, 1]} : vector<104x12xf32> to vector<104x4xf32>
    %55 = tpu.concatenate %11, %23, %35, %47, %17, %29, %41, %53, %54 in 1 : vector<104x1xf32>, vector<104x1xf32>, vector<104x1xf32>, vector<104x1xf32>, vector<104x1xf32>, vector<104x1xf32>, vector<104x1xf32>, vector<104x1xf32>, vector<104x4xf32> -> vector<104x12xf32>
    %56 = vector.extract_strided_slice %55 {offsets = [0, 0], sizes = [26, 12], strides = [1, 1]} : vector<104x12xf32> to vector<26x12xf32>
    %57 = vector.extract_strided_slice %55 {offsets = [26, 0], sizes = [26, 12], strides = [1, 1]} : vector<104x12xf32> to vector<26x12xf32>
    %58 = vector.extract_strided_slice %55 {offsets = [52, 0], sizes = [26, 12], strides = [1, 1]} : vector<104x12xf32> to vector<26x12xf32>
    %59 = vector.extract_strided_slice %55 {offsets = [78, 0], sizes = [26, 12], strides = [1, 1]} : vector<104x12xf32> to vector<26x12xf32>
    %60 = tpu.concatenate %56, %57, %58, %59 in 1 : vector<26x12xf32>, vector<26x12xf32>, vector<26x12xf32>, vector<26x12xf32> -> vector<26x48xf32>
    %c0_19 = arith.constant 0 : index
    %c0_20 = arith.constant 0 : index
    %61 = vector.load %arg2[%c0_19, %c0_20] : memref<1584x128xbf16, #tpu.memory_space<vmem>>, vector<48x32xbf16>
    %62 = arith.truncf %60 : vector<26x48xf32> to vector<26x48xbf16>
    %cst_21 = arith.constant dense<0.000000e+00> : vector<26x32xf32>
    %63 = tpu.matmul %62, %61, %cst_21 {dimension_numbers = #tpu.dot_dimension_numbers<[1], [0], [0], [1], [0, 0, 1, 1], [], []>} : vector<26x48xbf16>, vector<48x32xbf16>, vector<26x32xf32> -> vector<26x32xf32>
    %c32 = arith.constant 32 : index
    %c0_22 = arith.constant 0 : index
    %64 = vector.load %arg3[%c32, %c0_22] : memref<176x128xf32, #tpu.memory_space<vmem>>, vector<1x32xf32>
    %65 = vector.broadcast %64 : vector<1x32xf32> to vector<26x32xf32>
    %66 = arith.addf %63, %65 : vector<26x32xf32>
    %cst_23 = arith.constant 0.000000e+00 : f32
    %67 = vector.broadcast %cst_23 : f32 to vector<26x32xf32>
    %68 = arith.maximumf %66, %67 : vector<26x32xf32>
    %c48 = arith.constant 48 : index
    %c0_24 = arith.constant 0 : index
    %69 = vector.load %arg2[%c48, %c0_24] : memref<1584x128xbf16, #tpu.memory_space<vmem>>, vector<96x64xbf16>
    %c48_25 = arith.constant 48 : index
    %c0_26 = arith.constant 0 : index
    %70 = vector.load %arg3[%c48_25, %c0_26] : memref<176x128xf32, #tpu.memory_space<vmem>>, vector<1x64xf32>
    %cst_27 = arith.constant 0.000000e+00 : f32
    %71 = vector.broadcast %cst_27 : f32 to vector<1x32xf32>
    %72 = vector.extract_strided_slice %68 {offsets = [0, 0], sizes = [12, 32], strides = [1, 1]} : vector<26x32xf32> to vector<12x32xf32>
    %73 = vector.extract_strided_slice %68 {offsets = [1, 0], sizes = [12, 32], strides = [1, 1]} : vector<26x32xf32> to vector<12x32xf32>
    %74 = vector.extract_strided_slice %68 {offsets = [13, 0], sizes = [12, 32], strides = [1, 1]} : vector<26x32xf32> to vector<12x32xf32>
    %75 = vector.extract_strided_slice %68 {offsets = [14, 0], sizes = [12, 32], strides = [1, 1]} : vector<26x32xf32> to vector<12x32xf32>
    %76 = tpu.concatenate %71, %72, %71, %74 in 0 : vector<1x32xf32>, vector<12x32xf32>, vector<1x32xf32>, vector<12x32xf32> -> vector<26x32xf32>
    %77 = tpu.concatenate %73, %71, %75, %71 in 0 : vector<12x32xf32>, vector<1x32xf32>, vector<12x32xf32>, vector<1x32xf32> -> vector<26x32xf32>
    %78 = tpu.concatenate %76, %68, %77 in 1 : vector<26x32xf32>, vector<26x32xf32>, vector<26x32xf32> -> vector<26x96xf32>
    %79 = arith.truncf %78 : vector<26x96xf32> to vector<26x96xbf16>
    %cst_28 = arith.constant dense<0.000000e+00> : vector<26x64xf32>
    %80 = tpu.matmul %79, %69, %cst_28 {dimension_numbers = #tpu.dot_dimension_numbers<[1], [0], [0], [1], [0, 0, 1, 1], [], []>} : vector<26x96xbf16>, vector<96x64xbf16>, vector<26x64xf32> -> vector<26x64xf32>
    %81 = vector.broadcast %70 : vector<1x64xf32> to vector<26x64xf32>
    %82 = arith.addf %80, %81 : vector<26x64xf32>
    %cst_29 = arith.constant 0.000000e+00 : f32
    %83 = vector.broadcast %cst_29 : f32 to vector<26x64xf32>
    %84 = arith.maximumf %82, %83 : vector<26x64xf32>
    %c144 = arith.constant 144 : index
    %c0_30 = arith.constant 0 : index
    %85 = vector.load %arg2[%c144, %c0_30] : memref<1584x128xbf16, #tpu.memory_space<vmem>>, vector<192x32xbf16>
    %c64 = arith.constant 64 : index
    %c0_31 = arith.constant 0 : index
    %86 = vector.load %arg3[%c64, %c0_31] : memref<176x128xf32, #tpu.memory_space<vmem>>, vector<1x32xf32>
    %cst_32 = arith.constant 0.000000e+00 : f32
    %87 = vector.broadcast %cst_32 : f32 to vector<1x64xf32>
    %88 = vector.extract_strided_slice %84 {offsets = [0, 0], sizes = [12, 64], strides = [1, 1]} : vector<26x64xf32> to vector<12x64xf32>
    %89 = vector.extract_strided_slice %84 {offsets = [1, 0], sizes = [12, 64], strides = [1, 1]} : vector<26x64xf32> to vector<12x64xf32>
    %90 = vector.extract_strided_slice %84 {offsets = [13, 0], sizes = [12, 64], strides = [1, 1]} : vector<26x64xf32> to vector<12x64xf32>
    %91 = vector.extract_strided_slice %84 {offsets = [14, 0], sizes = [12, 64], strides = [1, 1]} : vector<26x64xf32> to vector<12x64xf32>
    %92 = tpu.concatenate %87, %88, %87, %90 in 0 : vector<1x64xf32>, vector<12x64xf32>, vector<1x64xf32>, vector<12x64xf32> -> vector<26x64xf32>
    %93 = tpu.concatenate %89, %87, %91, %87 in 0 : vector<12x64xf32>, vector<1x64xf32>, vector<12x64xf32>, vector<1x64xf32> -> vector<26x64xf32>
    %94 = tpu.concatenate %92, %84, %93 in 1 : vector<26x64xf32>, vector<26x64xf32>, vector<26x64xf32> -> vector<26x192xf32>
    %95 = arith.truncf %94 : vector<26x192xf32> to vector<26x192xbf16>
    %cst_33 = arith.constant dense<0.000000e+00> : vector<26x32xf32>
    %96 = tpu.matmul %95, %85, %cst_33 {dimension_numbers = #tpu.dot_dimension_numbers<[1], [0], [0], [1], [0, 0, 1, 1], [], []>} : vector<26x192xbf16>, vector<192x32xbf16>, vector<26x32xf32> -> vector<26x32xf32>
    %97 = vector.broadcast %86 : vector<1x32xf32> to vector<26x32xf32>
    %98 = arith.addf %96, %97 : vector<26x32xf32>
    %99 = arith.addf %98, %68 : vector<26x32xf32>
    %cst_34 = arith.constant 0.000000e+00 : f32
    %100 = vector.broadcast %cst_34 : f32 to vector<26x32xf32>
    %101 = arith.maximumf %99, %100 : vector<26x32xf32>
    %c336 = arith.constant 336 : index
    %c0_35 = arith.constant 0 : index
    %102 = vector.load %arg2[%c336, %c0_35] : memref<1584x128xbf16, #tpu.memory_space<vmem>>, vector<32x64xbf16>
    %103 = arith.truncf %101 : vector<26x32xf32> to vector<26x32xbf16>
    %cst_36 = arith.constant dense<0.000000e+00> : vector<26x64xf32>
    %104 = tpu.matmul %103, %102, %cst_36 {dimension_numbers = #tpu.dot_dimension_numbers<[1], [0], [0], [1], [0, 0, 1, 1], [], []>} : vector<26x32xbf16>, vector<32x64xbf16>, vector<26x64xf32> -> vector<26x64xf32>
    %c80 = arith.constant 80 : index
    %c0_37 = arith.constant 0 : index
    %105 = vector.load %arg3[%c80, %c0_37] : memref<176x128xf32, #tpu.memory_space<vmem>>, vector<1x64xf32>
    %106 = vector.broadcast %105 : vector<1x64xf32> to vector<26x64xf32>
    %107 = arith.addf %104, %106 : vector<26x64xf32>
    %108 = vector.extract_strided_slice %107 {offsets = [0, 0], sizes = [1, 64], strides = [1, 1]} : vector<26x64xf32> to vector<1x64xf32>
    %109 = vector.extract_strided_slice %107 {offsets = [1, 0], sizes = [1, 64], strides = [1, 1]} : vector<26x64xf32> to vector<1x64xf32>
    %110 = arith.addf %108, %109 : vector<1x64xf32>
    %111 = vector.extract_strided_slice %107 {offsets = [2, 0], sizes = [1, 64], strides = [1, 1]} : vector<26x64xf32> to vector<1x64xf32>
    %112 = vector.extract_strided_slice %107 {offsets = [3, 0], sizes = [1, 64], strides = [1, 1]} : vector<26x64xf32> to vector<1x64xf32>
    %113 = arith.addf %111, %112 : vector<1x64xf32>
    %114 = vector.extract_strided_slice %107 {offsets = [4, 0], sizes = [1, 64], strides = [1, 1]} : vector<26x64xf32> to vector<1x64xf32>
    %115 = vector.extract_strided_slice %107 {offsets = [5, 0], sizes = [1, 64], strides = [1, 1]} : vector<26x64xf32> to vector<1x64xf32>
    %116 = arith.addf %114, %115 : vector<1x64xf32>
    %117 = vector.extract_strided_slice %107 {offsets = [6, 0], sizes = [1, 64], strides = [1, 1]} : vector<26x64xf32> to vector<1x64xf32>
    %118 = vector.extract_strided_slice %107 {offsets = [7, 0], sizes = [1, 64], strides = [1, 1]} : vector<26x64xf32> to vector<1x64xf32>
    %119 = arith.addf %117, %118 : vector<1x64xf32>
    %120 = vector.extract_strided_slice %107 {offsets = [8, 0], sizes = [1, 64], strides = [1, 1]} : vector<26x64xf32> to vector<1x64xf32>
    %121 = vector.extract_strided_slice %107 {offsets = [9, 0], sizes = [1, 64], strides = [1, 1]} : vector<26x64xf32> to vector<1x64xf32>
    %122 = arith.addf %120, %121 : vector<1x64xf32>
    %123 = vector.extract_strided_slice %107 {offsets = [10, 0], sizes = [1, 64], strides = [1, 1]} : vector<26x64xf32> to vector<1x64xf32>
    %124 = vector.extract_strided_slice %107 {offsets = [11, 0], sizes = [1, 64], strides = [1, 1]} : vector<26x64xf32> to vector<1x64xf32>
    %125 = arith.addf %123, %124 : vector<1x64xf32>
    %126 = vector.extract_strided_slice %107 {offsets = [13, 0], sizes = [1, 64], strides = [1, 1]} : vector<26x64xf32> to vector<1x64xf32>
    %127 = vector.extract_strided_slice %107 {offsets = [14, 0], sizes = [1, 64], strides = [1, 1]} : vector<26x64xf32> to vector<1x64xf32>
    %128 = arith.addf %126, %127 : vector<1x64xf32>
    %129 = vector.extract_strided_slice %107 {offsets = [15, 0], sizes = [1, 64], strides = [1, 1]} : vector<26x64xf32> to vector<1x64xf32>
    %130 = vector.extract_strided_slice %107 {offsets = [16, 0], sizes = [1, 64], strides = [1, 1]} : vector<26x64xf32> to vector<1x64xf32>
    %131 = arith.addf %129, %130 : vector<1x64xf32>
    %132 = vector.extract_strided_slice %107 {offsets = [17, 0], sizes = [1, 64], strides = [1, 1]} : vector<26x64xf32> to vector<1x64xf32>
    %133 = vector.extract_strided_slice %107 {offsets = [18, 0], sizes = [1, 64], strides = [1, 1]} : vector<26x64xf32> to vector<1x64xf32>
    %134 = arith.addf %132, %133 : vector<1x64xf32>
    %135 = vector.extract_strided_slice %107 {offsets = [19, 0], sizes = [1, 64], strides = [1, 1]} : vector<26x64xf32> to vector<1x64xf32>
    %136 = vector.extract_strided_slice %107 {offsets = [20, 0], sizes = [1, 64], strides = [1, 1]} : vector<26x64xf32> to vector<1x64xf32>
    %137 = arith.addf %135, %136 : vector<1x64xf32>
    %138 = vector.extract_strided_slice %107 {offsets = [21, 0], sizes = [1, 64], strides = [1, 1]} : vector<26x64xf32> to vector<1x64xf32>
    %139 = vector.extract_strided_slice %107 {offsets = [22, 0], sizes = [1, 64], strides = [1, 1]} : vector<26x64xf32> to vector<1x64xf32>
    %140 = arith.addf %138, %139 : vector<1x64xf32>
    %141 = vector.extract_strided_slice %107 {offsets = [23, 0], sizes = [1, 64], strides = [1, 1]} : vector<26x64xf32> to vector<1x64xf32>
    %142 = vector.extract_strided_slice %107 {offsets = [24, 0], sizes = [1, 64], strides = [1, 1]} : vector<26x64xf32> to vector<1x64xf32>
    %143 = arith.addf %141, %142 : vector<1x64xf32>
    %144 = tpu.concatenate %110, %113, %116, %119, %122, %125, %128, %131, %134, %137, %140, %143 in 0 : vector<1x64xf32>, vector<1x64xf32>, vector<1x64xf32>, vector<1x64xf32>, vector<1x64xf32>, vector<1x64xf32>, vector<1x64xf32>, vector<1x64xf32>, vector<1x64xf32>, vector<1x64xf32>, vector<1x64xf32>, vector<1x64xf32> -> vector<12x64xf32>
    %cst_38 = arith.constant 5.000000e-01 : f32
    %145 = vector.broadcast %cst_38 : f32 to vector<12x64xf32>
    %146 = arith.mulf %145, %144 : vector<12x64xf32>
    %c368 = arith.constant 368 : index
    %c0_39 = arith.constant 0 : index
    %147 = vector.load %arg2[%c368, %c0_39] : memref<1584x128xbf16, #tpu.memory_space<vmem>>, vector<192x128xbf16>
    %c96 = arith.constant 96 : index
    %c0_40 = arith.constant 0 : index
    %148 = vector.load %arg3[%c96, %c0_40] : memref<176x128xf32, #tpu.memory_space<vmem>>, vector<1x128xf32>
    %cst_41 = arith.constant 0.000000e+00 : f32
    %149 = vector.broadcast %cst_41 : f32 to vector<1x64xf32>
    %150 = vector.extract_strided_slice %146 {offsets = [0, 0], sizes = [5, 64], strides = [1, 1]} : vector<12x64xf32> to vector<5x64xf32>
    %151 = vector.extract_strided_slice %146 {offsets = [1, 0], sizes = [5, 64], strides = [1, 1]} : vector<12x64xf32> to vector<5x64xf32>
    %152 = vector.extract_strided_slice %146 {offsets = [6, 0], sizes = [5, 64], strides = [1, 1]} : vector<12x64xf32> to vector<5x64xf32>
    %153 = vector.extract_strided_slice %146 {offsets = [7, 0], sizes = [5, 64], strides = [1, 1]} : vector<12x64xf32> to vector<5x64xf32>
    %154 = tpu.concatenate %149, %150, %149, %152 in 0 : vector<1x64xf32>, vector<5x64xf32>, vector<1x64xf32>, vector<5x64xf32> -> vector<12x64xf32>
    %155 = tpu.concatenate %151, %149, %153, %149 in 0 : vector<5x64xf32>, vector<1x64xf32>, vector<5x64xf32>, vector<1x64xf32> -> vector<12x64xf32>
    %156 = tpu.concatenate %154, %146, %155 in 1 : vector<12x64xf32>, vector<12x64xf32>, vector<12x64xf32> -> vector<12x192xf32>
    %157 = arith.truncf %156 : vector<12x192xf32> to vector<12x192xbf16>
    %cst_42 = arith.constant dense<0.000000e+00> : vector<12x128xf32>
    %158 = tpu.matmul %157, %147, %cst_42 {dimension_numbers = #tpu.dot_dimension_numbers<[1], [0], [0], [1], [0, 0, 1, 1], [], []>} : vector<12x192xbf16>, vector<192x128xbf16>, vector<12x128xf32> -> vector<12x128xf32>
    %159 = vector.broadcast %148 : vector<1x128xf32> to vector<12x128xf32>
    %160 = arith.addf %158, %159 : vector<12x128xf32>
    %cst_43 = arith.constant 0.000000e+00 : f32
    %161 = vector.broadcast %cst_43 : f32 to vector<12x128xf32>
    %162 = arith.maximumf %160, %161 : vector<12x128xf32>
    %c560 = arith.constant 560 : index
    %c0_44 = arith.constant 0 : index
    %163 = vector.load %arg2[%c560, %c0_44] : memref<1584x128xbf16, #tpu.memory_space<vmem>>, vector<384x64xbf16>
    %c112 = arith.constant 112 : index
    %c0_45 = arith.constant 0 : index
    %164 = vector.load %arg3[%c112, %c0_45] : memref<176x128xf32, #tpu.memory_space<vmem>>, vector<1x64xf32>
    %cst_46 = arith.constant 0.000000e+00 : f32
    %165 = vector.broadcast %cst_46 : f32 to vector<1x128xf32>
    %166 = vector.extract_strided_slice %162 {offsets = [0, 0], sizes = [5, 128], strides = [1, 1]} : vector<12x128xf32> to vector<5x128xf32>
    %167 = vector.extract_strided_slice %162 {offsets = [1, 0], sizes = [5, 128], strides = [1, 1]} : vector<12x128xf32> to vector<5x128xf32>
    %168 = vector.extract_strided_slice %162 {offsets = [6, 0], sizes = [5, 128], strides = [1, 1]} : vector<12x128xf32> to vector<5x128xf32>
    %169 = vector.extract_strided_slice %162 {offsets = [7, 0], sizes = [5, 128], strides = [1, 1]} : vector<12x128xf32> to vector<5x128xf32>
    %170 = tpu.concatenate %165, %166, %165, %168 in 0 : vector<1x128xf32>, vector<5x128xf32>, vector<1x128xf32>, vector<5x128xf32> -> vector<12x128xf32>
    %171 = tpu.concatenate %167, %165, %169, %165 in 0 : vector<5x128xf32>, vector<1x128xf32>, vector<5x128xf32>, vector<1x128xf32> -> vector<12x128xf32>
    %172 = tpu.concatenate %170, %162, %171 in 1 : vector<12x128xf32>, vector<12x128xf32>, vector<12x128xf32> -> vector<12x384xf32>
    %173 = arith.truncf %172 : vector<12x384xf32> to vector<12x384xbf16>
    %cst_47 = arith.constant dense<0.000000e+00> : vector<12x64xf32>
    %174 = tpu.matmul %173, %163, %cst_47 {dimension_numbers = #tpu.dot_dimension_numbers<[1], [0], [0], [1], [0, 0, 1, 1], [], []>} : vector<12x384xbf16>, vector<384x64xbf16>, vector<12x64xf32> -> vector<12x64xf32>
    %175 = vector.broadcast %164 : vector<1x64xf32> to vector<12x64xf32>
    %176 = arith.addf %174, %175 : vector<12x64xf32>
    %177 = arith.addf %176, %146 : vector<12x64xf32>
    %cst_48 = arith.constant 0.000000e+00 : f32
    %178 = vector.broadcast %cst_48 : f32 to vector<12x64xf32>
    %179 = arith.maximumf %177, %178 : vector<12x64xf32>
    %180 = vector.extract_strided_slice %179 {offsets = [0, 0], sizes = [1, 64], strides = [1, 1]} : vector<12x64xf32> to vector<1x64xf32>
    %181 = vector.extract_strided_slice %179 {offsets = [1, 0], sizes = [1, 64], strides = [1, 1]} : vector<12x64xf32> to vector<1x64xf32>
    %182 = arith.addf %180, %181 : vector<1x64xf32>
    %183 = vector.extract_strided_slice %179 {offsets = [2, 0], sizes = [1, 64], strides = [1, 1]} : vector<12x64xf32> to vector<1x64xf32>
    %184 = vector.extract_strided_slice %179 {offsets = [3, 0], sizes = [1, 64], strides = [1, 1]} : vector<12x64xf32> to vector<1x64xf32>
    %185 = arith.addf %183, %184 : vector<1x64xf32>
    %186 = vector.extract_strided_slice %179 {offsets = [4, 0], sizes = [1, 64], strides = [1, 1]} : vector<12x64xf32> to vector<1x64xf32>
    %187 = vector.extract_strided_slice %179 {offsets = [5, 0], sizes = [1, 64], strides = [1, 1]} : vector<12x64xf32> to vector<1x64xf32>
    %188 = arith.addf %186, %187 : vector<1x64xf32>
    %189 = vector.extract_strided_slice %179 {offsets = [6, 0], sizes = [1, 64], strides = [1, 1]} : vector<12x64xf32> to vector<1x64xf32>
    %190 = vector.extract_strided_slice %179 {offsets = [7, 0], sizes = [1, 64], strides = [1, 1]} : vector<12x64xf32> to vector<1x64xf32>
    %191 = arith.addf %189, %190 : vector<1x64xf32>
    %192 = vector.extract_strided_slice %179 {offsets = [8, 0], sizes = [1, 64], strides = [1, 1]} : vector<12x64xf32> to vector<1x64xf32>
    %193 = vector.extract_strided_slice %179 {offsets = [9, 0], sizes = [1, 64], strides = [1, 1]} : vector<12x64xf32> to vector<1x64xf32>
    %194 = arith.addf %192, %193 : vector<1x64xf32>
    %195 = vector.extract_strided_slice %179 {offsets = [10, 0], sizes = [1, 64], strides = [1, 1]} : vector<12x64xf32> to vector<1x64xf32>
    %196 = vector.extract_strided_slice %179 {offsets = [11, 0], sizes = [1, 64], strides = [1, 1]} : vector<12x64xf32> to vector<1x64xf32>
    %197 = arith.addf %195, %196 : vector<1x64xf32>
    %198 = tpu.concatenate %182, %185, %188, %191, %194, %197 in 0 : vector<1x64xf32>, vector<1x64xf32>, vector<1x64xf32>, vector<1x64xf32>, vector<1x64xf32>, vector<1x64xf32> -> vector<6x64xf32>
    %cst_49 = arith.constant 5.000000e-01 : f32
    %199 = vector.broadcast %cst_49 : f32 to vector<6x64xf32>
    %200 = arith.mulf %199, %198 : vector<6x64xf32>
    %c944 = arith.constant 944 : index
    %c0_50 = arith.constant 0 : index
    %201 = vector.load %arg2[%c944, %c0_50] : memref<1584x128xbf16, #tpu.memory_space<vmem>>, vector<192x128xbf16>
    %c128 = arith.constant 128 : index
    %c0_51 = arith.constant 0 : index
    %202 = vector.load %arg3[%c128, %c0_51] : memref<176x128xf32, #tpu.memory_space<vmem>>, vector<1x128xf32>
    %cst_52 = arith.constant 0.000000e+00 : f32
    %203 = vector.broadcast %cst_52 : f32 to vector<1x64xf32>
    %204 = vector.extract_strided_slice %200 {offsets = [0, 0], sizes = [2, 64], strides = [1, 1]} : vector<6x64xf32> to vector<2x64xf32>
    %205 = vector.extract_strided_slice %200 {offsets = [1, 0], sizes = [2, 64], strides = [1, 1]} : vector<6x64xf32> to vector<2x64xf32>
    %206 = vector.extract_strided_slice %200 {offsets = [3, 0], sizes = [2, 64], strides = [1, 1]} : vector<6x64xf32> to vector<2x64xf32>
    %207 = vector.extract_strided_slice %200 {offsets = [4, 0], sizes = [2, 64], strides = [1, 1]} : vector<6x64xf32> to vector<2x64xf32>
    %208 = tpu.concatenate %203, %204, %203, %206 in 0 : vector<1x64xf32>, vector<2x64xf32>, vector<1x64xf32>, vector<2x64xf32> -> vector<6x64xf32>
    %209 = tpu.concatenate %205, %203, %207, %203 in 0 : vector<2x64xf32>, vector<1x64xf32>, vector<2x64xf32>, vector<1x64xf32> -> vector<6x64xf32>
    %210 = tpu.concatenate %208, %200, %209 in 1 : vector<6x64xf32>, vector<6x64xf32>, vector<6x64xf32> -> vector<6x192xf32>
    %211 = arith.truncf %210 : vector<6x192xf32> to vector<6x192xbf16>
    %cst_53 = arith.constant dense<0.000000e+00> : vector<6x128xf32>
    %212 = tpu.matmul %211, %201, %cst_53 {dimension_numbers = #tpu.dot_dimension_numbers<[1], [0], [0], [1], [0, 0, 1, 1], [], []>} : vector<6x192xbf16>, vector<192x128xbf16>, vector<6x128xf32> -> vector<6x128xf32>
    %213 = vector.broadcast %202 : vector<1x128xf32> to vector<6x128xf32>
    %214 = arith.addf %212, %213 : vector<6x128xf32>
    %cst_54 = arith.constant 0.000000e+00 : f32
    %215 = vector.broadcast %cst_54 : f32 to vector<6x128xf32>
    %216 = arith.maximumf %214, %215 : vector<6x128xf32>
    %c1136 = arith.constant 1136 : index
    %c0_55 = arith.constant 0 : index
    %217 = vector.load %arg2[%c1136, %c0_55] : memref<1584x128xbf16, #tpu.memory_space<vmem>>, vector<384x64xbf16>
    %c144_56 = arith.constant 144 : index
    %c0_57 = arith.constant 0 : index
    %218 = vector.load %arg3[%c144_56, %c0_57] : memref<176x128xf32, #tpu.memory_space<vmem>>, vector<1x64xf32>
    %cst_58 = arith.constant 0.000000e+00 : f32
    %219 = vector.broadcast %cst_58 : f32 to vector<1x128xf32>
    %220 = vector.extract_strided_slice %216 {offsets = [0, 0], sizes = [2, 128], strides = [1, 1]} : vector<6x128xf32> to vector<2x128xf32>
    %221 = vector.extract_strided_slice %216 {offsets = [1, 0], sizes = [2, 128], strides = [1, 1]} : vector<6x128xf32> to vector<2x128xf32>
    %222 = vector.extract_strided_slice %216 {offsets = [3, 0], sizes = [2, 128], strides = [1, 1]} : vector<6x128xf32> to vector<2x128xf32>
    %223 = vector.extract_strided_slice %216 {offsets = [4, 0], sizes = [2, 128], strides = [1, 1]} : vector<6x128xf32> to vector<2x128xf32>
    %224 = tpu.concatenate %219, %220, %219, %222 in 0 : vector<1x128xf32>, vector<2x128xf32>, vector<1x128xf32>, vector<2x128xf32> -> vector<6x128xf32>
    %225 = tpu.concatenate %221, %219, %223, %219 in 0 : vector<2x128xf32>, vector<1x128xf32>, vector<2x128xf32>, vector<1x128xf32> -> vector<6x128xf32>
    %226 = tpu.concatenate %224, %216, %225 in 1 : vector<6x128xf32>, vector<6x128xf32>, vector<6x128xf32> -> vector<6x384xf32>
    %227 = arith.truncf %226 : vector<6x384xf32> to vector<6x384xbf16>
    %cst_59 = arith.constant dense<0.000000e+00> : vector<6x64xf32>
    %228 = tpu.matmul %227, %217, %cst_59 {dimension_numbers = #tpu.dot_dimension_numbers<[1], [0], [0], [1], [0, 0, 1, 1], [], []>} : vector<6x384xbf16>, vector<384x64xbf16>, vector<6x64xf32> -> vector<6x64xf32>
    %229 = vector.broadcast %218 : vector<1x64xf32> to vector<6x64xf32>
    %230 = arith.addf %228, %229 : vector<6x64xf32>
    %231 = arith.addf %230, %200 : vector<6x64xf32>
    %cst_60 = arith.constant 0.000000e+00 : f32
    %232 = vector.broadcast %cst_60 : f32 to vector<6x64xf32>
    %233 = arith.maximumf %231, %232 : vector<6x64xf32>
    %234 = vector.extract_strided_slice %233 {offsets = [0, 0], sizes = [1, 64], strides = [1, 1]} : vector<6x64xf32> to vector<1x64xf32>
    %235 = vector.extract_strided_slice %233 {offsets = [1, 0], sizes = [1, 64], strides = [1, 1]} : vector<6x64xf32> to vector<1x64xf32>
    %236 = arith.addf %234, %235 : vector<1x64xf32>
    %237 = vector.extract_strided_slice %233 {offsets = [3, 0], sizes = [1, 64], strides = [1, 1]} : vector<6x64xf32> to vector<1x64xf32>
    %238 = vector.extract_strided_slice %233 {offsets = [4, 0], sizes = [1, 64], strides = [1, 1]} : vector<6x64xf32> to vector<1x64xf32>
    %239 = arith.addf %237, %238 : vector<1x64xf32>
    %240 = tpu.concatenate %236, %239 in 0 : vector<1x64xf32>, vector<1x64xf32> -> vector<2x64xf32>
    %cst_61 = arith.constant 5.000000e-01 : f32
    %241 = vector.broadcast %cst_61 : f32 to vector<2x64xf32>
    %242 = arith.mulf %241, %240 : vector<2x64xf32>
    %c1520 = arith.constant 1520 : index
    %c0_62 = arith.constant 0 : index
    %243 = vector.load %arg2[%c1520, %c0_62] : memref<1584x128xbf16, #tpu.memory_space<vmem>>, vector<64x32xbf16>
    %244 = arith.truncf %242 : vector<2x64xf32> to vector<2x64xbf16>
    %cst_63 = arith.constant dense<0.000000e+00> : vector<2x32xf32>
    %245 = tpu.matmul %244, %243, %cst_63 {dimension_numbers = #tpu.dot_dimension_numbers<[1], [0], [0], [1], [0, 0, 1, 1], [], []>} : vector<2x64xbf16>, vector<64x32xbf16>, vector<2x32xf32> -> vector<2x32xf32>
    %c160 = arith.constant 160 : index
    %c0_64 = arith.constant 0 : index
    %246 = vector.load %arg3[%c160, %c0_64] : memref<176x128xf32, #tpu.memory_space<vmem>>, vector<1x32xf32>
    %247 = vector.broadcast %246 : vector<1x32xf32> to vector<2x32xf32>
    %248 = arith.addf %245, %247 : vector<2x32xf32>
    %cst_65 = arith.constant 0.000000e+00 : f32
    %249 = vector.broadcast %cst_65 : f32 to vector<2x32xf32>
    %250 = arith.maximumf %248, %249 : vector<2x32xf32>
    %cst_66 = arith.constant 0.000000e+00 : f32
    %251 = vector.broadcast %cst_66 : f32 to vector<2x96xf32>
    %252 = tpu.concatenate %250, %251 in 1 : vector<2x32xf32>, vector<2x96xf32> -> vector<2x128xf32>
    %c0_67 = arith.constant 0 : index
    %c0_68 = arith.constant 0 : index
    %253 = vector.load %arg4[%c0_67, %c0_68] : memref<2x128xf32, #tpu.memory_space<vmem>>, vector<2x128xf32>
    tpu.vector_store %arg4[%c0_67, %c0_68], %252 {strides = array<i32>} : memref<2x128xf32, #tpu.memory_space<vmem>>, vector<2x128xf32>,
    return
  }
  func.func @transform_0(%arg0: i32) -> (i32, i32) {
    %c0_i32 = arith.constant 0 : i32
    %c0_i32_0 = arith.constant 0 : i32
    %c0_i32_1 = arith.constant 0 : i32
    return %c0_i32, %c0_i32_0 : i32, i32
  }
  func.func @transform_1(%arg0: i32) -> (i32, i32) {
    %c0_i32 = arith.constant 0 : i32
    %c0_i32_0 = arith.constant 0 : i32
    %c0_i32_1 = arith.constant 0 : i32
    return %c0_i32, %c0_i32_0 : i32, i32
  }
  func.func @transform_2(%arg0: i32) -> (i32, i32) {
    %c0_i32 = arith.constant 0 : i32
    %c0_i32_0 = arith.constant 0 : i32
    %c0_i32_1 = arith.constant 0 : i32
    return %c0_i32, %c0_i32_0 : i32, i32
  }
  func.func @transform_3(%arg0: i32) -> (i32, i32) {
    %c0_i32 = arith.constant 0 : i32
    %c0_i32_0 = arith.constant 0 : i32
    %c0_i32_1 = arith.constant 0 : i32
    return %c0_i32, %c0_i32_0 : i32, i32
  }
}

module attributes {stable_mosaic.version = 11 : i64} {
  func.func @kernel(%arg0: i32, %arg1: memref<40x16xf32, #tpu.memory_space<vmem>>, %arg2: memref<592x128xbf16, #tpu.memory_space<vmem>>, %arg3: memref<128x128xf32, #tpu.memory_space<vmem>>, %arg4: memref<2x128xf32, #tpu.memory_space<vmem>>, %arg5: memref<2x128xf32, #tpu.memory_space<vmem>>) attributes {dimension_semantics = [#tpu.dimension_semantics<arbitrary>], iteration_bounds = array<i64: 1>, scalar_prefetch = 0 : i64, scratch_operands = 0 : i64, tpu.core_type = #tpu.core_type<tc>, window_params = [{pipeline_mode = #tpu.pipeline_mode<synchronous>, transform_indices = @transform_0, window_bounds = array<i64: 40, 16>}, {pipeline_mode = #tpu.pipeline_mode<synchronous>, transform_indices = @transform_1, window_bounds = array<i64: 592, 128>}, {pipeline_mode = #tpu.pipeline_mode<synchronous>, transform_indices = @transform_2, window_bounds = array<i64: 128, 128>}, {pipeline_mode = #tpu.pipeline_mode<synchronous>, transform_indices = @transform_3, window_bounds = array<i64: 2, 128>}, {pipeline_mode = #tpu.pipeline_mode<synchronous>, transform_indices = @transform_4, window_bounds = array<i64: 2, 128>}]} {
    %c0 = arith.constant 0 : index
    %c0_0 = arith.constant 0 : index
    %0 = vector.load %arg1[%c0, %c0_0] : memref<40x16xf32, #tpu.memory_space<vmem>>, vector<40x16xf32>
    %c0_1 = arith.constant 0 : index
    %c0_2 = arith.constant 0 : index
    %1 = vector.load %arg3[%c0_1, %c0_2] : memref<128x128xf32, #tpu.memory_space<vmem>>, vector<16x22xf32>
    %cst = arith.constant dense<0.000000e+00> : vector<40x22xf32>
    %2 = tpu.matmul %0, %1, %cst {dimension_numbers = #tpu.dot_dimension_numbers<[1], [0], [0], [1], [0, 0, 1, 1], [], []>} : vector<40x16xf32>, vector<16x22xf32>, vector<40x22xf32> -> vector<40x22xf32>
    %c16 = arith.constant 16 : index
    %c0_3 = arith.constant 0 : index
    %3 = vector.load %arg3[%c16, %c0_3] : memref<128x128xf32, #tpu.memory_space<vmem>>, vector<1x22xf32>
    %4 = vector.broadcast %3 : vector<1x22xf32> to vector<40x22xf32>
    %5 = arith.addf %2, %4 : vector<40x22xf32>
    %6 = vector.extract_strided_slice %5 {offsets = [0, 0], sizes = [40, 16], strides = [1, 1]} : vector<40x22xf32> to vector<40x16xf32>
    %7 = math.absf %6 : vector<40x16xf32>
    %8 = tpu.iota {dimensions = array<i32: 1>} : vector<40x16xi32>
    %9 = arith.sitofp %8 : vector<40x16xi32> to vector<40x16xf32>
    %cst_4 = arith.constant dense<0xFF800000> : vector<40xf32>
    %10 = vector.multi_reduction <maximumf>, %7, %cst_4 [1] : vector<40x16xf32> to vector<40xf32>
    %11 = vector.shape_cast %10 : vector<40xf32> to vector<40x1xf32>
    %12 = vector.broadcast %11 : vector<40x1xf32> to vector<40x16xf32>
    %13 = arith.cmpf oeq, %7, %12 : vector<40x16xf32>
    %cst_5 = arith.constant 1.600000e+01 : f32
    %14 = vector.broadcast %cst_5 : f32 to vector<40x16xf32>
    %15 = arith.select %13, %9, %14 : vector<40x16xi1>, vector<40x16xf32>
    %cst_6 = arith.constant dense<0x7F800000> : vector<40xf32>
    %16 = vector.multi_reduction <minimumf>, %15, %cst_6 [1] : vector<40x16xf32> to vector<40xf32>
    %17 = vector.shape_cast %16 : vector<40xf32> to vector<40x1xf32>
    %18 = vector.broadcast %17 : vector<40x1xf32> to vector<40x16xf32>
    %19 = arith.cmpf oeq, %9, %18 : vector<40x16xf32>
    %cst_7 = arith.constant -1.000000e+00 : f32
    %20 = vector.broadcast %cst_7 : f32 to vector<40x16xf32>
    %21 = arith.select %19, %20, %7 : vector<40x16xi1>, vector<40x16xf32>
    %cst_8 = arith.constant dense<0xFF800000> : vector<40xf32>
    %22 = vector.multi_reduction <maximumf>, %21, %cst_8 [1] : vector<40x16xf32> to vector<40xf32>
    %23 = vector.shape_cast %22 : vector<40xf32> to vector<40x1xf32>
    %24 = vector.broadcast %23 : vector<40x1xf32> to vector<40x16xf32>
    %25 = arith.cmpf oeq, %21, %24 : vector<40x16xf32>
    %cst_9 = arith.constant 1.600000e+01 : f32
    %26 = vector.broadcast %cst_9 : f32 to vector<40x16xf32>
    %27 = arith.select %25, %9, %26 : vector<40x16xi1>, vector<40x16xf32>
    %cst_10 = arith.constant dense<0x7F800000> : vector<40xf32>
    %28 = vector.multi_reduction <minimumf>, %27, %cst_10 [1] : vector<40x16xf32> to vector<40xf32>
    %29 = vector.shape_cast %28 : vector<40xf32> to vector<40x1xf32>
    %30 = vector.broadcast %29 : vector<40x1xf32> to vector<40x16xf32>
    %31 = arith.cmpf oeq, %9, %30 : vector<40x16xf32>
    %cst_11 = arith.constant -1.000000e+00 : f32
    %32 = vector.broadcast %cst_11 : f32 to vector<40x16xf32>
    %33 = arith.select %31, %32, %21 : vector<40x16xi1>, vector<40x16xf32>
    %cst_12 = arith.constant dense<0xFF800000> : vector<40xf32>
    %34 = vector.multi_reduction <maximumf>, %33, %cst_12 [1] : vector<40x16xf32> to vector<40xf32>
    %35 = vector.shape_cast %34 : vector<40xf32> to vector<40x1xf32>
    %36 = vector.broadcast %35 : vector<40x1xf32> to vector<40x16xf32>
    %37 = arith.cmpf oeq, %33, %36 : vector<40x16xf32>
    %cst_13 = arith.constant 1.600000e+01 : f32
    %38 = vector.broadcast %cst_13 : f32 to vector<40x16xf32>
    %39 = arith.select %37, %9, %38 : vector<40x16xi1>, vector<40x16xf32>
    %cst_14 = arith.constant dense<0x7F800000> : vector<40xf32>
    %40 = vector.multi_reduction <minimumf>, %39, %cst_14 [1] : vector<40x16xf32> to vector<40xf32>
    %41 = vector.shape_cast %40 : vector<40xf32> to vector<40x1xf32>
    %42 = vector.broadcast %41 : vector<40x1xf32> to vector<40x16xf32>
    %43 = arith.cmpf oeq, %9, %42 : vector<40x16xf32>
    %cst_15 = arith.constant -1.000000e+00 : f32
    %44 = vector.broadcast %cst_15 : f32 to vector<40x16xf32>
    %45 = arith.select %43, %44, %33 : vector<40x16xi1>, vector<40x16xf32>
    %cst_16 = arith.constant dense<0xFF800000> : vector<40xf32>
    %46 = vector.multi_reduction <maximumf>, %45, %cst_16 [1] : vector<40x16xf32> to vector<40xf32>
    %47 = vector.shape_cast %46 : vector<40xf32> to vector<40x1xf32>
    %48 = vector.broadcast %47 : vector<40x1xf32> to vector<40x16xf32>
    %49 = arith.cmpf oeq, %45, %48 : vector<40x16xf32>
    %cst_17 = arith.constant 1.600000e+01 : f32
    %50 = vector.broadcast %cst_17 : f32 to vector<40x16xf32>
    %51 = arith.select %49, %9, %50 : vector<40x16xi1>, vector<40x16xf32>
    %cst_18 = arith.constant dense<0x7F800000> : vector<40xf32>
    %52 = vector.multi_reduction <minimumf>, %51, %cst_18 [1] : vector<40x16xf32> to vector<40xf32>
    %53 = vector.shape_cast %52 : vector<40xf32> to vector<40x1xf32>
    %54 = vector.broadcast %53 : vector<40x1xf32> to vector<40x16xf32>
    %55 = arith.cmpf oeq, %9, %54 : vector<40x16xf32>
    %cst_19 = arith.constant -1.000000e+00 : f32
    %56 = vector.broadcast %cst_19 : f32 to vector<40x16xf32>
    %57 = arith.select %55, %56, %45 : vector<40x16xi1>, vector<40x16xf32>
    %cst_20 = arith.constant dense<0xFF800000> : vector<40xf32>
    %58 = vector.multi_reduction <maximumf>, %57, %cst_20 [1] : vector<40x16xf32> to vector<40xf32>
    %59 = vector.shape_cast %58 : vector<40xf32> to vector<40x1xf32>
    %60 = vector.broadcast %59 : vector<40x1xf32> to vector<40x16xf32>
    %61 = arith.cmpf oeq, %57, %60 : vector<40x16xf32>
    %cst_21 = arith.constant 1.600000e+01 : f32
    %62 = vector.broadcast %cst_21 : f32 to vector<40x16xf32>
    %63 = arith.select %61, %9, %62 : vector<40x16xi1>, vector<40x16xf32>
    %cst_22 = arith.constant dense<0x7F800000> : vector<40xf32>
    %64 = vector.multi_reduction <minimumf>, %63, %cst_22 [1] : vector<40x16xf32> to vector<40xf32>
    %65 = vector.shape_cast %64 : vector<40xf32> to vector<40x1xf32>
    %66 = vector.broadcast %65 : vector<40x1xf32> to vector<40x16xf32>
    %67 = arith.cmpf oeq, %9, %66 : vector<40x16xf32>
    %cst_23 = arith.constant -1.000000e+00 : f32
    %68 = vector.broadcast %cst_23 : f32 to vector<40x16xf32>
    %69 = arith.select %67, %68, %57 : vector<40x16xi1>, vector<40x16xf32>
    %cst_24 = arith.constant dense<0xFF800000> : vector<40xf32>
    %70 = vector.multi_reduction <maximumf>, %69, %cst_24 [1] : vector<40x16xf32> to vector<40xf32>
    %71 = vector.shape_cast %70 : vector<40xf32> to vector<40x1xf32>
    %72 = vector.broadcast %71 : vector<40x1xf32> to vector<40x16xf32>
    %73 = arith.cmpf oeq, %69, %72 : vector<40x16xf32>
    %cst_25 = arith.constant 1.600000e+01 : f32
    %74 = vector.broadcast %cst_25 : f32 to vector<40x16xf32>
    %75 = arith.select %73, %9, %74 : vector<40x16xi1>, vector<40x16xf32>
    %cst_26 = arith.constant dense<0x7F800000> : vector<40xf32>
    %76 = vector.multi_reduction <minimumf>, %75, %cst_26 [1] : vector<40x16xf32> to vector<40xf32>
    %77 = vector.shape_cast %76 : vector<40xf32> to vector<40x1xf32>
    %78 = vector.extract_strided_slice %5 {offsets = [0, 16], sizes = [40, 6], strides = [1, 1]} : vector<40x22xf32> to vector<40x6xf32>
    %79 = tpu.concatenate %11, %23, %35, %47, %59, %71, %17, %29, %41, %53, %65, %77, %78 in 1 : vector<40x1xf32>, vector<40x1xf32>, vector<40x1xf32>, vector<40x1xf32>, vector<40x1xf32>, vector<40x1xf32>, vector<40x1xf32>, vector<40x1xf32>, vector<40x1xf32>, vector<40x1xf32>, vector<40x1xf32>, vector<40x1xf32>, vector<40x6xf32> -> vector<40x18xf32>
    %80 = vector.extract_strided_slice %79 {offsets = [0, 0], sizes = [10, 18], strides = [1, 1]} : vector<40x18xf32> to vector<10x18xf32>
    %81 = vector.extract_strided_slice %79 {offsets = [10, 0], sizes = [10, 18], strides = [1, 1]} : vector<40x18xf32> to vector<10x18xf32>
    %82 = vector.extract_strided_slice %79 {offsets = [20, 0], sizes = [10, 18], strides = [1, 1]} : vector<40x18xf32> to vector<10x18xf32>
    %83 = vector.extract_strided_slice %79 {offsets = [30, 0], sizes = [10, 18], strides = [1, 1]} : vector<40x18xf32> to vector<10x18xf32>
    %84 = tpu.concatenate %80, %81, %82, %83 in 1 : vector<10x18xf32>, vector<10x18xf32>, vector<10x18xf32>, vector<10x18xf32> -> vector<10x72xf32>
    %c0_27 = arith.constant 0 : index
    %c0_28 = arith.constant 0 : index
    %85 = vector.load %arg2[%c0_27, %c0_28] : memref<592x128xbf16, #tpu.memory_space<vmem>>, vector<72x32xbf16>
    %86 = arith.truncf %84 : vector<10x72xf32> to vector<10x72xbf16>
    %cst_29 = arith.constant dense<0.000000e+00> : vector<10x32xf32>
    %87 = tpu.matmul %86, %85, %cst_29 {dimension_numbers = #tpu.dot_dimension_numbers<[1], [0], [0], [1], [0, 0, 1, 1], [], []>} : vector<10x72xbf16>, vector<72x32xbf16>, vector<10x32xf32> -> vector<10x32xf32>
    %c32 = arith.constant 32 : index
    %c0_30 = arith.constant 0 : index
    %88 = vector.load %arg3[%c32, %c0_30] : memref<128x128xf32, #tpu.memory_space<vmem>>, vector<1x32xf32>
    %89 = vector.broadcast %88 : vector<1x32xf32> to vector<10x32xf32>
    %90 = arith.addf %87, %89 : vector<10x32xf32>
    %cst_31 = arith.constant 0.000000e+00 : f32
    %91 = vector.broadcast %cst_31 : f32 to vector<10x32xf32>
    %92 = arith.maximumf %90, %91 : vector<10x32xf32>
    %c80 = arith.constant 80 : index
    %c0_32 = arith.constant 0 : index
    %93 = vector.load %arg2[%c80, %c0_32] : memref<592x128xbf16, #tpu.memory_space<vmem>>, vector<96x64xbf16>
    %c48 = arith.constant 48 : index
    %c0_33 = arith.constant 0 : index
    %94 = vector.load %arg3[%c48, %c0_33] : memref<128x128xf32, #tpu.memory_space<vmem>>, vector<1x64xf32>
    %cst_34 = arith.constant 0.000000e+00 : f32
    %95 = vector.broadcast %cst_34 : f32 to vector<1x32xf32>
    %96 = vector.extract_strided_slice %92 {offsets = [0, 0], sizes = [4, 32], strides = [1, 1]} : vector<10x32xf32> to vector<4x32xf32>
    %97 = vector.extract_strided_slice %92 {offsets = [1, 0], sizes = [4, 32], strides = [1, 1]} : vector<10x32xf32> to vector<4x32xf32>
    %98 = vector.extract_strided_slice %92 {offsets = [5, 0], sizes = [4, 32], strides = [1, 1]} : vector<10x32xf32> to vector<4x32xf32>
    %99 = vector.extract_strided_slice %92 {offsets = [6, 0], sizes = [4, 32], strides = [1, 1]} : vector<10x32xf32> to vector<4x32xf32>
    %100 = tpu.concatenate %95, %96, %95, %98 in 0 : vector<1x32xf32>, vector<4x32xf32>, vector<1x32xf32>, vector<4x32xf32> -> vector<10x32xf32>
    %101 = tpu.concatenate %97, %95, %99, %95 in 0 : vector<4x32xf32>, vector<1x32xf32>, vector<4x32xf32>, vector<1x32xf32> -> vector<10x32xf32>
    %102 = tpu.concatenate %100, %92, %101 in 1 : vector<10x32xf32>, vector<10x32xf32>, vector<10x32xf32> -> vector<10x96xf32>
    %103 = arith.truncf %102 : vector<10x96xf32> to vector<10x96xbf16>
    %cst_35 = arith.constant dense<0.000000e+00> : vector<10x64xf32>
    %104 = tpu.matmul %103, %93, %cst_35 {dimension_numbers = #tpu.dot_dimension_numbers<[1], [0], [0], [1], [0, 0, 1, 1], [], []>} : vector<10x96xbf16>, vector<96x64xbf16>, vector<10x64xf32> -> vector<10x64xf32>
    %105 = vector.broadcast %94 : vector<1x64xf32> to vector<10x64xf32>
    %106 = arith.addf %104, %105 : vector<10x64xf32>
    %cst_36 = arith.constant 0.000000e+00 : f32
    %107 = vector.broadcast %cst_36 : f32 to vector<10x64xf32>
    %108 = arith.maximumf %106, %107 : vector<10x64xf32>
    %c176 = arith.constant 176 : index
    %c0_37 = arith.constant 0 : index
    %109 = vector.load %arg2[%c176, %c0_37] : memref<592x128xbf16, #tpu.memory_space<vmem>>, vector<192x32xbf16>
    %c64 = arith.constant 64 : index
    %c0_38 = arith.constant 0 : index
    %110 = vector.load %arg3[%c64, %c0_38] : memref<128x128xf32, #tpu.memory_space<vmem>>, vector<1x32xf32>
    %cst_39 = arith.constant 0.000000e+00 : f32
    %111 = vector.broadcast %cst_39 : f32 to vector<1x64xf32>
    %112 = vector.extract_strided_slice %108 {offsets = [0, 0], sizes = [4, 64], strides = [1, 1]} : vector<10x64xf32> to vector<4x64xf32>
    %113 = vector.extract_strided_slice %108 {offsets = [1, 0], sizes = [4, 64], strides = [1, 1]} : vector<10x64xf32> to vector<4x64xf32>
    %114 = vector.extract_strided_slice %108 {offsets = [5, 0], sizes = [4, 64], strides = [1, 1]} : vector<10x64xf32> to vector<4x64xf32>
    %115 = vector.extract_strided_slice %108 {offsets = [6, 0], sizes = [4, 64], strides = [1, 1]} : vector<10x64xf32> to vector<4x64xf32>
    %116 = tpu.concatenate %111, %112, %111, %114 in 0 : vector<1x64xf32>, vector<4x64xf32>, vector<1x64xf32>, vector<4x64xf32> -> vector<10x64xf32>
    %117 = tpu.concatenate %113, %111, %115, %111 in 0 : vector<4x64xf32>, vector<1x64xf32>, vector<4x64xf32>, vector<1x64xf32> -> vector<10x64xf32>
    %118 = tpu.concatenate %116, %108, %117 in 1 : vector<10x64xf32>, vector<10x64xf32>, vector<10x64xf32> -> vector<10x192xf32>
    %119 = arith.truncf %118 : vector<10x192xf32> to vector<10x192xbf16>
    %cst_40 = arith.constant dense<0.000000e+00> : vector<10x32xf32>
    %120 = tpu.matmul %119, %109, %cst_40 {dimension_numbers = #tpu.dot_dimension_numbers<[1], [0], [0], [1], [0, 0, 1, 1], [], []>} : vector<10x192xbf16>, vector<192x32xbf16>, vector<10x32xf32> -> vector<10x32xf32>
    %121 = vector.broadcast %110 : vector<1x32xf32> to vector<10x32xf32>
    %122 = arith.addf %120, %121 : vector<10x32xf32>
    %123 = arith.addf %122, %92 : vector<10x32xf32>
    %cst_41 = arith.constant 0.000000e+00 : f32
    %124 = vector.broadcast %cst_41 : f32 to vector<10x32xf32>
    %125 = arith.maximumf %123, %124 : vector<10x32xf32>
    %c368 = arith.constant 368 : index
    %c0_42 = arith.constant 0 : index
    %126 = vector.load %arg2[%c368, %c0_42] : memref<592x128xbf16, #tpu.memory_space<vmem>>, vector<32x64xbf16>
    %127 = arith.truncf %125 : vector<10x32xf32> to vector<10x32xbf16>
    %cst_43 = arith.constant dense<0.000000e+00> : vector<10x64xf32>
    %128 = tpu.matmul %127, %126, %cst_43 {dimension_numbers = #tpu.dot_dimension_numbers<[1], [0], [0], [1], [0, 0, 1, 1], [], []>} : vector<10x32xbf16>, vector<32x64xbf16>, vector<10x64xf32> -> vector<10x64xf32>
    %c80_44 = arith.constant 80 : index
    %c0_45 = arith.constant 0 : index
    %129 = vector.load %arg3[%c80_44, %c0_45] : memref<128x128xf32, #tpu.memory_space<vmem>>, vector<1x64xf32>
    %130 = vector.broadcast %129 : vector<1x64xf32> to vector<10x64xf32>
    %131 = arith.addf %128, %130 : vector<10x64xf32>
    %132 = vector.extract_strided_slice %131 {offsets = [0, 0], sizes = [1, 64], strides = [1, 1]} : vector<10x64xf32> to vector<1x64xf32>
    %133 = vector.extract_strided_slice %131 {offsets = [1, 0], sizes = [1, 64], strides = [1, 1]} : vector<10x64xf32> to vector<1x64xf32>
    %134 = arith.addf %132, %133 : vector<1x64xf32>
    %135 = vector.extract_strided_slice %131 {offsets = [2, 0], sizes = [1, 64], strides = [1, 1]} : vector<10x64xf32> to vector<1x64xf32>
    %136 = vector.extract_strided_slice %131 {offsets = [3, 0], sizes = [1, 64], strides = [1, 1]} : vector<10x64xf32> to vector<1x64xf32>
    %137 = arith.addf %135, %136 : vector<1x64xf32>
    %138 = vector.extract_strided_slice %131 {offsets = [5, 0], sizes = [1, 64], strides = [1, 1]} : vector<10x64xf32> to vector<1x64xf32>
    %139 = vector.extract_strided_slice %131 {offsets = [6, 0], sizes = [1, 64], strides = [1, 1]} : vector<10x64xf32> to vector<1x64xf32>
    %140 = arith.addf %138, %139 : vector<1x64xf32>
    %141 = vector.extract_strided_slice %131 {offsets = [7, 0], sizes = [1, 64], strides = [1, 1]} : vector<10x64xf32> to vector<1x64xf32>
    %142 = vector.extract_strided_slice %131 {offsets = [8, 0], sizes = [1, 64], strides = [1, 1]} : vector<10x64xf32> to vector<1x64xf32>
    %143 = arith.addf %141, %142 : vector<1x64xf32>
    %144 = tpu.concatenate %134, %137, %140, %143 in 0 : vector<1x64xf32>, vector<1x64xf32>, vector<1x64xf32>, vector<1x64xf32> -> vector<4x64xf32>
    %cst_46 = arith.constant 5.000000e-01 : f32
    %145 = vector.broadcast %cst_46 : f32 to vector<4x64xf32>
    %146 = arith.mulf %145, %144 : vector<4x64xf32>
    %147 = vector.extract_strided_slice %146 {offsets = [0, 0], sizes = [1, 64], strides = [1, 1]} : vector<4x64xf32> to vector<1x64xf32>
    %148 = vector.extract_strided_slice %146 {offsets = [1, 0], sizes = [1, 64], strides = [1, 1]} : vector<4x64xf32> to vector<1x64xf32>
    %149 = tpu.concatenate %147, %148 in 1 : vector<1x64xf32>, vector<1x64xf32> -> vector<1x128xf32>
    %150 = vector.extract_strided_slice %146 {offsets = [2, 0], sizes = [1, 64], strides = [1, 1]} : vector<4x64xf32> to vector<1x64xf32>
    %151 = vector.extract_strided_slice %146 {offsets = [3, 0], sizes = [1, 64], strides = [1, 1]} : vector<4x64xf32> to vector<1x64xf32>
    %152 = tpu.concatenate %150, %151 in 1 : vector<1x64xf32>, vector<1x64xf32> -> vector<1x128xf32>
    %153 = tpu.concatenate %149, %152 in 0 : vector<1x128xf32>, vector<1x128xf32> -> vector<2x128xf32>
    %c400 = arith.constant 400 : index
    %c0_47 = arith.constant 0 : index
    %154 = vector.load %arg2[%c400, %c0_47] : memref<592x128xbf16, #tpu.memory_space<vmem>>, vector<128x32xbf16>
    %155 = arith.truncf %153 : vector<2x128xf32> to vector<2x128xbf16>
    %cst_48 = arith.constant dense<0.000000e+00> : vector<2x32xf32>
    %156 = tpu.matmul %155, %154, %cst_48 {dimension_numbers = #tpu.dot_dimension_numbers<[1], [0], [0], [1], [0, 0, 1, 1], [], []>} : vector<2x128xbf16>, vector<128x32xbf16>, vector<2x32xf32> -> vector<2x32xf32>
    %c96 = arith.constant 96 : index
    %c0_49 = arith.constant 0 : index
    %157 = vector.load %arg3[%c96, %c0_49] : memref<128x128xf32, #tpu.memory_space<vmem>>, vector<1x32xf32>
    %158 = vector.broadcast %157 : vector<1x32xf32> to vector<2x32xf32>
    %159 = arith.addf %156, %158 : vector<2x32xf32>
    %cst_50 = arith.constant 0.000000e+00 : f32
    %160 = vector.broadcast %cst_50 : f32 to vector<2x32xf32>
    %161 = arith.maximumf %159, %160 : vector<2x32xf32>
    %c112 = arith.constant 112 : index
    %c0_51 = arith.constant 0 : index
    %162 = vector.load %arg3[%c112, %c0_51] : memref<128x128xf32, #tpu.memory_space<vmem>>, vector<1x128xf32>
    %c0_52 = arith.constant 0 : index
    %c0_53 = arith.constant 0 : index
    %163 = vector.load %arg4[%c0_52, %c0_53] : memref<2x128xf32, #tpu.memory_space<vmem>>, vector<2x32xf32>
    %c528 = arith.constant 528 : index
    %c0_54 = arith.constant 0 : index
    %164 = vector.load %arg2[%c528, %c0_54] : memref<592x128xbf16, #tpu.memory_space<vmem>>, vector<32x128xbf16>
    %165 = arith.truncf %163 : vector<2x32xf32> to vector<2x32xbf16>
    %cst_55 = arith.constant dense<0.000000e+00> : vector<2x128xf32>
    %166 = tpu.matmul %165, %164, %cst_55 {dimension_numbers = #tpu.dot_dimension_numbers<[1], [0], [0], [1], [0, 0, 1, 1], [], []>} : vector<2x32xbf16>, vector<32x128xbf16>, vector<2x128xf32> -> vector<2x128xf32>
    %167 = vector.broadcast %162 : vector<1x128xf32> to vector<2x128xf32>
    %168 = arith.addf %167, %166 : vector<2x128xf32>
    %c560 = arith.constant 560 : index
    %c0_56 = arith.constant 0 : index
    %169 = vector.load %arg2[%c560, %c0_56] : memref<592x128xbf16, #tpu.memory_space<vmem>>, vector<32x128xbf16>
    %170 = arith.truncf %161 : vector<2x32xf32> to vector<2x32xbf16>
    %cst_57 = arith.constant dense<0.000000e+00> : vector<2x128xf32>
    %171 = tpu.matmul %170, %169, %cst_57 {dimension_numbers = #tpu.dot_dimension_numbers<[1], [0], [0], [1], [0, 0, 1, 1], [], []>} : vector<2x32xbf16>, vector<32x128xbf16>, vector<2x128xf32> -> vector<2x128xf32>
    %172 = arith.addf %168, %171 : vector<2x128xf32>
    %c0_58 = arith.constant 0 : index
    %c0_59 = arith.constant 0 : index
    %173 = vector.load %arg5[%c0_58, %c0_59] : memref<2x128xf32, #tpu.memory_space<vmem>>, vector<2x128xf32>
    tpu.vector_store %arg5[%c0_58, %c0_59], %172 {strides = array<i32>} : memref<2x128xf32, #tpu.memory_space<vmem>>, vector<2x128xf32>,
    return
  }
  func.func @transform_0(%arg0: i32) -> (i32, i32) {
    %c0_i32 = arith.constant 0 : i32
    %c0_i32_0 = arith.constant 0 : i32
    %c0_i32_1 = arith.constant 0 : i32
    return %c0_i32, %c0_i32_0 : i32, i32
  }
  func.func @transform_1(%arg0: i32) -> (i32, i32) {
    %c0_i32 = arith.constant 0 : i32
    %c0_i32_0 = arith.constant 0 : i32
    %c0_i32_1 = arith.constant 0 : i32
    return %c0_i32, %c0_i32_0 : i32, i32
  }
  func.func @transform_2(%arg0: i32) -> (i32, i32) {
    %c0_i32 = arith.constant 0 : i32
    %c0_i32_0 = arith.constant 0 : i32
    %c0_i32_1 = arith.constant 0 : i32
    return %c0_i32, %c0_i32_0 : i32, i32
  }
  func.func @transform_3(%arg0: i32) -> (i32, i32) {
    %c0_i32 = arith.constant 0 : i32
    %c0_i32_0 = arith.constant 0 : i32
    %c0_i32_1 = arith.constant 0 : i32
    return %c0_i32, %c0_i32_0 : i32, i32
  }
  func.func @transform_4(%arg0: i32) -> (i32, i32) {
    %c0_i32 = arith.constant 0 : i32
    %c0_i32_0 = arith.constant 0 : i32
    %c0_i32_1 = arith.constant 0 : i32
    return %c0_i32, %c0_i32_0 : i32, i32
  }
}

</mosaic_0001>

<llo_original>
// kernel: _lambda_.3
$region0: #{_lambda_.3}
  #allocation0 [shape = 'u32[]', space=smem, size = 0x4, offset = 0x4, fixed_abs, tag = 'smem constant byte address 0x4 - core index']
  #allocation1 [shape = 'u32[144,128]{1,0:T(1,128)}', space=vmem, size = 0x12000, scoped, tag = 'internal scratch']
  %s0 = inlined_call_operand.vmem [shape: f32[40,16], index: 0, kind: input, shape index: {}]
  %s1 = inlined_call_operand.vmem [shape: bf16[592,128], index: 1, kind: input, shape index: {}]
  %s2 = inlined_call_operand.vmem [shape: f32[128,128], index: 2, kind: input, shape index: {}]
  %s3 = inlined_call_operand.vmem [shape: f32[2,128], index: 3, kind: input, shape index: {}]
  %s4 = inlined_call_operand.hbm [shape: f32[2,128], index: 4, kind: output, shape index: {}]
  %s5 = sld [smem:[#allocation0]]
  $region26: #{_lambda_.3} parent=0
    _
  %s7 = ssub.s32 1, %s5
  %s8 = scalar_select 0, %s7, %s5
  $region1: #{_lambda_.3} parent=0
    #allocation2 [shape = 'u8[1024]{0}', space=vmem, size = 0x400, scoped, tag = 'output window, operand 0, single buffered']
    #allocation3 [shape = 's32[1]{0}', space=sflag, size = 0x4, scoped, tag = 'scoped memory for _lambda_.3']
    %9 = vsyncpa [#allocation3], 0
    // Predicated region
    $region2: #{_lambda_.3} parent=1 // pred_check
      _
    $region3: #{_lambda_.3} parent=1 // pred_check_branch
      %11 = sbr.rel (0) target = $region5
    $region4: #{_lambda_.3} parent=1 // pred_region
      _
    $region5: #{_lambda_.3} parent=1 // pred_fallthru
      _
    // Predicated region
    $region6: #{_lambda_.3} parent=1 // pred_check
      _
    $region7: #{_lambda_.3} parent=1 // pred_check_branch
      %13 = sbr.rel (0) target = $region9
    $region8: #{_lambda_.3} parent=1 // pred_region
      _
    $region9: #{_lambda_.3} parent=1 // pred_fallthru
      _
    // Predicated region
    $region10: #{_lambda_.3} parent=1 // pred_check
      _
    $region11: #{_lambda_.3} parent=1 // pred_check_branch
      %15 = sbr.rel (0) target = $region13
    $region12: #{_lambda_.3} parent=1 // pred_region
      _
    $region13: #{_lambda_.3} parent=1 // pred_fallthru
      _
    // Predicated region
    $region14: #{_lambda_.3} parent=1 // pred_check
      _
    $region15: #{_lambda_.3} parent=1 // pred_check_branch
      %17 = sbr.rel (0) target = $region17
    $region16: #{_lambda_.3} parent=1 // pred_region
      _
    $region17: #{_lambda_.3} parent=1 // pred_fallthru
      _
    %v19 = vld [vmem:[%s0] sm:$0xff]
    %v20 = vld [vmem:[%s0 + $0x8] sm:$0xff]
    %v21 = vld [vmem:[%s0 + $0x10] sm:$0xff]
    %v22 = vld [vmem:[%s0 + $0x18] sm:$0xff]
    %v23 = vld [vmem:[%s0 + $0x20] sm:$0xff]
    %v24 = vld [vmem:[%s2] sm:$0xff]
    %v25 = vld [vmem:[%s2 + $0x8] sm:$0xff]
    %v26 = vld [vmem:[%s2 + $0x10] sm:$0x1]
    %v27 = vlaneseq
    %v28 = vshrl.u32 %v27, 7
    %v29 = vsub.s32 0, %v28
    %v30 = vrot.slane %v26, %v29
    %vm31 = vcmask 130048
    %v33 = vsel %vm31, %v19, 0
    %v36 = vsel %vm31, %v20, 0
    %v39 = vsel %vm31, %v21, 0
    %v42 = vsel %vm31, %v22, 0
    %v45 = vsel %vm31, %v23, 0
    %47 = vmatprep.subr.mxu0 0.0
    %48 = vmatpush1.msra.mxu0 %v24
    %49 = vmatprep.subr.mxu0 0.0
    %50 = vmatpush1.msra.mxu0 %v25
    %51 = vmatprep.subr.mxu0 0.0
    %52 = vmatpush1.msra.mxu0 0.0
    %53 = vmatprep.subr.mxu0 0.0
    %54 = vmatpush1.msra.mxu0 0.0
    %55 = vmatprep.subr.mxu0 0.0
    %56 = vmatpush1.msra.mxu0 0.0
    %57 = vmatprep.subr.mxu0 0.0
    %58 = vmatpush1.msra.mxu0 0.0
    %59 = vmatprep.subr.mxu0 0.0
    %60 = vmatpush1.msra.mxu0 0.0
    %61 = vmatprep.subr.mxu0 0.0
    %62 = vmatpush1.msra.mxu0 0.0
    %63 = vmatprep.subr.mxu0 0.0
    %64 = vmatpush1.msra.mxu0 0.0
    %65 = vmatprep.subr.mxu0 0.0
    %66 = vmatpush1.msra.mxu0 0.0
    %67 = vmatprep.subr.mxu0 0.0
    %68 = vmatpush1.msra.mxu0 0.0
    %69 = vmatprep.subr.mxu0 0.0
    %70 = vmatpush1.msra.mxu0 0.0
    %71 = vmatprep.subr.mxu0 0.0
    %72 = vmatpush1.msra.mxu0 0.0
    %73 = vmatprep.subr.mxu0 0.0
    %74 = vmatpush1.msra.mxu0 0.0
    %75 = vmatprep.subr.mxu0 0.0
    %76 = vmatpush1.msra.mxu0 0.0
    %77 = vmatprep.subr.mxu0 0.0
    %78 = vmatpush1.msra.mxu0 0.0
    %79 = vmatprep.subr.mxu0 0.0
    %80 = vmatpush1.msra.mxu0 0.0
    %81 = vmatprep.subr.mxu0 0.0
    %82 = vmatpush1.msra.mxu0 0.0
    %83 = vmatprep.subr.mxu0 0.0
    %84 = vmatpush1.msra.mxu0 0.0
    %85 = vmatprep.subr.mxu0 0.0
    %86 = vmatpush1.msra.mxu0 0.0
    %87 = vmatprep.subr.mxu0 0.0
    %88 = vmatpush1.msra.mxu0 0.0
    %89 = vmatprep.subr.mxu0 0.0
    %90 = vmatpush1.msra.mxu0 0.0
    %91 = vmatprep.subr.mxu0 0.0
    %92 = vmatpush1.msra.mxu0 0.0
    %93 = vmatprep.subr.mxu0 0.0
    %94 = vmatpush1.msra.mxu0 0.0
    %95 = vmatprep.subr.mxu0 0.0
    %96 = vmatpush1.msra.mxu0 0.0
    %97 = vmatprep.subr.mxu0 0.0
    %98 = vmatpush1.msra.mxu0 0.0
    %99 = vmatprep.subr.mxu0 0.0
    %100 = vmatpush1.msra.mxu0 0.0
    %101 = vmatprep.subr.mxu0 0.0
    %102 = vmatpush1.msra.mxu0 0.0
    %103 = vmatprep.subr.mxu0 0.0
    %104 = vmatpush1.msra.mxu0 0.0
    %105 = vmatprep.subr.mxu0 0.0
    %106 = vmatpush1.msra.mxu0 0.0
    %107 = vmatprep.subr.mxu0 0.0
    %108 = vmatpush1.msra.mxu0 0.0
    %109 = vmatprep.subr.mxu0 0.0
    %110 = vmatpush1.msra.mxu0 0.0
    %111 = vmatprep.mubr.f32.mxu0 0.0
    %112 = vmatmul.mubr.f32.gmra.mrb[0].mxu0 %v33
    %v113 = vpop.f32.mrb[0].mxu0
    %v114 = vadd.f32 %v30, %v113
    %v115 = vpop.f32.mrb[0].mxu0
    %116 = vmatprep.mubr.f32.mxu0 0.0
    %117 = vmatmul.mubr.f32.gmra.mrb[0].mxu0 %v36
    %v118 = vpop.f32.mrb[0].mxu0
    %v119 = vadd.f32 %v30, %v118
    %v120 = vpop.f32.mrb[0].mxu0
    %121 = vmatprep.mubr.f32.mxu0 0.0
    %122 = vmatmul.mubr.f32.gmra.mrb[0].mxu0 %v39
    %v123 = vpop.f32.mrb[0].mxu0
    %v124 = vadd.f32 %v30, %v123
    %v125 = vpop.f32.mrb[0].mxu0
    %126 = vmatprep.mubr.f32.mxu0 0.0
    %127 = vmatmul.mubr.f32.gmra.mrb[0].mxu0 %v42
    %v128 = vpop.f32.mrb[0].mxu0
    %v129 = vadd.f32 %v30, %v128
    %v130 = vpop.f32.mrb[0].mxu0
    %131 = vmatprep.mubr.f32.mxu0 0.0
    %132 = vmatmul.mubr.f32.gmra.mrb[0].mxu0 %v45
    %v133 = vpop.f32.mrb[0].mxu0
    %v134 = vadd.f32 %v30, %v133
    %v135 = vpop.f32.mrb[0].mxu0
    %136 = vdwg.mxu0
    %v137 = vand.u32 2147483647, %v114
    %v138 = vand.u32 2147483647, %v119
    %v139 = vand.u32 2147483647, %v124
    %v140 = vand.u32 2147483647, %v129
    %v141 = vand.u32 2147483647, %v134
    %v142 = vlaneseq
    %v143 = vand.u32 %v142, 127
    %v144 = vcvt.s32.f32 %v143
    %v145 = vsel %vm31, %v137, -inf
    %146 = vmax.xlane.f32.xlu0 %v145
    %v147 = vpop.xlane.xlu0 %146
    %v148 = vsel %vm31, %v138, -inf
    %149 = vmax.xlane.f32.xlu0 %v148
    %v150 = vpop.xlane.xlu0 %149
    %v151 = vsel %vm31, %v139, -inf
    %152 = vmax.xlane.f32.xlu0 %v151
    %v153 = vpop.xlane.xlu0 %152
    %v154 = vsel %vm31, %v140, -inf
    %155 = vmax.xlane.f32.xlu0 %v154
    %v156 = vpop.xlane.xlu0 %155
    %v157 = vsel %vm31, %v141, -inf
    %158 = vmax.xlane.f32.xlu0 %v157
    %v159 = vpop.xlane.xlu0 %158
    %vm160 = vcmp.eq.f32.partialorder %v137, %v147
    %vm161 = vcmp.eq.f32.partialorder %v138, %v150
    %vm162 = vcmp.eq.f32.partialorder %v139, %v153
    %vm163 = vcmp.eq.f32.partialorder %v140, %v156
    %vm164 = vcmp.eq.f32.partialorder %v141, %v159
    %v165 = vsel %vm160, %v144, 16.0
    %v166 = vsel %vm161, %v144, 16.0
    %v167 = vsel %vm162, %v144, 16.0
    %v168 = vsel %vm163, %v144, 16.0
    %v169 = vsel %vm164, %v144, 16.0
    %v170 = vsel %vm31, %v165, inf
    %171 = vmin.xlane.f32.xlu0 %v170
    %v172 = vpop.xlane.xlu0 %171
    %v173 = vsel %vm31, %v166, inf
    %174 = vmin.xlane.f32.xlu0 %v173
    %v175 = vpop.xlane.xlu0 %174
    %v176 = vsel %vm31, %v167, inf
    %177 = vmin.xlane.f32.xlu0 %v176
    %v178 = vpop.xlane.xlu0 %177
    %v179 = vsel %vm31, %v168, inf
    %180 = vmin.xlane.f32.xlu0 %v179
    %v181 = vpop.xlane.xlu0 %180
    %v182 = vsel %vm31, %v169, inf
    %183 = vmin.xlane.f32.xlu0 %v182
    %v184 = vpop.xlane.xlu0 %183
    %vm185 = vcmp.eq.f32.partialorder %v144, %v172
    %vm186 = vcmp.eq.f32.partialorder %v144, %v175
    %vm187 = vcmp.eq.f32.partialorder %v144, %v178
    %vm188 = vcmp.eq.f32.partialorder %v144, %v181
    %vm189 = vcmp.eq.f32.partialorder %v144, %v184
    %v190 = vsel %vm185, -1.0, %v137
    %v191 = vsel %vm186, -1.0, %v138
    %v192 = vsel %vm187, -1.0, %v139
    %v193 = vsel %vm188, -1.0, %v140
    %v194 = vsel %vm189, -1.0, %v141
    %v195 = vsel %vm31, %v190, -inf
    %196 = vmax.xlane.f32.xlu0 %v195
    %v197 = vpop.xlane.xlu0 %196
    %v198 = vsel %vm31, %v191, -inf
    %199 = vmax.xlane.f32.xlu0 %v198
    %v200 = vpop.xlane.xlu0 %199
    %v201 = vsel %vm31, %v192, -inf
    %202 = vmax.xlane.f32.xlu0 %v201
    %v203 = vpop.xlane.xlu0 %202
    %v204 = vsel %vm31, %v193, -inf
    %205 = vmax.xlane.f32.xlu0 %v204
    %v206 = vpop.xlane.xlu0 %205
    %v207 = vsel %vm31, %v194, -inf
    %208 = vmax.xlane.f32.xlu0 %v207
    %v209 = vpop.xlane.xlu0 %208
    %vm210 = vcmp.eq.f32.partialorder %v190, %v197
    %vm211 = vcmp.eq.f32.partialorder %v191, %v200
    %vm212 = vcmp.eq.f32.partialorder %v192, %v203
    %vm213 = vcmp.eq.f32.partialorder %v193, %v206
    %vm214 = vcmp.eq.f32.partialorder %v194, %v209
    %v215 = vsel %vm210, %v144, 16.0
    %v216 = vsel %vm211, %v144, 16.0
    %v217 = vsel %vm212, %v144, 16.0
    %v218 = vsel %vm213, %v144, 16.0
    %v219 = vsel %vm214, %v144, 16.0
    %v220 = vsel %vm31, %v215, inf
    %221 = vmin.xlane.f32.xlu0 %v220
    %v222 = vpop.xlane.xlu0 %221
    %v223 = vsel %vm31, %v216, inf
    %224 = vmin.xlane.f32.xlu0 %v223
    %v225 = vpop.xlane.xlu0 %224
    %v226 = vsel %vm31, %v217, inf
    %227 = vmin.xlane.f32.xlu0 %v226
    %v228 = vpop.xlane.xlu0 %227
    %v229 = vsel %vm31, %v218, inf
    %230 = vmin.xlane.f32.xlu0 %v229
    %v231 = vpop.xlane.xlu0 %230
    %v232 = vsel %vm31, %v219, inf
    %233 = vmin.xlane.f32.xlu0 %v232
    %v234 = vpop.xlane.xlu0 %233
    %vm235 = vcmp.eq.f32.partialorder %v144, %v222
    %vm236 = vcmp.eq.f32.partialorder %v144, %v225
    %vm237 = vcmp.eq.f32.partialorder %v144, %v228
    %vm238 = vcmp.eq.f32.partialorder %v144, %v231
    %vm239 = vcmp.eq.f32.partialorder %v144, %v234
    %v240 = vsel %vm235, -1.0, %v190
    %v241 = vsel %vm236, -1.0, %v191
    %v242 = vsel %vm237, -1.0, %v192
    %v243 = vsel %vm238, -1.0, %v193
    %v244 = vsel %vm239, -1.0, %v194
    %v245 = vsel %vm31, %v240, -inf
    %246 = vmax.xlane.f32.xlu0 %v245
    %v247 = vpop.xlane.xlu0 %246
    %v248 = vsel %vm31, %v241, -inf
    %249 = vmax.xlane.f32.xlu0 %v248
    %v250 = vpop.xlane.xlu0 %249
    %v251 = vsel %vm31, %v242, -inf
    %252 = vmax.xlane.f32.xlu0 %v251
    %v253 = vpop.xlane.xlu0 %252
    %v254 = vsel %vm31, %v243, -inf
    %255 = vmax.xlane.f32.xlu0 %v254
    %v256 = vpop.xlane.xlu0 %255
    %v257 = vsel %vm31, %v244, -inf
    %258 = vmax.xlane.f32.xlu0 %v257
    %v259 = vpop.xlane.xlu0 %258
    %vm260 = vcmp.eq.f32.partialorder %v240, %v247
    %vm261 = vcmp.eq.f32.partialorder %v241, %v250
    %vm262 = vcmp.eq.f32.partialorder %v242, %v253
    %vm263 = vcmp.eq.f32.partialorder %v243, %v256
    %vm264 = vcmp.eq.f32.partialorder %v244, %v259
    %v265 = vsel %vm260, %v144, 16.0
    %v266 = vsel %vm261, %v144, 16.0
    %v267 = vsel %vm262, %v144, 16.0
    %v268 = vsel %vm263, %v144, 16.0
    %v269 = vsel %vm264, %v144, 16.0
    %v270 = vsel %vm31, %v265, inf
    %271 = vmin.xlane.f32.xlu0 %v270
    %v272 = vpop.xlane.xlu0 %271
    %v273 = vsel %vm31, %v266, inf
    %274 = vmin.xlane.f32.xlu0 %v273
    %v275 = vpop.xlane.xlu0 %274
    %v276 = vsel %vm31, %v267, inf
    %277 = vmin.xlane.f32.xlu0 %v276
    %v278 = vpop.xlane.xlu0 %277
    %v279 = vsel %vm31, %v268, inf
    %280 = vmin.xlane.f32.xlu0 %v279
    %v281 = vpop.xlane.xlu0 %280
    %v282 = vsel %vm31, %v269, inf
    %283 = vmin.xlane.f32.xlu0 %v282
    %v284 = vpop.xlane.xlu0 %283
    %vm285 = vcmp.eq.f32.partialorder %v144, %v272
    %vm286 = vcmp.eq.f32.partialorder %v144, %v275
    %vm287 = vcmp.eq.f32.partialorder %v144, %v278
    %vm288 = vcmp.eq.f32.partialorder %v144, %v281
    %vm289 = vcmp.eq.f32.partialorder %v144, %v284
    %v290 = vsel %vm285, -1.0, %v240
    %v291 = vsel %vm286, -1.0, %v241
    %v292 = vsel %vm287, -1.0, %v242
    %v293 = vsel %vm288, -1.0, %v243
    %v294 = vsel %vm289, -1.0, %v244
    %v295 = vsel %vm31, %v290, -inf
    %296 = vmax.xlane.f32.xlu0 %v295
    %v297 = vpop.xlane.xlu0 %296
    %v298 = vsel %vm31, %v291, -inf
    %299 = vmax.xlane.f32.xlu0 %v298
    %v300 = vpop.xlane.xlu0 %299
    %v301 = vsel %vm31, %v292, -inf
    %302 = vmax.xlane.f32.xlu0 %v301
    %v303 = vpop.xlane.xlu0 %302
    %v304 = vsel %vm31, %v293, -inf
    %305 = vmax.xlane.f32.xlu0 %v304
    %v306 = vpop.xlane.xlu0 %305
    %v307 = vsel %vm31, %v294, -inf
    %308 = vmax.xlane.f32.xlu0 %v307
    %v309 = vpop.xlane.xlu0 %308
    %vm310 = vcmp.eq.f32.partialorder %v290, %v297
    %vm311 = vcmp.eq.f32.partialorder %v291, %v300
    %vm312 = vcmp.eq.f32.partialorder %v292, %v303
    %vm313 = vcmp.eq.f32.partialorder %v293, %v306
    %vm314 = vcmp.eq.f32.partialorder %v294, %v309
    %v315 = vsel %vm310, %v144, 16.0
    %v316 = vsel %vm311, %v144, 16.0
    %v317 = vsel %vm312, %v144, 16.0
    %v318 = vsel %vm313, %v144, 16.0
    %v319 = vsel %vm314, %v144, 16.0
    %v320 = vsel %vm31, %v315, inf
    %321 = vmin.xlane.f32.xlu0 %v320
    %v322 = vpop.xlane.xlu0 %321
    %v323 = vsel %vm31, %v316, inf
    %324 = vmin.xlane.f32.xlu0 %v323
    %v325 = vpop.xlane.xlu0 %324
    %v326 = vsel %vm31, %v317, inf
    %327 = vmin.xlane.f32.xlu0 %v326
    %v328 = vpop.xlane.xlu0 %327
    %v329 = vsel %vm31, %v318, inf
    %330 = vmin.xlane.f32.xlu0 %v329
    %v331 = vpop.xlane.xlu0 %330
    %v332 = vsel %vm31, %v319, inf
    %333 = vmin.xlane.f32.xlu0 %v332
    %v334 = vpop.xlane.xlu0 %333
    %vm335 = vcmp.eq.f32.partialorder %v144, %v322
    %vm336 = vcmp.eq.f32.partialorder %v144, %v325
    %vm337 = vcmp.eq.f32.partialorder %v144, %v328
    %vm338 = vcmp.eq.f32.partialorder %v144, %v331
    %vm339 = vcmp.eq.f32.partialorder %v144, %v334
    %v340 = vsel %vm335, -1.0, %v290
    %v341 = vsel %vm336, -1.0, %v291
    %v342 = vsel %vm337, -1.0, %v292
    %v343 = vsel %vm338, -1.0, %v293
    %v344 = vsel %vm339, -1.0, %v294
    %v345 = vsel %vm31, %v340, -inf
    %346 = vmax.xlane.f32.xlu0 %v345
    %v347 = vpop.xlane.xlu0 %346
    %v348 = vsel %vm31, %v341, -inf
    %349 = vmax.xlane.f32.xlu0 %v348
    %v350 = vpop.xlane.xlu0 %349
    %v351 = vsel %vm31, %v342, -inf
    %352 = vmax.xlane.f32.xlu0 %v351
    %v353 = vpop.xlane.xlu0 %352
    %v354 = vsel %vm31, %v343, -inf
    %355 = vmax.xlane.f32.xlu0 %v354
    %v356 = vpop.xlane.xlu0 %355
    %v357 = vsel %vm31, %v344, -inf
    %358 = vmax.xlane.f32.xlu0 %v357
    %v359 = vpop.xlane.xlu0 %358
    %vm360 = vcmp.eq.f32.partialorder %v340, %v347
    %vm361 = vcmp.eq.f32.partialorder %v341, %v350
    %vm362 = vcmp.eq.f32.partialorder %v342, %v353
    %vm363 = vcmp.eq.f32.partialorder %v343, %v356
    %vm364 = vcmp.eq.f32.partialorder %v344, %v359
    %v365 = vsel %vm360, %v144, 16.0
    %v366 = vsel %vm361, %v144, 16.0
    %v367 = vsel %vm362, %v144, 16.0
    %v368 = vsel %vm363, %v144, 16.0
    %v369 = vsel %vm364, %v144, 16.0
    %v370 = vsel %vm31, %v365, inf
    %371 = vmin.xlane.f32.xlu0 %v370
    %v372 = vpop.xlane.xlu0 %371
    %v373 = vsel %vm31, %v366, inf
    %374 = vmin.xlane.f32.xlu0 %v373
    %v375 = vpop.xlane.xlu0 %374
    %v376 = vsel %vm31, %v367, inf
    %377 = vmin.xlane.f32.xlu0 %v376
    %v378 = vpop.xlane.xlu0 %377
    %v379 = vsel %vm31, %v368, inf
    %380 = vmin.xlane.f32.xlu0 %v379
    %v381 = vpop.xlane.xlu0 %380
    %v382 = vsel %vm31, %v369, inf
    %383 = vmin.xlane.f32.xlu0 %v382
    %v384 = vpop.xlane.xlu0 %383
    %vm385 = vcmp.eq.f32.partialorder %v144, %v372
    %vm386 = vcmp.eq.f32.partialorder %v144, %v375
    %vm387 = vcmp.eq.f32.partialorder %v144, %v378
    %vm388 = vcmp.eq.f32.partialorder %v144, %v381
    %vm389 = vcmp.eq.f32.partialorder %v144, %v384
    %v390 = vsel %vm385, -1.0, %v340
    %v391 = vsel %vm386, -1.0, %v341
    %v392 = vsel %vm387, -1.0, %v342
    %v393 = vsel %vm388, -1.0, %v343
    %v394 = vsel %vm389, -1.0, %v344
    %v395 = vsel %vm31, %v390, -inf
    %396 = vmax.xlane.f32.xlu0 %v395
    %v397 = vpop.xlane.xlu0 %396
    %v398 = vsel %vm31, %v391, -inf
    %399 = vmax.xlane.f32.xlu0 %v398
    %v400 = vpop.xlane.xlu0 %399
    %v401 = vsel %vm31, %v392, -inf
    %402 = vmax.xlane.f32.xlu0 %v401
    %v403 = vpop.xlane.xlu0 %402
    %v404 = vsel %vm31, %v393, -inf
    %405 = vmax.xlane.f32.xlu0 %v404
    %v406 = vpop.xlane.xlu0 %405
    %v407 = vsel %vm31, %v394, -inf
    %408 = vmax.xlane.f32.xlu0 %v407
    %v409 = vpop.xlane.xlu0 %408
    %vm410 = vcmp.eq.f32.partialorder %v390, %v397
    %vm411 = vcmp.eq.f32.partialorder %v391, %v400
    %vm412 = vcmp.eq.f32.partialorder %v392, %v403
    %vm413 = vcmp.eq.f32.partialorder %v393, %v406
    %vm414 = vcmp.eq.f32.partialorder %v394, %v409
    %v415 = vsel %vm410, %v144, 16.0
    %v416 = vsel %vm411, %v144, 16.0
    %v417 = vsel %vm412, %v144, 16.0
    %v418 = vsel %vm413, %v144, 16.0
    %v419 = vsel %vm414, %v144, 16.0
    %v420 = vsel %vm31, %v415, inf
    %421 = vmin.xlane.f32.xlu0 %v420
    %v422 = vpop.xlane.xlu0 %421
    %v423 = vsel %vm31, %v416, inf
    %424 = vmin.xlane.f32.xlu0 %v423
    %v425 = vpop.xlane.xlu0 %424
    %v426 = vsel %vm31, %v417, inf
    %427 = vmin.xlane.f32.xlu0 %v426
    %v428 = vpop.xlane.xlu0 %427
    %v429 = vsel %vm31, %v418, inf
    %430 = vmin.xlane.f32.xlu0 %v429
    %v431 = vpop.xlane.xlu0 %430
    %v432 = vsel %vm31, %v419, inf
    %433 = vmin.xlane.f32.xlu0 %v432
    %v434 = vpop.xlane.xlu0 %433
    %440 = vrot.lane.b32.xlu0 %v114, 124
    %v441 = vpop.permute.xlu0 %440
    %442 = vrot.lane.b32.xlu0 %v119, 124
    %v443 = vpop.permute.xlu0 %442
    %444 = vrot.lane.b32.xlu0 %v124, 124
    %v445 = vpop.permute.xlu0 %444
    %446 = vrot.lane.b32.xlu0 %v129, 124
    %v447 = vpop.permute.xlu0 %446
    %448 = vrot.lane.b32.xlu0 %v134, 124
    %v449 = vpop.permute.xlu0 %448
    %vm455 = vcmask 7168
    %v456 = vsel %vm455, %v147, %v197
    %v457 = vsel %vm455, %v150, %v200
    %v458 = vsel %vm455, %v153, %v203
    %v459 = vsel %vm455, %v156, %v206
    %v460 = vsel %vm455, %v159, %v209
    %vm461 = vcmask 15360
    %v462 = vsel %vm461, %v456, %v247
    %v463 = vsel %vm461, %v457, %v250
    %v464 = vsel %vm461, %v458, %v253
    %v465 = vsel %vm461, %v459, %v256
    %v466 = vsel %vm461, %v460, %v259
    %vm467 = vcmask 23552
    %v468 = vsel %vm467, %v462, %v297
    %v469 = vsel %vm467, %v463, %v300
    %v470 = vsel %vm467, %v464, %v303
    %v471 = vsel %vm467, %v465, %v306
    %v472 = vsel %vm467, %v466, %v309
    %vm473 = vcmask 31744
    %v474 = vsel %vm473, %v468, %v347
    %v475 = vsel %vm473, %v469, %v350
    %v476 = vsel %vm473, %v470, %v353
    %v477 = vsel %vm473, %v471, %v356
    %v478 = vsel %vm473, %v472, %v359
    %vm479 = vcmask 39936
    %v480 = vsel %vm479, %v474, %v397
    %v481 = vsel %vm479, %v475, %v400
    %v482 = vsel %vm479, %v476, %v403
    %v483 = vsel %vm479, %v477, %v406
    %v484 = vsel %vm479, %v478, %v409
    %vm485 = vcmask 48128
    %v486 = vsel %vm485, %v480, %v172
    %v487 = vsel %vm485, %v481, %v175
    %v488 = vsel %vm485, %v482, %v178
    %v489 = vsel %vm485, %v483, %v181
    %v490 = vsel %vm485, %v484, %v184
    %vm491 = vcmask 56320
    %v492 = vsel %vm491, %v486, %v222
    %v493 = vsel %vm491, %v487, %v225
    %v494 = vsel %vm491, %v488, %v228
    %v495 = vsel %vm491, %v489, %v231
    %v496 = vsel %vm491, %v490, %v234
    %vm497 = vcmask 64512
    %v498 = vsel %vm497, %v492, %v272
    %v499 = vsel %vm497, %v493, %v275
    %v500 = vsel %vm497, %v494, %v278
    %v501 = vsel %vm497, %v495, %v281
    %v502 = vsel %vm497, %v496, %v284
    %vm503 = vcmask 72704
    %v504 = vsel %vm503, %v498, %v322
    %v505 = vsel %vm503, %v499, %v325
    %v506 = vsel %vm503, %v500, %v328
    %v507 = vsel %vm503, %v501, %v331
    %v508 = vsel %vm503, %v502, %v334
    %vm509 = vcmask 80896
    %v510 = vsel %vm509, %v504, %v372
    %v511 = vsel %vm509, %v505, %v375
    %v512 = vsel %vm509, %v506, %v378
    %v513 = vsel %vm509, %v507, %v381
    %v514 = vsel %vm509, %v508, %v384
    %vm515 = vcmask 89088
    %v516 = vsel %vm515, %v510, %v422
    %v517 = vsel %vm515, %v511, %v425
    %v518 = vsel %vm515, %v512, %v428
    %v519 = vsel %vm515, %v513, %v431
    %v520 = vsel %vm515, %v514, %v434
    %vm521 = vcmask 97280
    %v522 = vsel %vm521, %v516, %v441
    %v523 = vsel %vm521, %v517, %v443
    %v524 = vsel %vm521, %v518, %v445
    %v525 = vsel %vm521, %v519, %v447
    %v526 = vsel %vm521, %v520, %v449
    %vm529 = vcmask 1045504
    %v530 = vrot.slane %v523, 2
    %v531 = vrot.slane %v524, 2
    %v532 = vsel %vm529, %v530, %v531
    %533 = vrot.lane.b32.xlu0 %v532, 18
    %v534 = vpop.permute.xlu0 %533
    %535 = vrot.lane.b32.xlu0 %v531, 18
    %v536 = vpop.permute.xlu0 %535
    %vm540 = vcmask 1043456
    %v541 = vrot.slane %v524, 4
    %v542 = vrot.slane %v525, 4
    %v543 = vsel %vm540, %v541, %v542
    %544 = vrot.lane.b32.xlu0 %v543, 36
    %v545 = vpop.permute.xlu0 %544
    %546 = vrot.lane.b32.xlu0 %v542, 36
    %v547 = vpop.permute.xlu0 %546
    %vm551 = vcmask 1041408
    %v552 = vrot.slane %v525, 6
    %v553 = vrot.slane %v526, 6
    %v554 = vsel %vm551, %v552, %v553
    %555 = vrot.lane.b32.xlu0 %v554, 54
    %v556 = vpop.permute.xlu0 %555
    %557 = vrot.lane.b32.xlu0 %v553, 54
    %v558 = vpop.permute.xlu0 %557
    %vm561 = vcmask 146432
    %v562 = vsel %vm561, %v522, %v534
    %v563 = vsel %vm561, %v523, %v536
    %vm564 = vcmask 293888
    %v565 = vsel %vm564, %v562, %v545
    %v566 = vsel %vm564, %v563, %v547
    %vm567 = vcmask 441344
    %v568 = vsel %vm567, %v565, %v556
    %v569 = vsel %vm567, %v566, %v558
    %v570 = vld [vmem:[%s1] sm:$0xf]
    %v571 = vld [vmem:[%s1 + $0x4] sm:$0xf]
    %v572 = vld [vmem:[%s1 + $0x8] sm:$0xf]
    %v573 = vld [vmem:[%s1 + $0xc] sm:$0xf]
    %v574 = vld [vmem:[%s1 + $0x10] sm:$0xf]
    %v575 = vld [vmem:[%s1 + $0x14] sm:$0xf]
    %v576 = vld [vmem:[%s1 + $0x18] sm:$0xf]
    %v577 = vld [vmem:[%s1 + $0x1c] sm:$0xf]
    %v578 = vld [vmem:[%s1 + $0x20] sm:$0xf]
    %v579 = vpack.c.bf16 %v569, %v568
    %v580 = vld [vmem:[%s2 + $0x20] sm:$0x1]
    %v581 = vlaneseq
    %v582 = vshrl.u32 %v581, 7
    %v583 = vsub.s32 0, %v582
    %v584 = vrot.slane %v580, %v583
    %v594 = vunpack.c.l.b16 %v570
    %v595 = vunpack.c.l.b16 %v571
    %v596 = vunpack.c.l.b16 %v572
    %v597 = vunpack.c.l.b16 %v573
    %v598 = vunpack.c.l.b16 %v574
    %v599 = vunpack.c.l.b16 %v575
    %v600 = vunpack.c.l.b16 %v576
    %v601 = vunpack.c.l.b16 %v577
    %v602 = vunpack.c.l.b16 %v578
    %v603 = vpack.c.b16 %v595, %v594
    %v604 = vpack.c.b16 %v597, %v596
    %v605 = vpack.c.b16 %v599, %v598
    %v606 = vpack.c.b16 %v601, %v600
    %v607 = vpack.c.b16 %v602, %v602
    %vm612 = vcmask 588800
    %v614 = vsel %vm612, %v579, 0
    %v617 = vsel %vm540, %v607, 0
    %619 = vmatprep.subr.bf16.mxu0 0
    %620 = vmatpush1.bf16.msra.mxu0 %v603
    %621 = vmatprep.subr.bf16.mxu0 0
    %622 = vmatpush1.bf16.msra.mxu0 %v604
    %623 = vmatprep.subr.bf16.mxu0 0
    %624 = vmatpush1.bf16.msra.mxu0 %v605
    %625 = vmatprep.subr.bf16.mxu0 0
    %626 = vmatpush1.bf16.msra.mxu0 %v606
    %627 = vmatprep.subr.bf16.mxu0 0
    %628 = vmatpush1.bf16.msra.mxu0 %v617
    %629 = vmatprep.subr.bf16.mxu0 0
    %630 = vmatpush1.bf16.msra.mxu0 0
    %631 = vmatprep.subr.bf16.mxu0 0
    %632 = vmatpush1.bf16.msra.mxu0 0
    %633 = vmatprep.subr.bf16.mxu0 0
    %634 = vmatpush1.bf16.msra.mxu0 0
    %635 = vmatprep.subr.bf16.mxu0 0
    %636 = vmatpush1.bf16.msra.mxu0 0
    %637 = vmatprep.subr.bf16.mxu0 0
    %638 = vmatpush1.bf16.msra.mxu0 0
    %639 = vmatprep.subr.bf16.mxu0 0
    %640 = vmatpush1.bf16.msra.mxu0 0
    %641 = vmatprep.subr.bf16.mxu0 0
    %642 = vmatpush1.bf16.msra.mxu0 0
    %643 = vmatprep.subr.bf16.mxu0 0
    %644 = vmatpush1.bf16.msra.mxu0 0
    %645 = vmatprep.subr.bf16.mxu0 0
    %646 = vmatpush1.bf16.msra.mxu0 0
    %647 = vmatprep.subr.bf16.mxu0 0
    %648 = vmatpush1.bf16.msra.mxu0 0
    %649 = vmatprep.subr.bf16.mxu0 0
    %650 = vmatpush1.bf16.msra.mxu0 0
    %651 = vmatprep.mubr.bf16.mxu0 0
    %652 = vmatmul.mubr.bf16.gmra.mrb[0].mxu0 %v614
    %v653 = vpop.f32.mrb[0].mxu0
    %v654 = vadd.f32 %v584, %v653
    %v655 = vpop.f32.mrb[0].mxu0
    %v656 = vpop.f32.mrb[0].mxu0
    %v657 = vadd.f32 %v584, %v656
    %v658 = vpop.f32.mrb[0].mxu0
    %659 = vdwg.mxu0
    %v660 = vmax.f32 %v654, 0.0
    %v661 = vmax.f32 %v657, 0.0
    %v662 = vld [vmem:[%s1 + $0x28] sm:$0xf]
    %v663 = vld [vmem:[%s1 + $0x2c] sm:$0xf]
    %v664 = vld [vmem:[%s1 + $0x30] sm:$0xf]
    %v665 = vld [vmem:[%s1 + $0x34] sm:$0xf]
    %v666 = vld [vmem:[%s1 + $0x38] sm:$0xf]
    %v667 = vld [vmem:[%s1 + $0x3c] sm:$0xf]
    %v668 = vld [vmem:[%s1 + $0x40] sm:$0xf]
    %v669 = vld [vmem:[%s1 + $0x44] sm:$0xf]
    %v670 = vld [vmem:[%s1 + $0x48] sm:$0xf]
    %v671 = vld [vmem:[%s1 + $0x4c] sm:$0xf]
    %v672 = vld [vmem:[%s1 + $0x50] sm:$0xf]
    %v673 = vld [vmem:[%s1 + $0x54] sm:$0xf]
    %v674 = vld [vmem:[%s2 + $0x30] sm:$0x1]
    %v676 = vrot.slane %v660, 7
    %vm679 = vcmask 1040384
    %v680 = vrot.slane %v661, 7
    %v681 = vsel %vm679, %v676, %v680
    %v683 = vsel %vm679, 0.0, %v676
    %vm684 = vcmask 1044480
    %v685 = vsel %vm684, %v683, 0.0
    %v686 = vsel %vm529, %v685, %v676
    %v687 = vrot.slane %v660, 1
    %vm689 = vcmask 1046528
    %v690 = vrot.slane %v661, 1
    %v691 = vsel %vm689, %v687, %v690
    %v694 = vsel %vm540, %v687, 0.0
    %v695 = vsel %vm684, %v694, %v691
    %v696 = vsel %vm679, %v690, 0.0
    %697 = vrot.lane.b32.xlu0 %v660, 32
    %v698 = vpop.permute.xlu0 %697
    %699 = vrot.lane.b32.xlu0 %v661, 32
    %v700 = vpop.permute.xlu0 %699
    %705 = vrot.lane.b32.xlu0 %v695, 64
    %v706 = vpop.permute.xlu0 %705
    %707 = vrot.lane.b32.xlu0 %v696, 64
    %v708 = vpop.permute.xlu0 %707
    %vm711 = vcmask 261120
    %v712 = vsel %vm711, %v686, %v698
    %v713 = vsel %vm711, %v681, %v700
    %vm714 = vcmask 523264
    %v715 = vsel %vm714, %v712, %v706
    %v716 = vsel %vm714, %v713, %v708
    %v717 = vpack.c.bf16 %v716, %v715
    %v718 = vlaneseq
    %v719 = vshrl.u32 %v718, 7
    %v720 = vsub.s32 0, %v719
    %v721 = vrot.slane %v674, %v720
    %v734 = vunpack.c.l.b16 %v662
    %v735 = vunpack.c.l.b16 %v663
    %v736 = vunpack.c.l.b16 %v664
    %v737 = vunpack.c.l.b16 %v665
    %v738 = vunpack.c.l.b16 %v666
    %v739 = vunpack.c.l.b16 %v667
    %v740 = vunpack.c.l.b16 %v668
    %v741 = vunpack.c.l.b16 %v669
    %v742 = vunpack.c.l.b16 %v670
    %v743 = vunpack.c.l.b16 %v671
    %v744 = vunpack.c.l.b16 %v672
    %v745 = vunpack.c.l.b16 %v673
    %v746 = vpack.c.b16 %v735, %v734
    %v747 = vpack.c.b16 %v737, %v736
    %v748 = vpack.c.b16 %v739, %v738
    %v749 = vpack.c.b16 %v741, %v740
    %v750 = vpack.c.b16 %v743, %v742
    %v751 = vpack.c.b16 %v745, %v744
    %vm758 = vcmask 785408
    %v760 = vsel %vm758, %v717, 0
    %762 = vmatprep.subr.bf16.mxu0 0
    %763 = vmatpush1.bf16.msra.mxu0 %v746
    %764 = vmatprep.subr.bf16.mxu0 0
    %765 = vmatpush1.bf16.msra.mxu0 %v747
    %766 = vmatprep.subr.bf16.mxu0 0
    %767 = vmatpush1.bf16.msra.mxu0 %v748
    %768 = vmatprep.subr.bf16.mxu0 0
    %769 = vmatpush1.bf16.msra.mxu0 %v749
    %770 = vmatprep.subr.bf16.mxu0 0
    %771 = vmatpush1.bf16.msra.mxu0 %v750
    %772 = vmatprep.subr.bf16.mxu0 0
    %773 = vmatpush1.bf16.msra.mxu0 %v751
    %774 = vmatprep.subr.bf16.mxu0 0
    %775 = vmatpush1.bf16.msra.mxu0 0
    %776 = vmatprep.subr.bf16.mxu0 0
    %777 = vmatpush1.bf16.msra.mxu0 0
    %778 = vmatprep.subr.bf16.mxu0 0
    %779 = vmatpush1.bf16.msra.mxu0 0
    %780 = vmatprep.subr.bf16.mxu0 0
    %781 = vmatpush1.bf16.msra.mxu0 0
    %782 = vmatprep.subr.bf16.mxu0 0
    %783 = vmatpush1.bf16.msra.mxu0 0
    %784 = vmatprep.subr.bf16.mxu0 0
    %785 = vmatpush1.bf16.msra.mxu0 0
    %786 = vmatprep.subr.bf16.mxu0 0
    %787 = vmatpush1.bf16.msra.mxu0 0
    %788 = vmatprep.subr.bf16.mxu0 0
    %789 = vmatpush1.bf16.msra.mxu0 0
    %790 = vmatprep.subr.bf16.mxu0 0
    %791 = vmatpush1.bf16.msra.mxu0 0
    %792 = vmatprep.subr.bf16.mxu0 0
    %793 = vmatpush1.bf16.msra.mxu0 0
    %794 = vmatprep.mubr.bf16.mxu0 0
    %795 = vmatmul.mubr.bf16.gmra.mrb[0].mxu0 %v760
    %v796 = vpop.f32.mrb[0].mxu0
    %v797 = vadd.f32 %v721, %v796
    %v798 = vpop.f32.mrb[0].mxu0
    %v799 = vpop.f32.mrb[0].mxu0
    %v800 = vadd.f32 %v721, %v799
    %v801 = vpop.f32.mrb[0].mxu0
    %802 = vdwg.mxu0
    %v803 = vmax.f32 %v797, 0.0
    %v804 = vmax.f32 %v800, 0.0
    %v805 = vld [vmem:[%s1 + $0x58] sm:$0xf]
    %v806 = vld [vmem:[%s1 + $0x5c] sm:$0xf]
    %v807 = vld [vmem:[%s1 + $0x60] sm:$0xf]
    %v808 = vld [vmem:[%s1 + $0x64] sm:$0xf]
    %v809 = vld [vmem:[%s1 + $0x68] sm:$0xf]
    %v810 = vld [vmem:[%s1 + $0x6c] sm:$0xf]
    %v811 = vld [vmem:[%s1 + $0x70] sm:$0xf]
    %v812 = vld [vmem:[%s1 + $0x74] sm:$0xf]
    %v813 = vld [vmem:[%s1 + $0x78] sm:$0xf]
    %v814 = vld [vmem:[%s1 + $0x7c] sm:$0xf]
    %v815 = vld [vmem:[%s1 + $0x80] sm:$0xf]
    %v816 = vld [vmem:[%s1 + $0x84] sm:$0xf]
    %v817 = vld [vmem:[%s1 + $0x88] sm:$0xf]
    %v818 = vld [vmem:[%s1 + $0x8c] sm:$0xf]
    %v819 = vld [vmem:[%s1 + $0x90] sm:$0xf]
    %v820 = vld [vmem:[%s1 + $0x94] sm:$0xf]
    %v821 = vld [vmem:[%s1 + $0x98] sm:$0xf]
    %v822 = vld [vmem:[%s1 + $0x9c] sm:$0xf]
    %v823 = vld [vmem:[%s1 + $0xa0] sm:$0xf]
    %v824 = vld [vmem:[%s1 + $0xa4] sm:$0xf]
    %v825 = vld [vmem:[%s1 + $0xa8] sm:$0xf]
    %v826 = vld [vmem:[%s1 + $0xac] sm:$0xf]
    %v827 = vld [vmem:[%s1 + $0xb0] sm:$0xf]
    %v828 = vld [vmem:[%s1 + $0xb4] sm:$0xf]
    %v829 = vld [vmem:[%s2 + $0x40] sm:$0x1]
    %v831 = vrot.slane %v803, 7
    %v834 = vrot.slane %v804, 7
    %v835 = vsel %vm679, %v831, %v834
    %v837 = vsel %vm679, 0.0, %v831
    %v838 = vsel %vm684, %v837, 0.0
    %v839 = vsel %vm529, %v838, %v831
    %v840 = vrot.slane %v803, 1
    %v842 = vrot.slane %v804, 1
    %v843 = vsel %vm689, %v840, %v842
    %v846 = vsel %vm540, %v840, 0.0
    %v847 = vsel %vm684, %v846, %v843
    %v848 = vsel %vm679, %v842, 0.0
    %849 = vrot.lane.b32.xlu0 %v803, 64
    %v850 = vpop.permute.xlu0 %849
    %851 = vrot.lane.b32.xlu0 %v804, 64
    %v852 = vpop.permute.xlu0 %851
    %v855 = vsel %vm714, %v839, %v850
    %v856 = vsel %vm714, %v835, %v852
    %v857 = vpack.c.bf16 %v856, %v855
    %v858 = vpack.c.bf16 %v848, %v847
    %v859 = vlaneseq
    %v860 = vshrl.u32 %v859, 7
    %v861 = vsub.s32 0, %v860
    %v862 = vrot.slane %v829, %v861
    %v887 = vunpack.c.l.b16 %v805
    %v888 = vunpack.c.l.b16 %v806
    %v889 = vunpack.c.l.b16 %v807
    %v890 = vunpack.c.l.b16 %v808
    %v891 = vunpack.c.l.b16 %v809
    %v892 = vunpack.c.l.b16 %v810
    %v893 = vunpack.c.l.b16 %v811
    %v894 = vunpack.c.l.b16 %v812
    %v895 = vunpack.c.l.b16 %v813
    %v896 = vunpack.c.l.b16 %v814
    %v897 = vunpack.c.l.b16 %v815
    %v898 = vunpack.c.l.b16 %v816
    %v899 = vunpack.c.l.b16 %v817
    %v900 = vunpack.c.l.b16 %v818
    %v901 = vunpack.c.l.b16 %v819
    %v902 = vunpack.c.l.b16 %v820
    %v903 = vunpack.c.l.b16 %v821
    %v904 = vunpack.c.l.b16 %v822
    %v905 = vunpack.c.l.b16 %v823
    %v906 = vunpack.c.l.b16 %v824
    %v907 = vunpack.c.l.b16 %v825
    %v908 = vunpack.c.l.b16 %v826
    %v909 = vunpack.c.l.b16 %v827
    %v910 = vunpack.c.l.b16 %v828
    %v911 = vpack.c.b16 %v888, %v887
    %v912 = vpack.c.b16 %v890, %v889
    %v913 = vpack.c.b16 %v892, %v891
    %v914 = vpack.c.b16 %v894, %v893
    %v915 = vpack.c.b16 %v896, %v895
    %v916 = vpack.c.b16 %v898, %v897
    %v917 = vpack.c.b16 %v900, %v899
    %v918 = vpack.c.b16 %v902, %v901
    %v919 = vpack.c.b16 %v904, %v903
    %v920 = vpack.c.b16 %v906, %v905
    %v921 = vpack.c.b16 %v908, %v907
    %v922 = vpack.c.b16 %v910, %v909
    %v936 = vsel %vm714, %v858, 0
    %938 = vmatprep.subr.bf16.mxu0 0
    %939 = vmatpush1.bf16.msra.mxu0 %v911
    %940 = vmatprep.subr.bf16.mxu0 0
    %941 = vmatpush1.bf16.msra.mxu0 %v912
    %942 = vmatprep.subr.bf16.mxu0 0
    %943 = vmatpush1.bf16.msra.mxu0 %v913
    %944 = vmatprep.subr.bf16.mxu0 0
    %945 = vmatpush1.bf16.msra.mxu0 %v914
    %946 = vmatprep.subr.bf16.mxu0 0
    %947 = vmatpush1.bf16.msra.mxu0 %v915
    %948 = vmatprep.subr.bf16.mxu0 0
    %949 = vmatpush1.bf16.msra.mxu0 %v916
    %950 = vmatprep.subr.bf16.mxu0 0
    %951 = vmatpush1.bf16.msra.mxu0 %v917
    %952 = vmatprep.subr.bf16.mxu0 0
    %953 = vmatpush1.bf16.msra.mxu0 %v918
    %954 = vmatprep.subr.bf16.mxu0 0
    %955 = vmatpush1.bf16.msra.mxu0 %v919
    %956 = vmatprep.subr.bf16.mxu0 0
    %957 = vmatpush1.bf16.msra.mxu0 %v920
    %958 = vmatprep.subr.bf16.mxu0 0
    %959 = vmatpush1.bf16.msra.mxu0 %v921
    %960 = vmatprep.subr.bf16.mxu0 0
    %961 = vmatpush1.bf16.msra.mxu0 %v922
    %962 = vmatprep.subr.bf16.mxu0 0
    %963 = vmatpush1.bf16.msra.mxu0 0
    %964 = vmatprep.subr.bf16.mxu0 0
    %965 = vmatpush1.bf16.msra.mxu0 0
    %966 = vmatprep.subr.bf16.mxu0 0
    %967 = vmatpush1.bf16.msra.mxu0 0
    %968 = vmatprep.subr.bf16.mxu0 0
    %969 = vmatpush1.bf16.msra.mxu0 0
    %970 = vmatprep.mubr.bf16.mxu0 %v936
    %971 = vmatmul.mubr.bf16.gmra.mrb[0].mxu0 %v857
    %v972 = vpop.f32.mrb[0].mxu0
    %v973 = vadd.f32 %v862, %v972
    %v974 = vpop.f32.mrb[0].mxu0
    %v975 = vpop.f32.mrb[0].mxu0
    %v976 = vadd.f32 %v862, %v975
    %v977 = vpop.f32.mrb[0].mxu0
    %978 = vdwg.mxu0
    %v979 = vadd.f32 %v973, %v660
    %v980 = vadd.f32 %v976, %v661
    %v981 = vmax.f32 %v979, 0.0
    %v982 = vmax.f32 %v980, 0.0
    %v983 = vld [vmem:[%s1 + $0xb8] sm:$0xf]
    %v984 = vld [vmem:[%s1 + $0xbc] sm:$0xf]
    %v985 = vld [vmem:[%s1 + $0xc0] sm:$0xf]
    %v986 = vld [vmem:[%s1 + $0xc4] sm:$0xf]
    %v987 = vpack.c.bf16 %v982, %v981
    %v988 = vld [vmem:[%s2 + $0x50] sm:$0x1]
    %v989 = vlaneseq
    %v990 = vshrl.u32 %v989, 7
    %v991 = vsub.s32 0, %v990
    %v992 = vrot.slane %v988, %v991
    %v997 = vunpack.c.l.b16 %v983
    %v998 = vunpack.c.l.b16 %v984
    %v999 = vunpack.c.l.b16 %v985
    %v1000 = vunpack.c.l.b16 %v986
    %v1001 = vpack.c.b16 %v998, %v997
    %v1002 = vpack.c.b16 %v1000, %v999
    %v1006 = vsel %vm711, %v987, 0
    %1008 = vmatprep.subr.bf16.mxu0 0
    %1009 = vmatpush1.bf16.msra.mxu0 %v1001
    %1010 = vmatprep.subr.bf16.mxu0 0
    %1011 = vmatpush1.bf16.msra.mxu0 %v1002
    %1012 = vmatprep.subr.bf16.mxu0 0
    %1013 = vmatpush1.bf16.msra.mxu0 0
    %1014 = vmatprep.subr.bf16.mxu0 0
    %1015 = vmatpush1.bf16.msra.mxu0 0
    %1016 = vmatprep.subr.bf16.mxu0 0
    %1017 = vmatpush1.bf16.msra.mxu0 0
    %1018 = vmatprep.subr.bf16.mxu0 0
    %1019 = vmatpush1.bf16.msra.mxu0 0
    %1020 = vmatprep.subr.bf16.mxu0 0
    %1021 = vmatpush1.bf16.msra.mxu0 0
    %1022 = vmatprep.subr.bf16.mxu0 0
    %1023 = vmatpush1.bf16.msra.mxu0 0
    %1024 = vmatprep.subr.bf16.mxu0 0
    %1025 = vmatpush1.bf16.msra.mxu0 0
    %1026 = vmatprep.subr.bf16.mxu0 0
    %1027 = vmatpush1.bf16.msra.mxu0 0
    %1028 = vmatprep.subr.bf16.mxu0 0
    %1029 = vmatpush1.bf16.msra.mxu0 0
    %1030 = vmatprep.subr.bf16.mxu0 0
    %1031 = vmatpush1.bf16.msra.mxu0 0
    %1032 = vmatprep.subr.bf16.mxu0 0
    %1033 = vmatpush1.bf16.msra.mxu0 0
    %1034 = vmatprep.subr.bf16.mxu0 0
    %1035 = vmatpush1.bf16.msra.mxu0 0
    %1036 = vmatprep.subr.bf16.mxu0 0
    %1037 = vmatpush1.bf16.msra.mxu0 0
    %1038 = vmatprep.subr.bf16.mxu0 0
    %1039 = vmatpush1.bf16.msra.mxu0 0
    %1040 = vmatprep.mubr.bf16.mxu0 0
    %1041 = vmatmul.mubr.bf16.gmra.mrb[0].mxu0 %v1006
    %v1042 = vpop.f32.mrb[0].mxu0
    %v1043 = vadd.f32 %v992, %v1042
    %v1044 = vpop.f32.mrb[0].mxu0
    %v1045 = vpop.f32.mrb[0].mxu0
    %v1046 = vadd.f32 %v992, %v1045
    %v1047 = vpop.f32.mrb[0].mxu0
    %1048 = vdwg.mxu0
    %v1050 = vrot.slane %v1043, 1
    %v1052 = vadd.f32 %v1043, %v1050
    %v1054 = vrot.slane %v1046, 1
    %v1056 = vadd.f32 %v1043, %v1054
    %v1058 = vrot.slane %v1052, 1
    %v1060 = vrot.slane %v1052, 3
    %v1063 = vrot.slane %v1056, 4
    %v1065 = vsel %vm679, %v1052, %v1058
    %v1066 = vsel %vm551, %v1065, %v1060
    %vm1067 = vcmask 1042432
    %v1068 = vsel %vm1067, %v1066, %v1063
    %v1069 = vmul.f32 %v1068, 0.5
    %v1071 = vrot.slane %v1069, 1
    %1072 = vrot.lane.b32.xlu0 %v1071, 64
    %v1073 = vpop.permute.xlu0 %1072
    %v1075 = vsel %vm714, %v1069, %v1073
    %v1077 = vrot.slane %v1075, 1
    %v1079 = vsel %vm679, %v1075, %v1077
    %v1080 = vld [vmem:[%s1 + $0xc8] sm:$0xf]
    %v1081 = vld [vmem:[%s1 + $0xcc] sm:$0xf]
    %v1082 = vld [vmem:[%s1 + $0xd0] sm:$0xf]
    %v1083 = vld [vmem:[%s1 + $0xd4] sm:$0xf]
    %v1084 = vld [vmem:[%s1 + $0xd8] sm:$0xf]
    %v1085 = vld [vmem:[%s1 + $0xdc] sm:$0xf]
    %v1086 = vld [vmem:[%s1 + $0xe0] sm:$0xf]
    %v1087 = vld [vmem:[%s1 + $0xe4] sm:$0xf]
    %v1088 = vld [vmem:[%s1 + $0xe8] sm:$0xf]
    %v1089 = vld [vmem:[%s1 + $0xec] sm:$0xf]
    %v1090 = vld [vmem:[%s1 + $0xf0] sm:$0xf]
    %v1091 = vld [vmem:[%s1 + $0xf4] sm:$0xf]
    %v1092 = vld [vmem:[%s1 + $0xf8] sm:$0xf]
    %v1093 = vld [vmem:[%s1 + $0xfc] sm:$0xf]
    %v1094 = vld [vmem:[%s1 + $0x100] sm:$0xf]
    %v1095 = vld [vmem:[%s1 + $0x104] sm:$0xf]
    %v1096 = vpack.c.bf16 %v1079, %v1079
    %v1097 = vld [vmem:[%s2 + $0x60] sm:$0x1]
    %v1098 = vlaneseq
    %v1099 = vshrl.u32 %v1098, 7
    %v1100 = vsub.s32 0, %v1099
    %v1101 = vrot.slane %v1097, %v1100
    %v1118 = vunpack.c.l.b16 %v1080
    %v1119 = vunpack.c.l.b16 %v1081
    %v1120 = vunpack.c.l.b16 %v1082
    %v1121 = vunpack.c.l.b16 %v1083
    %v1122 = vunpack.c.l.b16 %v1084
    %v1123 = vunpack.c.l.b16 %v1085
    %v1124 = vunpack.c.l.b16 %v1086
    %v1125 = vunpack.c.l.b16 %v1087
    %v1126 = vunpack.c.l.b16 %v1088
    %v1127 = vunpack.c.l.b16 %v1089
    %v1128 = vunpack.c.l.b16 %v1090
    %v1129 = vunpack.c.l.b16 %v1091
    %v1130 = vunpack.c.l.b16 %v1092
    %v1131 = vunpack.c.l.b16 %v1093
    %v1132 = vunpack.c.l.b16 %v1094
    %v1133 = vunpack.c.l.b16 %v1095
    %v1134 = vpack.c.b16 %v1119, %v1118
    %v1135 = vpack.c.b16 %v1121, %v1120
    %v1136 = vpack.c.b16 %v1123, %v1122
    %v1137 = vpack.c.b16 %v1125, %v1124
    %v1138 = vpack.c.b16 %v1127, %v1126
    %v1139 = vpack.c.b16 %v1129, %v1128
    %v1140 = vpack.c.b16 %v1131, %v1130
    %v1141 = vpack.c.b16 %v1133, %v1132
    %1150 = vmatprep.subr.bf16.mxu0 0
    %1151 = vmatpush1.bf16.msra.mxu0 %v1134
    %1152 = vmatprep.subr.bf16.mxu0 0
    %1153 = vmatpush1.bf16.msra.mxu0 %v1135
    %1154 = vmatprep.subr.bf16.mxu0 0
    %1155 = vmatpush1.bf16.msra.mxu0 %v1136
    %1156 = vmatprep.subr.bf16.mxu0 0
    %1157 = vmatpush1.bf16.msra.mxu0 %v1137
    %1158 = vmatprep.subr.bf16.mxu0 0
    %1159 = vmatpush1.bf16.msra.mxu0 %v1138
    %1160 = vmatprep.subr.bf16.mxu0 0
    %1161 = vmatpush1.bf16.msra.mxu0 %v1139
    %1162 = vmatprep.subr.bf16.mxu0 0
    %1163 = vmatpush1.bf16.msra.mxu0 %v1140
    %1164 = vmatprep.subr.bf16.mxu0 0
    %1165 = vmatpush1.bf16.msra.mxu0 %v1141
    %1166 = vmatprep.subr.bf16.mxu0 0
    %1167 = vmatpush1.bf16.msra.mxu0 0
    %1168 = vmatprep.subr.bf16.mxu0 0
    %1169 = vmatpush1.bf16.msra.mxu0 0
    %1170 = vmatprep.subr.bf16.mxu0 0
    %1171 = vmatpush1.bf16.msra.mxu0 0
    %1172 = vmatprep.subr.bf16.mxu0 0
    %1173 = vmatpush1.bf16.msra.mxu0 0
    %1174 = vmatprep.subr.bf16.mxu0 0
    %1175 = vmatpush1.bf16.msra.mxu0 0
    %1176 = vmatprep.subr.bf16.mxu0 0
    %1177 = vmatpush1.bf16.msra.mxu0 0
    %1178 = vmatprep.subr.bf16.mxu0 0
    %1179 = vmatpush1.bf16.msra.mxu0 0
    %1180 = vmatprep.subr.bf16.mxu0 0
    %1181 = vmatpush1.bf16.msra.mxu0 0
    %1182 = vmatprep.mubr.bf16.mxu0 0
    %1183 = vmatmul.mubr.bf16.gmra.mrb[0].mxu0 %v1096
    %v1184 = vpop.f32.mrb[0].mxu0
    %v1185 = vadd.f32 %v1101, %v1184
    %v1186 = vpop.f32.mrb[0].mxu0
    %v1187 = vpop.f32.mrb[0].mxu0
    %v1188 = vpop.f32.mrb[0].mxu0
    %1189 = vdwg.mxu0
    %v1190 = vmax.f32 %v1185, 0.0
    %v1191 = vld [vmem:[%s2 + $0x70] sm:$0x1]
    %v1192 = vld [vmem:[%s3] sm:$0x3]
    %v1193 = vld [vmem:[%s1 + $0x108] sm:$0xf]
    %v1194 = vld [vmem:[%s1 + $0x10c] sm:$0xf]
    %v1195 = vld [vmem:[%s1 + $0x110] sm:$0xf]
    %v1196 = vld [vmem:[%s1 + $0x114] sm:$0xf]
    %v1197 = vpack.c.bf16 %v1192, %v1192
    %v1202 = vunpack.c.l.b16 %v1193
    %v1203 = vunpack.c.l.b16 %v1194
    %v1204 = vunpack.c.l.b16 %v1195
    %v1205 = vunpack.c.l.b16 %v1196
    %v1206 = vpack.c.b16 %v1203, %v1202
    %v1207 = vpack.c.b16 %v1205, %v1204
    %v1211 = vsel %vm711, %v1197, 0
    %1213 = vmatprep.subr.bf16.mxu0 0
    %1214 = vmatpush1.bf16.msra.mxu0 %v1206
    %1215 = vmatprep.subr.bf16.mxu0 0
    %1216 = vmatpush1.bf16.msra.mxu0 %v1207
    %1217 = vmatprep.subr.bf16.mxu0 0
    %1218 = vmatpush1.bf16.msra.mxu0 0
    %1219 = vmatprep.subr.bf16.mxu0 0
    %1220 = vmatpush1.bf16.msra.mxu0 0
    %1221 = vmatprep.subr.bf16.mxu0 0
    %1222 = vmatpush1.bf16.msra.mxu0 0
    %1223 = vmatprep.subr.bf16.mxu0 0
    %1224 = vmatpush1.bf16.msra.mxu0 0
    %1225 = vmatprep.subr.bf16.mxu0 0
    %1226 = vmatpush1.bf16.msra.mxu0 0
    %1227 = vmatprep.subr.bf16.mxu0 0
    %1228 = vmatpush1.bf16.msra.mxu0 0
    %1229 = vmatprep.subr.bf16.mxu0 0
    %1230 = vmatpush1.bf16.msra.mxu0 0
    %1231 = vmatprep.subr.bf16.mxu0 0
    %1232 = vmatpush1.bf16.msra.mxu0 0
    %1233 = vmatprep.subr.bf16.mxu0 0
    %1234 = vmatpush1.bf16.msra.mxu0 0
    %1235 = vmatprep.subr.bf16.mxu0 0
    %1236 = vmatpush1.bf16.msra.mxu0 0
    %1237 = vmatprep.subr.bf16.mxu0 0
    %1238 = vmatpush1.bf16.msra.mxu0 0
    %1239 = vmatprep.subr.bf16.mxu0 0
    %1240 = vmatpush1.bf16.msra.mxu0 0
    %1241 = vmatprep.subr.bf16.mxu0 0
    %1242 = vmatpush1.bf16.msra.mxu0 0
    %1243 = vmatprep.subr.bf16.mxu0 0
    %1244 = vmatpush1.bf16.msra.mxu0 0
    %1245 = vmatprep.mubr.bf16.mxu0 0
    %1246 = vmatmul.mubr.bf16.gmra.mrb[0].mxu0 %v1211
    %v1247 = vpop.f32.mrb[0].mxu0
    %v1248 = vadd.f32 0.0, %v1247
    %v1249 = vpop.f32.mrb[0].mxu0
    %v1250 = vpop.f32.mrb[0].mxu0
    %v1251 = vpop.f32.mrb[0].mxu0
    %1252 = vdwg.mxu0
    %v1253 = vlaneseq
    %v1254 = vshrl.u32 %v1253, 7
    %v1255 = vsub.s32 0, %v1254
    %v1256 = vrot.slane %v1191, %v1255
    %v1257 = vadd.f32 %v1256, %v1248
    %v1258 = vld [vmem:[%s1 + $0x118] sm:$0xf]
    %v1259 = vld [vmem:[%s1 + $0x11c] sm:$0xf]
    %v1260 = vld [vmem:[%s1 + $0x120] sm:$0xf]
    %v1261 = vld [vmem:[%s1 + $0x124] sm:$0xf]
    %v1262 = vpack.c.bf16 %v1190, %v1190
    %v1267 = vunpack.c.l.b16 %v1258
    %v1268 = vunpack.c.l.b16 %v1259
    %v1269 = vunpack.c.l.b16 %v1260
    %v1270 = vunpack.c.l.b16 %v1261
    %v1271 = vpack.c.b16 %v1268, %v1267
    %v1272 = vpack.c.b16 %v1270, %v1269
    %v1276 = vsel %vm711, %v1262, 0
    %1278 = vmatprep.subr.bf16.mxu0 0
    %1279 = vmatpush1.bf16.msra.mxu0 %v1271
    %1280 = vmatprep.subr.bf16.mxu0 0
    %1281 = vmatpush1.bf16.msra.mxu0 %v1272
    %1282 = vmatprep.subr.bf16.mxu0 0
    %1283 = vmatpush1.bf16.msra.mxu0 0
    %1284 = vmatprep.subr.bf16.mxu0 0
    %1285 = vmatpush1.bf16.msra.mxu0 0
    %1286 = vmatprep.subr.bf16.mxu0 0
    %1287 = vmatpush1.bf16.msra.mxu0 0
    %1288 = vmatprep.subr.bf16.mxu0 0
    %1289 = vmatpush1.bf16.msra.mxu0 0
    %1290 = vmatprep.subr.bf16.mxu0 0
    %1291 = vmatpush1.bf16.msra.mxu0 0
    %1292 = vmatprep.subr.bf16.mxu0 0
    %1293 = vmatpush1.bf16.msra.mxu0 0
    %1294 = vmatprep.subr.bf16.mxu0 0
    %1295 = vmatpush1.bf16.msra.mxu0 0
    %1296 = vmatprep.subr.bf16.mxu0 0
    %1297 = vmatpush1.bf16.msra.mxu0 0
    %1298 = vmatprep.subr.bf16.mxu0 0
    %1299 = vmatpush1.bf16.msra.mxu0 0
    %1300 = vmatprep.subr.bf16.mxu0 0
    %1301 = vmatpush1.bf16.msra.mxu0 0
    %1302 = vmatprep.subr.bf16.mxu0 0
    %1303 = vmatpush1.bf16.msra.mxu0 0
    %1304 = vmatprep.subr.bf16.mxu0 0
    %1305 = vmatpush1.bf16.msra.mxu0 0
    %1306 = vmatprep.subr.bf16.mxu0 0
    %1307 = vmatpush1.bf16.msra.mxu0 0
    %1308 = vmatprep.subr.bf16.mxu0 0
    %1309 = vmatpush1.bf16.msra.mxu0 0
    %1310 = vmatprep.mubr.bf16.mxu0 0
    %1311 = vmatmul.mubr.bf16.gmra.mrb[0].mxu0 %v1276
    %v1312 = vpop.f32.mrb[0].mxu0
    %v1313 = vadd.f32 0.0, %v1312
    %v1314 = vpop.f32.mrb[0].mxu0
    %v1315 = vpop.f32.mrb[0].mxu0
    %v1316 = vpop.f32.mrb[0].mxu0
    %1317 = vdwg.mxu0
    %v1318 = vadd.f32 %v1257, %v1313
    %1319 = vst [vmem:[#allocation2] sm:$0x3] %v1318
    // Predicated region
    $region18: #{_lambda_.3} parent=1 // pred_check
      _
    $region19: #{_lambda_.3} parent=1 // pred_check_branch
      %1321 = sbr.rel (0) target = $region21
    $region20: #{_lambda_.3} parent=1 // pred_region
      %s1323 = ssub.s32 32, 32
      %1324 = vsyncadd [#allocation3], %s1323
      %s1326 = sshll.u32 [#allocation2], 4
      %s1327 = int_to_ptr.vmem [resolvable:$true] %s1326
      %1329 = dma.vmem_to_hbm [thread:$0]  %s1327, 32, %s4, [#allocation3]
    $region21: #{_lambda_.3} parent=1 // pred_fallthru
      _
    // Predicated region
    $region22: #{_lambda_.3} parent=1 // pred_check
      _
    $region23: #{_lambda_.3} parent=1 // pred_check_branch
      %1331 = sbr.rel (0) target = $region25
    $region24: #{_lambda_.3} parent=1 // pred_region
      %1332 = dma.done [#allocation3], 32
    $region25: #{_lambda_.3} parent=1 // pred_fallthru
      _
    %1333 = vsyncpa [#allocation3], 1

// kernel: _lambda_.2
$region0: #{_lambda_.2}
  #allocation0 [shape = 'u32[]', space=smem, size = 0x4, offset = 0x4, fixed_abs, tag = 'smem constant byte address 0x4 - core index']
  #allocation1 [shape = 'u32[144,128]{1,0:T(1,128)}', space=vmem, size = 0x12000, scoped, tag = 'internal scratch']
  %s0 = inlined_call_operand.vmem [shape: f32[104,8], index: 0, kind: input, shape index: {}]
  %s1 = inlined_call_operand.vmem [shape: bf16[1584,128], index: 1, kind: input, shape index: {}]
  %s2 = inlined_call_operand.vmem [shape: f32[176,128], index: 2, kind: input, shape index: {}]
  %s3 = inlined_call_operand.vmem [shape: f32[2,128], index: 3, kind: output, shape index: {}]
  %s4 = sld [smem:[#allocation0]]
  $region22: #{_lambda_.2} parent=0
    _
  %s6 = ssub.s32 1, %s4
  %s7 = scalar_select 0, %s6, %s4
  // Predicated region
  $region2: #{_lambda_.2} parent=0 // pred_check
    _
  $region3: #{_lambda_.2} parent=0 // pred_check_branch
    %9 = sbr.rel (0) target = $region5
  $region4: #{_lambda_.2} parent=0 // pred_region
    _
  $region5: #{_lambda_.2} parent=0 // pred_fallthru
    _
  // Predicated region
  $region6: #{_lambda_.2} parent=0 // pred_check
    _
  $region7: #{_lambda_.2} parent=0 // pred_check_branch
    %11 = sbr.rel (0) target = $region9
  $region8: #{_lambda_.2} parent=0 // pred_region
    _
  $region9: #{_lambda_.2} parent=0 // pred_fallthru
    _
  // Predicated region
  $region10: #{_lambda_.2} parent=0 // pred_check
    _
  $region11: #{_lambda_.2} parent=0 // pred_check_branch
    %13 = sbr.rel (0) target = $region13
  $region12: #{_lambda_.2} parent=0 // pred_region
    _
  $region13: #{_lambda_.2} parent=0 // pred_fallthru
    _
  %v15 = vld [vmem:[%s0] sm:$0xff]
  %v16 = vld [vmem:[%s0 + $0x8] sm:$0xff]
  %v17 = vld [vmem:[%s0 + $0x10] sm:$0xff]
  %v18 = vld [vmem:[%s0 + $0x18] sm:$0xff]
  %v19 = vld [vmem:[%s0 + $0x20] sm:$0xff]
  %v20 = vld [vmem:[%s0 + $0x28] sm:$0xff]
  %v21 = vld [vmem:[%s0 + $0x30] sm:$0xff]
  %v22 = vld [vmem:[%s0 + $0x38] sm:$0xff]
  %v23 = vld [vmem:[%s0 + $0x40] sm:$0xff]
  %v24 = vld [vmem:[%s0 + $0x48] sm:$0xff]
  %v25 = vld [vmem:[%s0 + $0x50] sm:$0xff]
  %v26 = vld [vmem:[%s0 + $0x58] sm:$0xff]
  %v27 = vld [vmem:[%s0 + $0x60] sm:$0xff]
  %v28 = vld [vmem:[%s2] sm:$0xff]
  %v29 = vld [vmem:[%s2 + $0x10] sm:$0x1]
  %v30 = vlaneseq
  %v31 = vshrl.u32 %v30, 7
  %v32 = vsub.s32 0, %v31
  %v33 = vrot.slane %v29, %v32
  %vm34 = vcmask 64512
  %v36 = vsel %vm34, %v15, 0
  %v39 = vsel %vm34, %v16, 0
  %v42 = vsel %vm34, %v17, 0
  %v45 = vsel %vm34, %v18, 0
  %v48 = vsel %vm34, %v19, 0
  %v51 = vsel %vm34, %v20, 0
  %v54 = vsel %vm34, %v21, 0
  %v57 = vsel %vm34, %v22, 0
  %v60 = vsel %vm34, %v23, 0
  %v63 = vsel %vm34, %v24, 0
  %v66 = vsel %vm34, %v25, 0
  %v69 = vsel %vm34, %v26, 0
  %v72 = vsel %vm34, %v27, 0
  %74 = vmatprep.subr.mxu0 0.0
  %75 = vmatpush1.msra.mxu0 %v28
  %76 = vmatprep.subr.mxu0 0.0
  %77 = vmatpush1.msra.mxu0 0.0
  %78 = vmatprep.subr.mxu0 0.0
  %79 = vmatpush1.msra.mxu0 0.0
  %80 = vmatprep.subr.mxu0 0.0
  %81 = vmatpush1.msra.mxu0 0.0
  %82 = vmatprep.subr.mxu0 0.0
  %83 = vmatpush1.msra.mxu0 0.0
  %84 = vmatprep.subr.mxu0 0.0
  %85 = vmatpush1.msra.mxu0 0.0
  %86 = vmatprep.subr.mxu0 0.0
  %87 = vmatpush1.msra.mxu0 0.0
  %88 = vmatprep.subr.mxu0 0.0
  %89 = vmatpush1.msra.mxu0 0.0
  %90 = vmatprep.subr.mxu0 0.0
  %91 = vmatpush1.msra.mxu0 0.0
  %92 = vmatprep.subr.mxu0 0.0
  %93 = vmatpush1.msra.mxu0 0.0
  %94 = vmatprep.subr.mxu0 0.0
  %95 = vmatpush1.msra.mxu0 0.0
  %96 = vmatprep.subr.mxu0 0.0
  %97 = vmatpush1.msra.mxu0 0.0
  %98 = vmatprep.subr.mxu0 0.0
  %99 = vmatpush1.msra.mxu0 0.0
  %100 = vmatprep.subr.mxu0 0.0
  %101 = vmatpush1.msra.mxu0 0.0
  %102 = vmatprep.subr.mxu0 0.0
  %103 = vmatpush1.msra.mxu0 0.0
  %104 = vmatprep.subr.mxu0 0.0
  %105 = vmatpush1.msra.mxu0 0.0
  %106 = vmatprep.subr.mxu0 0.0
  %107 = vmatpush1.msra.mxu0 0.0
  %108 = vmatprep.subr.mxu0 0.0
  %109 = vmatpush1.msra.mxu0 0.0
  %110 = vmatprep.subr.mxu0 0.0
  %111 = vmatpush1.msra.mxu0 0.0
  %112 = vmatprep.subr.mxu0 0.0
  %113 = vmatpush1.msra.mxu0 0.0
  %114 = vmatprep.subr.mxu0 0.0
  %115 = vmatpush1.msra.mxu0 0.0
  %116 = vmatprep.subr.mxu0 0.0
  %117 = vmatpush1.msra.mxu0 0.0
  %118 = vmatprep.subr.mxu0 0.0
  %119 = vmatpush1.msra.mxu0 0.0
  %120 = vmatprep.subr.mxu0 0.0
  %121 = vmatpush1.msra.mxu0 0.0
  %122 = vmatprep.subr.mxu0 0.0
  %123 = vmatpush1.msra.mxu0 0.0
  %124 = vmatprep.subr.mxu0 0.0
  %125 = vmatpush1.msra.mxu0 0.0
  %126 = vmatprep.subr.mxu0 0.0
  %127 = vmatpush1.msra.mxu0 0.0
  %128 = vmatprep.subr.mxu0 0.0
  %129 = vmatpush1.msra.mxu0 0.0
  %130 = vmatprep.subr.mxu0 0.0
  %131 = vmatpush1.msra.mxu0 0.0
  %132 = vmatprep.subr.mxu0 0.0
  %133 = vmatpush1.msra.mxu0 0.0
  %134 = vmatprep.subr.mxu0 0.0
  %135 = vmatpush1.msra.mxu0 0.0
  %136 = vmatprep.subr.mxu0 0.0
  %137 = vmatpush1.msra.mxu0 0.0
  %138 = vmatprep.mubr.f32.mxu0 0.0
  %139 = vmatmul.mubr.f32.gmra.mrb[0].mxu0 %v36
  %v140 = vpop.f32.mrb[0].mxu0
  %v141 = vadd.f32 %v33, %v140
  %v142 = vpop.f32.mrb[0].mxu0
  %143 = vmatprep.mubr.f32.mxu0 0.0
  %144 = vmatmul.mubr.f32.gmra.mrb[0].mxu0 %v39
  %v145 = vpop.f32.mrb[0].mxu0
  %v146 = vadd.f32 %v33, %v145
  %v147 = vpop.f32.mrb[0].mxu0
  %148 = vmatprep.mubr.f32.mxu0 0.0
  %149 = vmatmul.mubr.f32.gmra.mrb[0].mxu0 %v42
  %v150 = vpop.f32.mrb[0].mxu0
  %v151 = vadd.f32 %v33, %v150
  %v152 = vpop.f32.mrb[0].mxu0
  %153 = vmatprep.mubr.f32.mxu0 0.0
  %154 = vmatmul.mubr.f32.gmra.mrb[0].mxu0 %v45
  %v155 = vpop.f32.mrb[0].mxu0
  %v156 = vadd.f32 %v33, %v155
  %v157 = vpop.f32.mrb[0].mxu0
  %158 = vmatprep.mubr.f32.mxu0 0.0
  %159 = vmatmul.mubr.f32.gmra.mrb[0].mxu0 %v48
  %v160 = vpop.f32.mrb[0].mxu0
  %v161 = vadd.f32 %v33, %v160
  %v162 = vpop.f32.mrb[0].mxu0
  %163 = vmatprep.mubr.f32.mxu0 0.0
  %164 = vmatmul.mubr.f32.gmra.mrb[0].mxu0 %v51
  %v165 = vpop.f32.mrb[0].mxu0
  %v166 = vadd.f32 %v33, %v165
  %v167 = vpop.f32.mrb[0].mxu0
  %168 = vmatprep.mubr.f32.mxu0 0.0
  %169 = vmatmul.mubr.f32.gmra.mrb[0].mxu0 %v54
  %v170 = vpop.f32.mrb[0].mxu0
  %v171 = vadd.f32 %v33, %v170
  %v172 = vpop.f32.mrb[0].mxu0
  %173 = vmatprep.mubr.f32.mxu0 0.0
  %174 = vmatmul.mubr.f32.gmra.mrb[0].mxu0 %v57
  %v175 = vpop.f32.mrb[0].mxu0
  %v176 = vadd.f32 %v33, %v175
  %v177 = vpop.f32.mrb[0].mxu0
  %178 = vmatprep.mubr.f32.mxu0 0.0
  %179 = vmatmul.mubr.f32.gmra.mrb[0].mxu0 %v60
  %v180 = vpop.f32.mrb[0].mxu0
  %v181 = vadd.f32 %v33, %v180
  %v182 = vpop.f32.mrb[0].mxu0
  %183 = vmatprep.mubr.f32.mxu0 0.0
  %184 = vmatmul.mubr.f32.gmra.mrb[0].mxu0 %v63
  %v185 = vpop.f32.mrb[0].mxu0
  %v186 = vadd.f32 %v33, %v185
  %v187 = vpop.f32.mrb[0].mxu0
  %188 = vmatprep.mubr.f32.mxu0 0.0
  %189 = vmatmul.mubr.f32.gmra.mrb[0].mxu0 %v66
  %v190 = vpop.f32.mrb[0].mxu0
  %v191 = vadd.f32 %v33, %v190
  %v192 = vpop.f32.mrb[0].mxu0
  %193 = vmatprep.mubr.f32.mxu0 0.0
  %194 = vmatmul.mubr.f32.gmra.mrb[0].mxu0 %v69
  %v195 = vpop.f32.mrb[0].mxu0
  %v196 = vadd.f32 %v33, %v195
  %v197 = vpop.f32.mrb[0].mxu0
  %198 = vmatprep.mubr.f32.mxu0 0.0
  %199 = vmatmul.mubr.f32.gmra.mrb[0].mxu0 %v72
  %v200 = vpop.f32.mrb[0].mxu0
  %v201 = vadd.f32 %v33, %v200
  %v202 = vpop.f32.mrb[0].mxu0
  %203 = vdwg.mxu0
  %v204 = vand.u32 2147483647, %v141
  %v205 = vand.u32 2147483647, %v146
  %v206 = vand.u32 2147483647, %v151
  %v207 = vand.u32 2147483647, %v156
  %v208 = vand.u32 2147483647, %v161
  %v209 = vand.u32 2147483647, %v166
  %v210 = vand.u32 2147483647, %v171
  %v211 = vand.u32 2147483647, %v176
  %v212 = vand.u32 2147483647, %v181
  %v213 = vand.u32 2147483647, %v186
  %v214 = vand.u32 2147483647, %v191
  %v215 = vand.u32 2147483647, %v196
  %v216 = vand.u32 2147483647, %v201
  %v217 = vlaneseq
  %v218 = vand.u32 %v217, 127
  %v219 = vcvt.s32.f32 %v218
  %v220 = vsel %vm34, %v204, -inf
  %221 = vmax.xlane.f32.xlu0 %v220
  %v222 = vpop.xlane.xlu0 %221
  %v223 = vsel %vm34, %v205, -inf
  %224 = vmax.xlane.f32.xlu0 %v223
  %v225 = vpop.xlane.xlu0 %224
  %v226 = vsel %vm34, %v206, -inf
  %227 = vmax.xlane.f32.xlu0 %v226
  %v228 = vpop.xlane.xlu0 %227
  %v229 = vsel %vm34, %v207, -inf
  %230 = vmax.xlane.f32.xlu0 %v229
  %v231 = vpop.xlane.xlu0 %230
  %v232 = vsel %vm34, %v208, -inf
  %233 = vmax.xlane.f32.xlu0 %v232
  %v234 = vpop.xlane.xlu0 %233
  %v235 = vsel %vm34, %v209, -inf
  %236 = vmax.xlane.f32.xlu0 %v235
  %v237 = vpop.xlane.xlu0 %236
  %v238 = vsel %vm34, %v210, -inf
  %239 = vmax.xlane.f32.xlu0 %v238
  %v240 = vpop.xlane.xlu0 %239
  %v241 = vsel %vm34, %v211, -inf
  %242 = vmax.xlane.f32.xlu0 %v241
  %v243 = vpop.xlane.xlu0 %242
  %v244 = vsel %vm34, %v212, -inf
  %245 = vmax.xlane.f32.xlu0 %v244
  %v246 = vpop.xlane.xlu0 %245
  %v247 = vsel %vm34, %v213, -inf
  %248 = vmax.xlane.f32.xlu0 %v247
  %v249 = vpop.xlane.xlu0 %248
  %v250 = vsel %vm34, %v214, -inf
  %251 = vmax.xlane.f32.xlu0 %v250
  %v252 = vpop.xlane.xlu0 %251
  %v253 = vsel %vm34, %v215, -inf
  %254 = vmax.xlane.f32.xlu0 %v253
  %v255 = vpop.xlane.xlu0 %254
  %v256 = vsel %vm34, %v216, -inf
  %257 = vmax.xlane.f32.xlu0 %v256
  %v258 = vpop.xlane.xlu0 %257
  %vm259 = vcmp.eq.f32.partialorder %v204, %v222
  %vm260 = vcmp.eq.f32.partialorder %v205, %v225
  %vm261 = vcmp.eq.f32.partialorder %v206, %v228
  %vm262 = vcmp.eq.f32.partialorder %v207, %v231
  %vm263 = vcmp.eq.f32.partialorder %v208, %v234
  %vm264 = vcmp.eq.f32.partialorder %v209, %v237
  %vm265 = vcmp.eq.f32.partialorder %v210, %v240
  %vm266 = vcmp.eq.f32.partialorder %v211, %v243
  %vm267 = vcmp.eq.f32.partialorder %v212, %v246
  %vm268 = vcmp.eq.f32.partialorder %v213, %v249
  %vm269 = vcmp.eq.f32.partialorder %v214, %v252
  %vm270 = vcmp.eq.f32.partialorder %v215, %v255
  %vm271 = vcmp.eq.f32.partialorder %v216, %v258
  %v272 = vsel %vm259, %v219, 8.0
  %v273 = vsel %vm260, %v219, 8.0
  %v274 = vsel %vm261, %v219, 8.0
  %v275 = vsel %vm262, %v219, 8.0
  %v276 = vsel %vm263, %v219, 8.0
  %v277 = vsel %vm264, %v219, 8.0
  %v278 = vsel %vm265, %v219, 8.0
  %v279 = vsel %vm266, %v219, 8.0
  %v280 = vsel %vm267, %v219, 8.0
  %v281 = vsel %vm268, %v219, 8.0
  %v282 = vsel %vm269, %v219, 8.0
  %v283 = vsel %vm270, %v219, 8.0
  %v284 = vsel %vm271, %v219, 8.0
  %v285 = vsel %vm34, %v272, inf
  %286 = vmin.xlane.f32.xlu0 %v285
  %v287 = vpop.xlane.xlu0 %286
  %v288 = vsel %vm34, %v273, inf
  %289 = vmin.xlane.f32.xlu0 %v288
  %v290 = vpop.xlane.xlu0 %289
  %v291 = vsel %vm34, %v274, inf
  %292 = vmin.xlane.f32.xlu0 %v291
  %v293 = vpop.xlane.xlu0 %292
  %v294 = vsel %vm34, %v275, inf
  %295 = vmin.xlane.f32.xlu0 %v294
  %v296 = vpop.xlane.xlu0 %295
  %v297 = vsel %vm34, %v276, inf
  %298 = vmin.xlane.f32.xlu0 %v297
  %v299 = vpop.xlane.xlu0 %298
  %v300 = vsel %vm34, %v277, inf
  %301 = vmin.xlane.f32.xlu0 %v300
  %v302 = vpop.xlane.xlu0 %301
  %v303 = vsel %vm34, %v278, inf
  %304 = vmin.xlane.f32.xlu0 %v303
  %v305 = vpop.xlane.xlu0 %304
  %v306 = vsel %vm34, %v279, inf
  %307 = vmin.xlane.f32.xlu0 %v306
  %v308 = vpop.xlane.xlu0 %307
  %v309 = vsel %vm34, %v280, inf
  %310 = vmin.xlane.f32.xlu0 %v309
  %v311 = vpop.xlane.xlu0 %310
  %v312 = vsel %vm34, %v281, inf
  %313 = vmin.xlane.f32.xlu0 %v312
  %v314 = vpop.xlane.xlu0 %313
  %v315 = vsel %vm34, %v282, inf
  %316 = vmin.xlane.f32.xlu0 %v315
  %v317 = vpop.xlane.xlu0 %316
  %v318 = vsel %vm34, %v283, inf
  %319 = vmin.xlane.f32.xlu0 %v318
  %v320 = vpop.xlane.xlu0 %319
  %v321 = vsel %vm34, %v284, inf
  %322 = vmin.xlane.f32.xlu0 %v321
  %v323 = vpop.xlane.xlu0 %322
  %vm324 = vcmp.eq.f32.partialorder %v219, %v287
  %vm325 = vcmp.eq.f32.partialorder %v219, %v290
  %vm326 = vcmp.eq.f32.partialorder %v219, %v293
  %vm327 = vcmp.eq.f32.partialorder %v219, %v296
  %vm328 = vcmp.eq.f32.partialorder %v219, %v299
  %vm329 = vcmp.eq.f32.partialorder %v219, %v302
  %vm330 = vcmp.eq.f32.partialorder %v219, %v305
  %vm331 = vcmp.eq.f32.partialorder %v219, %v308
  %vm332 = vcmp.eq.f32.partialorder %v219, %v311
  %vm333 = vcmp.eq.f32.partialorder %v219, %v314
  %vm334 = vcmp.eq.f32.partialorder %v219, %v317
  %vm335 = vcmp.eq.f32.partialorder %v219, %v320
  %vm336 = vcmp.eq.f32.partialorder %v219, %v323
  %v337 = vsel %vm324, -1.0, %v204
  %v338 = vsel %vm325, -1.0, %v205
  %v339 = vsel %vm326, -1.0, %v206
  %v340 = vsel %vm327, -1.0, %v207
  %v341 = vsel %vm328, -1.0, %v208
  %v342 = vsel %vm329, -1.0, %v209
  %v343 = vsel %vm330, -1.0, %v210
  %v344 = vsel %vm331, -1.0, %v211
  %v345 = vsel %vm332, -1.0, %v212
  %v346 = vsel %vm333, -1.0, %v213
  %v347 = vsel %vm334, -1.0, %v214
  %v348 = vsel %vm335, -1.0, %v215
  %v349 = vsel %vm336, -1.0, %v216
  %v350 = vsel %vm34, %v337, -inf
  %351 = vmax.xlane.f32.xlu0 %v350
  %v352 = vpop.xlane.xlu0 %351
  %v353 = vsel %vm34, %v338, -inf
  %354 = vmax.xlane.f32.xlu0 %v353
  %v355 = vpop.xlane.xlu0 %354
  %v356 = vsel %vm34, %v339, -inf
  %357 = vmax.xlane.f32.xlu0 %v356
  %v358 = vpop.xlane.xlu0 %357
  %v359 = vsel %vm34, %v340, -inf
  %360 = vmax.xlane.f32.xlu0 %v359
  %v361 = vpop.xlane.xlu0 %360
  %v362 = vsel %vm34, %v341, -inf
  %363 = vmax.xlane.f32.xlu0 %v362
  %v364 = vpop.xlane.xlu0 %363
  %v365 = vsel %vm34, %v342, -inf
  %366 = vmax.xlane.f32.xlu0 %v365
  %v367 = vpop.xlane.xlu0 %366
  %v368 = vsel %vm34, %v343, -inf
  %369 = vmax.xlane.f32.xlu0 %v368
  %v370 = vpop.xlane.xlu0 %369
  %v371 = vsel %vm34, %v344, -inf
  %372 = vmax.xlane.f32.xlu0 %v371
  %v373 = vpop.xlane.xlu0 %372
  %v374 = vsel %vm34, %v345, -inf
  %375 = vmax.xlane.f32.xlu0 %v374
  %v376 = vpop.xlane.xlu0 %375
  %v377 = vsel %vm34, %v346, -inf
  %378 = vmax.xlane.f32.xlu0 %v377
  %v379 = vpop.xlane.xlu0 %378
  %v380 = vsel %vm34, %v347, -inf
  %381 = vmax.xlane.f32.xlu0 %v380
  %v382 = vpop.xlane.xlu0 %381
  %v383 = vsel %vm34, %v348, -inf
  %384 = vmax.xlane.f32.xlu0 %v383
  %v385 = vpop.xlane.xlu0 %384
  %v386 = vsel %vm34, %v349, -inf
  %387 = vmax.xlane.f32.xlu0 %v386
  %v388 = vpop.xlane.xlu0 %387
  %vm389 = vcmp.eq.f32.partialorder %v337, %v352
  %vm390 = vcmp.eq.f32.partialorder %v338, %v355
  %vm391 = vcmp.eq.f32.partialorder %v339, %v358
  %vm392 = vcmp.eq.f32.partialorder %v340, %v361
  %vm393 = vcmp.eq.f32.partialorder %v341, %v364
  %vm394 = vcmp.eq.f32.partialorder %v342, %v367
  %vm395 = vcmp.eq.f32.partialorder %v343, %v370
  %vm396 = vcmp.eq.f32.partialorder %v344, %v373
  %vm397 = vcmp.eq.f32.partialorder %v345, %v376
  %vm398 = vcmp.eq.f32.partialorder %v346, %v379
  %vm399 = vcmp.eq.f32.partialorder %v347, %v382
  %vm400 = vcmp.eq.f32.partialorder %v348, %v385
  %vm401 = vcmp.eq.f32.partialorder %v349, %v388
  %v402 = vsel %vm389, %v219, 8.0
  %v403 = vsel %vm390, %v219, 8.0
  %v404 = vsel %vm391, %v219, 8.0
  %v405 = vsel %vm392, %v219, 8.0
  %v406 = vsel %vm393, %v219, 8.0
  %v407 = vsel %vm394, %v219, 8.0
  %v408 = vsel %vm395, %v219, 8.0
  %v409 = vsel %vm396, %v219, 8.0
  %v410 = vsel %vm397, %v219, 8.0
  %v411 = vsel %vm398, %v219, 8.0
  %v412 = vsel %vm399, %v219, 8.0
  %v413 = vsel %vm400, %v219, 8.0
  %v414 = vsel %vm401, %v219, 8.0
  %v415 = vsel %vm34, %v402, inf
  %416 = vmin.xlane.f32.xlu0 %v415
  %v417 = vpop.xlane.xlu0 %416
  %v418 = vsel %vm34, %v403, inf
  %419 = vmin.xlane.f32.xlu0 %v418
  %v420 = vpop.xlane.xlu0 %419
  %v421 = vsel %vm34, %v404, inf
  %422 = vmin.xlane.f32.xlu0 %v421
  %v423 = vpop.xlane.xlu0 %422
  %v424 = vsel %vm34, %v405, inf
  %425 = vmin.xlane.f32.xlu0 %v424
  %v426 = vpop.xlane.xlu0 %425
  %v427 = vsel %vm34, %v406, inf
  %428 = vmin.xlane.f32.xlu0 %v427
  %v429 = vpop.xlane.xlu0 %428
  %v430 = vsel %vm34, %v407, inf
  %431 = vmin.xlane.f32.xlu0 %v430
  %v432 = vpop.xlane.xlu0 %431
  %v433 = vsel %vm34, %v408, inf
  %434 = vmin.xlane.f32.xlu0 %v433
  %v435 = vpop.xlane.xlu0 %434
  %v436 = vsel %vm34, %v409, inf
  %437 = vmin.xlane.f32.xlu0 %v436
  %v438 = vpop.xlane.xlu0 %437
  %v439 = vsel %vm34, %v410, inf
  %440 = vmin.xlane.f32.xlu0 %v439
  %v441 = vpop.xlane.xlu0 %440
  %v442 = vsel %vm34, %v411, inf
  %443 = vmin.xlane.f32.xlu0 %v442
  %v444 = vpop.xlane.xlu0 %443
  %v445 = vsel %vm34, %v412, inf
  %446 = vmin.xlane.f32.xlu0 %v445
  %v447 = vpop.xlane.xlu0 %446
  %v448 = vsel %vm34, %v413, inf
  %449 = vmin.xlane.f32.xlu0 %v448
  %v450 = vpop.xlane.xlu0 %449
  %v451 = vsel %vm34, %v414, inf
  %452 = vmin.xlane.f32.xlu0 %v451
  %v453 = vpop.xlane.xlu0 %452
  %vm454 = vcmp.eq.f32.partialorder %v219, %v417
  %vm455 = vcmp.eq.f32.partialorder %v219, %v420
  %vm456 = vcmp.eq.f32.partialorder %v219, %v423
  %vm457 = vcmp.eq.f32.partialorder %v219, %v426
  %vm458 = vcmp.eq.f32.partialorder %v219, %v429
  %vm459 = vcmp.eq.f32.partialorder %v219, %v432
  %vm460 = vcmp.eq.f32.partialorder %v219, %v435
  %vm461 = vcmp.eq.f32.partialorder %v219, %v438
  %vm462 = vcmp.eq.f32.partialorder %v219, %v441
  %vm463 = vcmp.eq.f32.partialorder %v219, %v444
  %vm464 = vcmp.eq.f32.partialorder %v219, %v447
  %vm465 = vcmp.eq.f32.partialorder %v219, %v450
  %vm466 = vcmp.eq.f32.partialorder %v219, %v453
  %v467 = vsel %vm454, -1.0, %v337
  %v468 = vsel %vm455, -1.0, %v338
  %v469 = vsel %vm456, -1.0, %v339
  %v470 = vsel %vm457, -1.0, %v340
  %v471 = vsel %vm458, -1.0, %v341
  %v472 = vsel %vm459, -1.0, %v342
  %v473 = vsel %vm460, -1.0, %v343
  %v474 = vsel %vm461, -1.0, %v344
  %v475 = vsel %vm462, -1.0, %v345
  %v476 = vsel %vm463, -1.0, %v346
  %v477 = vsel %vm464, -1.0, %v347
  %v478 = vsel %vm465, -1.0, %v348
  %v479 = vsel %vm466, -1.0, %v349
  %v480 = vsel %vm34, %v467, -inf
  %481 = vmax.xlane.f32.xlu0 %v480
  %v482 = vpop.xlane.xlu0 %481
  %v483 = vsel %vm34, %v468, -inf
  %484 = vmax.xlane.f32.xlu0 %v483
  %v485 = vpop.xlane.xlu0 %484
  %v486 = vsel %vm34, %v469, -inf
  %487 = vmax.xlane.f32.xlu0 %v486
  %v488 = vpop.xlane.xlu0 %487
  %v489 = vsel %vm34, %v470, -inf
  %490 = vmax.xlane.f32.xlu0 %v489
  %v491 = vpop.xlane.xlu0 %490
  %v492 = vsel %vm34, %v471, -inf
  %493 = vmax.xlane.f32.xlu0 %v492
  %v494 = vpop.xlane.xlu0 %493
  %v495 = vsel %vm34, %v472, -inf
  %496 = vmax.xlane.f32.xlu0 %v495
  %v497 = vpop.xlane.xlu0 %496
  %v498 = vsel %vm34, %v473, -inf
  %499 = vmax.xlane.f32.xlu0 %v498
  %v500 = vpop.xlane.xlu0 %499
  %v501 = vsel %vm34, %v474, -inf
  %502 = vmax.xlane.f32.xlu0 %v501
  %v503 = vpop.xlane.xlu0 %502
  %v504 = vsel %vm34, %v475, -inf
  %505 = vmax.xlane.f32.xlu0 %v504
  %v506 = vpop.xlane.xlu0 %505
  %v507 = vsel %vm34, %v476, -inf
  %508 = vmax.xlane.f32.xlu0 %v507
  %v509 = vpop.xlane.xlu0 %508
  %v510 = vsel %vm34, %v477, -inf
  %511 = vmax.xlane.f32.xlu0 %v510
  %v512 = vpop.xlane.xlu0 %511
  %v513 = vsel %vm34, %v478, -inf
  %514 = vmax.xlane.f32.xlu0 %v513
  %v515 = vpop.xlane.xlu0 %514
  %v516 = vsel %vm34, %v479, -inf
  %517 = vmax.xlane.f32.xlu0 %v516
  %v518 = vpop.xlane.xlu0 %517
  %vm519 = vcmp.eq.f32.partialorder %v467, %v482
  %vm520 = vcmp.eq.f32.partialorder %v468, %v485
  %vm521 = vcmp.eq.f32.partialorder %v469, %v488
  %vm522 = vcmp.eq.f32.partialorder %v470, %v491
  %vm523 = vcmp.eq.f32.partialorder %v471, %v494
  %vm524 = vcmp.eq.f32.partialorder %v472, %v497
  %vm525 = vcmp.eq.f32.partialorder %v473, %v500
  %vm526 = vcmp.eq.f32.partialorder %v474, %v503
  %vm527 = vcmp.eq.f32.partialorder %v475, %v506
  %vm528 = vcmp.eq.f32.partialorder %v476, %v509
  %vm529 = vcmp.eq.f32.partialorder %v477, %v512
  %vm530 = vcmp.eq.f32.partialorder %v478, %v515
  %vm531 = vcmp.eq.f32.partialorder %v479, %v518
  %v532 = vsel %vm519, %v219, 8.0
  %v533 = vsel %vm520, %v219, 8.0
  %v534 = vsel %vm521, %v219, 8.0
  %v535 = vsel %vm522, %v219, 8.0
  %v536 = vsel %vm523, %v219, 8.0
  %v537 = vsel %vm524, %v219, 8.0
  %v538 = vsel %vm525, %v219, 8.0
  %v539 = vsel %vm526, %v219, 8.0
  %v540 = vsel %vm527, %v219, 8.0
  %v541 = vsel %vm528, %v219, 8.0
  %v542 = vsel %vm529, %v219, 8.0
  %v543 = vsel %vm530, %v219, 8.0
  %v544 = vsel %vm531, %v219, 8.0
  %v545 = vsel %vm34, %v532, inf
  %546 = vmin.xlane.f32.xlu0 %v545
  %v547 = vpop.xlane.xlu0 %546
  %v548 = vsel %vm34, %v533, inf
  %549 = vmin.xlane.f32.xlu0 %v548
  %v550 = vpop.xlane.xlu0 %549
  %v551 = vsel %vm34, %v534, inf
  %552 = vmin.xlane.f32.xlu0 %v551
  %v553 = vpop.xlane.xlu0 %552
  %v554 = vsel %vm34, %v535, inf
  %555 = vmin.xlane.f32.xlu0 %v554
  %v556 = vpop.xlane.xlu0 %555
  %v557 = vsel %vm34, %v536, inf
  %558 = vmin.xlane.f32.xlu0 %v557
  %v559 = vpop.xlane.xlu0 %558
  %v560 = vsel %vm34, %v537, inf
  %561 = vmin.xlane.f32.xlu0 %v560
  %v562 = vpop.xlane.xlu0 %561
  %v563 = vsel %vm34, %v538, inf
  %564 = vmin.xlane.f32.xlu0 %v563
  %v565 = vpop.xlane.xlu0 %564
  %v566 = vsel %vm34, %v539, inf
  %567 = vmin.xlane.f32.xlu0 %v566
  %v568 = vpop.xlane.xlu0 %567
  %v569 = vsel %vm34, %v540, inf
  %570 = vmin.xlane.f32.xlu0 %v569
  %v571 = vpop.xlane.xlu0 %570
  %v572 = vsel %vm34, %v541, inf
  %573 = vmin.xlane.f32.xlu0 %v572
  %v574 = vpop.xlane.xlu0 %573
  %v575 = vsel %vm34, %v542, inf
  %576 = vmin.xlane.f32.xlu0 %v575
  %v577 = vpop.xlane.xlu0 %576
  %v578 = vsel %vm34, %v543, inf
  %579 = vmin.xlane.f32.xlu0 %v578
  %v580 = vpop.xlane.xlu0 %579
  %v581 = vsel %vm34, %v544, inf
  %582 = vmin.xlane.f32.xlu0 %v581
  %v583 = vpop.xlane.xlu0 %582
  %vm584 = vcmp.eq.f32.partialorder %v219, %v547
  %vm585 = vcmp.eq.f32.partialorder %v219, %v550
  %vm586 = vcmp.eq.f32.partialorder %v219, %v553
  %vm587 = vcmp.eq.f32.partialorder %v219, %v556
  %vm588 = vcmp.eq.f32.partialorder %v219, %v559
  %vm589 = vcmp.eq.f32.partialorder %v219, %v562
  %vm590 = vcmp.eq.f32.partialorder %v219, %v565
  %vm591 = vcmp.eq.f32.partialorder %v219, %v568
  %vm592 = vcmp.eq.f32.partialorder %v219, %v571
  %vm593 = vcmp.eq.f32.partialorder %v219, %v574
  %vm594 = vcmp.eq.f32.partialorder %v219, %v577
  %vm595 = vcmp.eq.f32.partialorder %v219, %v580
  %vm596 = vcmp.eq.f32.partialorder %v219, %v583
  %v597 = vsel %vm584, -1.0, %v467
  %v598 = vsel %vm585, -1.0, %v468
  %v599 = vsel %vm586, -1.0, %v469
  %v600 = vsel %vm587, -1.0, %v470
  %v601 = vsel %vm588, -1.0, %v471
  %v602 = vsel %vm589, -1.0, %v472
  %v603 = vsel %vm590, -1.0, %v473
  %v604 = vsel %vm591, -1.0, %v474
  %v605 = vsel %vm592, -1.0, %v475
  %v606 = vsel %vm593, -1.0, %v476
  %v607 = vsel %vm594, -1.0, %v477
  %v608 = vsel %vm595, -1.0, %v478
  %v609 = vsel %vm596, -1.0, %v479
  %v610 = vsel %vm34, %v597, -inf
  %611 = vmax.xlane.f32.xlu0 %v610
  %v612 = vpop.xlane.xlu0 %611
  %v613 = vsel %vm34, %v598, -inf
  %614 = vmax.xlane.f32.xlu0 %v613
  %v615 = vpop.xlane.xlu0 %614
  %v616 = vsel %vm34, %v599, -inf
  %617 = vmax.xlane.f32.xlu0 %v616
  %v618 = vpop.xlane.xlu0 %617
  %v619 = vsel %vm34, %v600, -inf
  %620 = vmax.xlane.f32.xlu0 %v619
  %v621 = vpop.xlane.xlu0 %620
  %v622 = vsel %vm34, %v601, -inf
  %623 = vmax.xlane.f32.xlu0 %v622
  %v624 = vpop.xlane.xlu0 %623
  %v625 = vsel %vm34, %v602, -inf
  %626 = vmax.xlane.f32.xlu0 %v625
  %v627 = vpop.xlane.xlu0 %626
  %v628 = vsel %vm34, %v603, -inf
  %629 = vmax.xlane.f32.xlu0 %v628
  %v630 = vpop.xlane.xlu0 %629
  %v631 = vsel %vm34, %v604, -inf
  %632 = vmax.xlane.f32.xlu0 %v631
  %v633 = vpop.xlane.xlu0 %632
  %v634 = vsel %vm34, %v605, -inf
  %635 = vmax.xlane.f32.xlu0 %v634
  %v636 = vpop.xlane.xlu0 %635
  %v637 = vsel %vm34, %v606, -inf
  %638 = vmax.xlane.f32.xlu0 %v637
  %v639 = vpop.xlane.xlu0 %638
  %v640 = vsel %vm34, %v607, -inf
  %641 = vmax.xlane.f32.xlu0 %v640
  %v642 = vpop.xlane.xlu0 %641
  %v643 = vsel %vm34, %v608, -inf
  %644 = vmax.xlane.f32.xlu0 %v643
  %v645 = vpop.xlane.xlu0 %644
  %v646 = vsel %vm34, %v609, -inf
  %647 = vmax.xlane.f32.xlu0 %v646
  %v648 = vpop.xlane.xlu0 %647
  %vm649 = vcmp.eq.f32.partialorder %v597, %v612
  %vm650 = vcmp.eq.f32.partialorder %v598, %v615
  %vm651 = vcmp.eq.f32.partialorder %v599, %v618
  %vm652 = vcmp.eq.f32.partialorder %v600, %v621
  %vm653 = vcmp.eq.f32.partialorder %v601, %v624
  %vm654 = vcmp.eq.f32.partialorder %v602, %v627
  %vm655 = vcmp.eq.f32.partialorder %v603, %v630
  %vm656 = vcmp.eq.f32.partialorder %v604, %v633
  %vm657 = vcmp.eq.f32.partialorder %v605, %v636
  %vm658 = vcmp.eq.f32.partialorder %v606, %v639
  %vm659 = vcmp.eq.f32.partialorder %v607, %v642
  %vm660 = vcmp.eq.f32.partialorder %v608, %v645
  %vm661 = vcmp.eq.f32.partialorder %v609, %v648
  %v662 = vsel %vm649, %v219, 8.0
  %v663 = vsel %vm650, %v219, 8.0
  %v664 = vsel %vm651, %v219, 8.0
  %v665 = vsel %vm652, %v219, 8.0
  %v666 = vsel %vm653, %v219, 8.0
  %v667 = vsel %vm654, %v219, 8.0
  %v668 = vsel %vm655, %v219, 8.0
  %v669 = vsel %vm656, %v219, 8.0
  %v670 = vsel %vm657, %v219, 8.0
  %v671 = vsel %vm658, %v219, 8.0
  %v672 = vsel %vm659, %v219, 8.0
  %v673 = vsel %vm660, %v219, 8.0
  %v674 = vsel %vm661, %v219, 8.0
  %v675 = vsel %vm34, %v662, inf
  %676 = vmin.xlane.f32.xlu0 %v675
  %v677 = vpop.xlane.xlu0 %676
  %v678 = vsel %vm34, %v663, inf
  %679 = vmin.xlane.f32.xlu0 %v678
  %v680 = vpop.xlane.xlu0 %679
  %v681 = vsel %vm34, %v664, inf
  %682 = vmin.xlane.f32.xlu0 %v681
  %v683 = vpop.xlane.xlu0 %682
  %v684 = vsel %vm34, %v665, inf
  %685 = vmin.xlane.f32.xlu0 %v684
  %v686 = vpop.xlane.xlu0 %685
  %v687 = vsel %vm34, %v666, inf
  %688 = vmin.xlane.f32.xlu0 %v687
  %v689 = vpop.xlane.xlu0 %688
  %v690 = vsel %vm34, %v667, inf
  %691 = vmin.xlane.f32.xlu0 %v690
  %v692 = vpop.xlane.xlu0 %691
  %v693 = vsel %vm34, %v668, inf
  %694 = vmin.xlane.f32.xlu0 %v693
  %v695 = vpop.xlane.xlu0 %694
  %v696 = vsel %vm34, %v669, inf
  %697 = vmin.xlane.f32.xlu0 %v696
  %v698 = vpop.xlane.xlu0 %697
  %v699 = vsel %vm34, %v670, inf
  %700 = vmin.xlane.f32.xlu0 %v699
  %v701 = vpop.xlane.xlu0 %700
  %v702 = vsel %vm34, %v671, inf
  %703 = vmin.xlane.f32.xlu0 %v702
  %v704 = vpop.xlane.xlu0 %703
  %v705 = vsel %vm34, %v672, inf
  %706 = vmin.xlane.f32.xlu0 %v705
  %v707 = vpop.xlane.xlu0 %706
  %v708 = vsel %vm34, %v673, inf
  %709 = vmin.xlane.f32.xlu0 %v708
  %v710 = vpop.xlane.xlu0 %709
  %v711 = vsel %vm34, %v674, inf
  %712 = vmin.xlane.f32.xlu0 %v711
  %v713 = vpop.xlane.xlu0 %712
  %vm714 = vcmask 7168
  %v715 = vsel %vm714, %v222, %v352
  %v716 = vsel %vm714, %v225, %v355
  %v717 = vsel %vm714, %v228, %v358
  %v718 = vsel %vm714, %v231, %v361
  %v719 = vsel %vm714, %v234, %v364
  %v720 = vsel %vm714, %v237, %v367
  %v721 = vsel %vm714, %v240, %v370
  %v722 = vsel %vm714, %v243, %v373
  %v723 = vsel %vm714, %v246, %v376
  %v724 = vsel %vm714, %v249, %v379
  %v725 = vsel %vm714, %v252, %v382
  %v726 = vsel %vm714, %v255, %v385
  %v727 = vsel %vm714, %v258, %v388
  %vm728 = vcmask 15360
  %v729 = vsel %vm728, %v715, %v482
  %v730 = vsel %vm728, %v716, %v485
  %v731 = vsel %vm728, %v717, %v488
  %v732 = vsel %vm728, %v718, %v491
  %v733 = vsel %vm728, %v719, %v494
  %v734 = vsel %vm728, %v720, %v497
  %v735 = vsel %vm728, %v721, %v500
  %v736 = vsel %vm728, %v722, %v503
  %v737 = vsel %vm728, %v723, %v506
  %v738 = vsel %vm728, %v724, %v509
  %v739 = vsel %vm728, %v725, %v512
  %v740 = vsel %vm728, %v726, %v515
  %v741 = vsel %vm728, %v727, %v518
  %vm742 = vcmask 23552
  %v743 = vsel %vm742, %v729, %v612
  %v744 = vsel %vm742, %v730, %v615
  %v745 = vsel %vm742, %v731, %v618
  %v746 = vsel %vm742, %v732, %v621
  %v747 = vsel %vm742, %v733, %v624
  %v748 = vsel %vm742, %v734, %v627
  %v749 = vsel %vm742, %v735, %v630
  %v750 = vsel %vm742, %v736, %v633
  %v751 = vsel %vm742, %v737, %v636
  %v752 = vsel %vm742, %v738, %v639
  %v753 = vsel %vm742, %v739, %v642
  %v754 = vsel %vm742, %v740, %v645
  %v755 = vsel %vm742, %v741, %v648
  %vm756 = vcmask 31744
  %v757 = vsel %vm756, %v743, %v287
  %v758 = vsel %vm756, %v744, %v290
  %v759 = vsel %vm756, %v745, %v293
  %v760 = vsel %vm756, %v746, %v296
  %v761 = vsel %vm756, %v747, %v299
  %v762 = vsel %vm756, %v748, %v302
  %v763 = vsel %vm756, %v749, %v305
  %v764 = vsel %vm756, %v750, %v308
  %v765 = vsel %vm756, %v751, %v311
  %v766 = vsel %vm756, %v752, %v314
  %v767 = vsel %vm756, %v753, %v317
  %v768 = vsel %vm756, %v754, %v320
  %v769 = vsel %vm756, %v755, %v323
  %vm770 = vcmask 39936
  %v771 = vsel %vm770, %v757, %v417
  %v772 = vsel %vm770, %v758, %v420
  %v773 = vsel %vm770, %v759, %v423
  %v774 = vsel %vm770, %v760, %v426
  %v775 = vsel %vm770, %v761, %v429
  %v776 = vsel %vm770, %v762, %v432
  %v777 = vsel %vm770, %v763, %v435
  %v778 = vsel %vm770, %v764, %v438
  %v779 = vsel %vm770, %v765, %v441
  %v780 = vsel %vm770, %v766, %v444
  %v781 = vsel %vm770, %v767, %v447
  %v782 = vsel %vm770, %v768, %v450
  %v783 = vsel %vm770, %v769, %v453
  %vm784 = vcmask 48128
  %v785 = vsel %vm784, %v771, %v547
  %v786 = vsel %vm784, %v772, %v550
  %v787 = vsel %vm784, %v773, %v553
  %v788 = vsel %vm784, %v774, %v556
  %v789 = vsel %vm784, %v775, %v559
  %v790 = vsel %vm784, %v776, %v562
  %v791 = vsel %vm784, %v777, %v565
  %v792 = vsel %vm784, %v778, %v568
  %v793 = vsel %vm784, %v779, %v571
  %v794 = vsel %vm784, %v780, %v574
  %v795 = vsel %vm784, %v781, %v577
  %v796 = vsel %vm784, %v782, %v580
  %v797 = vsel %vm784, %v783, %v583
  %vm798 = vcmask 56320
  %v799 = vsel %vm798, %v785, %v677
  %v800 = vsel %vm798, %v786, %v680
  %v801 = vsel %vm798, %v787, %v683
  %v802 = vsel %vm798, %v788, %v686
  %v803 = vsel %vm798, %v789, %v689
  %v804 = vsel %vm798, %v790, %v692
  %v805 = vsel %vm798, %v791, %v695
  %v806 = vsel %vm798, %v792, %v698
  %v807 = vsel %vm798, %v793, %v701
  %v808 = vsel %vm798, %v794, %v704
  %v809 = vsel %vm798, %v795, %v707
  %v810 = vsel %vm798, %v796, %v710
  %v811 = vsel %vm798, %v797, %v713
  %v812 = vsel %vm34, %v799, %v141
  %v813 = vsel %vm34, %v800, %v146
  %v814 = vsel %vm34, %v801, %v151
  %v815 = vsel %vm34, %v802, %v156
  %v816 = vsel %vm34, %v803, %v161
  %v817 = vsel %vm34, %v804, %v166
  %v818 = vsel %vm34, %v805, %v171
  %v819 = vsel %vm34, %v806, %v176
  %v820 = vsel %vm34, %v807, %v181
  %v821 = vsel %vm34, %v808, %v186
  %v822 = vsel %vm34, %v809, %v191
  %v823 = vsel %vm34, %v810, %v196
  %v824 = vsel %vm34, %v811, %v201
  %vm829 = vcmask 1045504
  %v830 = vrot.slane %v815, 2
  %v831 = vrot.slane %v816, 2
  %v832 = vsel %vm829, %v830, %v831
  %v833 = vrot.slane %v817, 2
  %v834 = vsel %vm829, %v831, %v833
  %v835 = vrot.slane %v818, 2
  %v836 = vsel %vm829, %v833, %v835
  %837 = vrot.lane.b32.xlu0 %v832, 12
  %v838 = vpop.permute.xlu0 %837
  %839 = vrot.lane.b32.xlu0 %v834, 12
  %v840 = vpop.permute.xlu0 %839
  %841 = vrot.lane.b32.xlu0 %v836, 12
  %v842 = vpop.permute.xlu0 %841
  %843 = vrot.lane.b32.xlu0 %v835, 12
  %v844 = vpop.permute.xlu0 %843
  %vm852 = vcmask 1043456
  %v853 = vrot.slane %v818, 4
  %v854 = vrot.slane %v819, 4
  %v855 = vsel %vm852, %v853, %v854
  %v856 = vrot.slane %v820, 4
  %v857 = vsel %vm852, %v854, %v856
  %v858 = vrot.slane %v821, 4
  %v859 = vsel %vm852, %v856, %v858
  %860 = vrot.lane.b32.xlu0 %v855, 24
  %v861 = vpop.permute.xlu0 %860
  %862 = vrot.lane.b32.xlu0 %v857, 24
  %v863 = vpop.permute.xlu0 %862
  %864 = vrot.lane.b32.xlu0 %v859, 24
  %v865 = vpop.permute.xlu0 %864
  %866 = vrot.lane.b32.xlu0 %v858, 24
  %v867 = vpop.permute.xlu0 %866
  %vm875 = vcmask 1041408
  %v876 = vrot.slane %v821, 6
  %v877 = vrot.slane %v822, 6
  %v878 = vsel %vm875, %v876, %v877
  %v879 = vrot.slane %v823, 6
  %v880 = vsel %vm875, %v877, %v879
  %v881 = vrot.slane %v824, 6
  %v882 = vsel %vm875, %v879, %v881
  %883 = vrot.lane.b32.xlu0 %v878, 36
  %v884 = vpop.permute.xlu0 %883
  %885 = vrot.lane.b32.xlu0 %v880, 36
  %v886 = vpop.permute.xlu0 %885
  %887 = vrot.lane.b32.xlu0 %v882, 36
  %v888 = vpop.permute.xlu0 %887
  %889 = vrot.lane.b32.xlu0 %v881, 36
  %v890 = vpop.permute.xlu0 %889
  %vm895 = vcmask 97280
  %v896 = vsel %vm895, %v812, %v838
  %v897 = vsel %vm895, %v813, %v840
  %v898 = vsel %vm895, %v814, %v842
  %v899 = vsel %vm895, %v815, %v844
  %vm900 = vcmask 195584
  %v901 = vsel %vm900, %v896, %v861
  %v902 = vsel %vm900, %v897, %v863
  %v903 = vsel %vm900, %v898, %v865
  %v904 = vsel %vm900, %v899, %v867
  %vm905 = vcmask 293888
  %v906 = vsel %vm905, %v901, %v884
  %v907 = vsel %vm905, %v902, %v886
  %v908 = vsel %vm905, %v903, %v888
  %v909 = vsel %vm905, %v904, %v890
  %v910 = vld [vmem:[%s1] sm:$0xf]
  %v911 = vld [vmem:[%s1 + $0x4] sm:$0xf]
  %v912 = vld [vmem:[%s1 + $0x8] sm:$0xf]
  %v913 = vld [vmem:[%s1 + $0xc] sm:$0xf]
  %v914 = vld [vmem:[%s1 + $0x10] sm:$0xf]
  %v915 = vld [vmem:[%s1 + $0x14] sm:$0xf]
  %v916 = vpack.c.bf16 %v907, %v906
  %v917 = vpack.c.bf16 %v909, %v908
  %v918 = vld [vmem:[%s2 + $0x20] sm:$0x1]
  %v919 = vlaneseq
  %v920 = vshrl.u32 %v919, 7
  %v921 = vsub.s32 0, %v920
  %v922 = vrot.slane %v918, %v921
  %v929 = vunpack.c.l.b16 %v910
  %v930 = vunpack.c.l.b16 %v911
  %v931 = vunpack.c.l.b16 %v912
  %v932 = vunpack.c.l.b16 %v913
  %v933 = vunpack.c.l.b16 %v914
  %v934 = vunpack.c.l.b16 %v915
  %v935 = vpack.c.b16 %v930, %v929
  %v936 = vpack.c.b16 %v932, %v931
  %v937 = vpack.c.b16 %v934, %v933
  %vm941 = vcmask 392192
  %v943 = vsel %vm941, %v916, 0
  %v946 = vsel %vm941, %v917, 0
  %948 = vmatprep.subr.bf16.mxu0 0
  %949 = vmatpush1.bf16.msra.mxu0 %v935
  %950 = vmatprep.subr.bf16.mxu0 0
  %951 = vmatpush1.bf16.msra.mxu0 %v936
  %952 = vmatprep.subr.bf16.mxu0 0
  %953 = vmatpush1.bf16.msra.mxu0 %v937
  %954 = vmatprep.subr.bf16.mxu0 0
  %955 = vmatpush1.bf16.msra.mxu0 0
  %956 = vmatprep.subr.bf16.mxu0 0
  %957 = vmatpush1.bf16.msra.mxu0 0
  %958 = vmatprep.subr.bf16.mxu0 0
  %959 = vmatpush1.bf16.msra.mxu0 0
  %960 = vmatprep.subr.bf16.mxu0 0
  %961 = vmatpush1.bf16.msra.mxu0 0
  %962 = vmatprep.subr.bf16.mxu0 0
  %963 = vmatpush1.bf16.msra.mxu0 0
  %964 = vmatprep.subr.bf16.mxu0 0
  %965 = vmatpush1.bf16.msra.mxu0 0
  %966 = vmatprep.subr.bf16.mxu0 0
  %967 = vmatpush1.bf16.msra.mxu0 0
  %968 = vmatprep.subr.bf16.mxu0 0
  %969 = vmatpush1.bf16.msra.mxu0 0
  %970 = vmatprep.subr.bf16.mxu0 0
  %971 = vmatpush1.bf16.msra.mxu0 0
  %972 = vmatprep.subr.bf16.mxu0 0
  %973 = vmatpush1.bf16.msra.mxu0 0
  %974 = vmatprep.subr.bf16.mxu0 0
  %975 = vmatpush1.bf16.msra.mxu0 0
  %976 = vmatprep.subr.bf16.mxu0 0
  %977 = vmatpush1.bf16.msra.mxu0 0
  %978 = vmatprep.subr.bf16.mxu0 0
  %979 = vmatpush1.bf16.msra.mxu0 0
  %980 = vmatprep.mubr.bf16.mxu0 0
  %981 = vmatmul.mubr.bf16.gmra.mrb[0].mxu0 %v943
  %v982 = vpop.f32.mrb[0].mxu0
  %v983 = vadd.f32 %v922, %v982
  %v984 = vpop.f32.mrb[0].mxu0
  %v985 = vpop.f32.mrb[0].mxu0
  %v986 = vadd.f32 %v922, %v985
  %v987 = vpop.f32.mrb[0].mxu0
  %988 = vmatprep.mubr.bf16.mxu0 0
  %989 = vmatmul.mubr.bf16.gmra.mrb[0].mxu0 %v946
  %v990 = vpop.f32.mrb[0].mxu0
  %v991 = vadd.f32 %v922, %v990
  %v992 = vpop.f32.mrb[0].mxu0
  %v993 = vpop.f32.mrb[0].mxu0
  %v994 = vadd.f32 %v922, %v993
  %v995 = vpop.f32.mrb[0].mxu0
  %996 = vdwg.mxu0
  %v997 = vmax.f32 %v983, 0.0
  %v998 = vmax.f32 %v986, 0.0
  %v999 = vmax.f32 %v991, 0.0
  %v1000 = vmax.f32 %v994, 0.0
  %v1001 = vld [vmem:[%s1 + $0x18] sm:$0xf]
  %v1002 = vld [vmem:[%s1 + $0x1c] sm:$0xf]
  %v1003 = vld [vmem:[%s1 + $0x20] sm:$0xf]
  %v1004 = vld [vmem:[%s1 + $0x24] sm:$0xf]
  %v1005 = vld [vmem:[%s1 + $0x28] sm:$0xf]
  %v1006 = vld [vmem:[%s1 + $0x2c] sm:$0xf]
  %v1007 = vld [vmem:[%s1 + $0x30] sm:$0xf]
  %v1008 = vld [vmem:[%s1 + $0x34] sm:$0xf]
  %v1009 = vld [vmem:[%s1 + $0x38] sm:$0xf]
  %v1010 = vld [vmem:[%s1 + $0x3c] sm:$0xf]
  %v1011 = vld [vmem:[%s1 + $0x40] sm:$0xf]
  %v1012 = vld [vmem:[%s1 + $0x44] sm:$0xf]
  %v1013 = vld [vmem:[%s2 + $0x30] sm:$0x1]
  %vm1016 = vcmask 1040384
  %v1017 = vrot.slane %v997, 7
  %v1018 = vrot.slane %v998, 7
  %v1019 = vsel %vm1016, %v1017, %v1018
  %v1024 = vrot.slane %v999, 7
  %v1025 = vsel %vm1016, %v1018, %v1024
  %v1026 = vrot.slane %v1000, 7
  %v1027 = vsel %vm1016, %v1024, %v1026
  %v1031 = vsel %vm1016, 0.0, %v1017
  %vm1032 = vcmask 1044480
  %v1033 = vsel %vm1032, %v1019, 0.0
  %v1034 = vsel %vm829, %v1033, %v1018
  %vm1035 = vcmask 1046528
  %v1036 = vrot.slane %v997, 1
  %v1037 = vrot.slane %v998, 1
  %v1038 = vsel %vm1035, %v1036, %v1037
  %v1040 = vrot.slane %v999, 1
  %v1041 = vsel %vm1035, %v1037, %v1040
  %v1042 = vrot.slane %v1000, 1
  %v1043 = vsel %vm1035, %v1040, %v1042
  %v1046 = vsel %vm852, %v1037, 0.0
  %v1047 = vsel %vm1032, %v1046, %v1041
  %v1048 = vsel %vm1016, %v1042, 0.0
  %1049 = vrot.lane.b32.xlu0 %v997, 32
  %v1050 = vpop.permute.xlu0 %1049
  %1051 = vrot.lane.b32.xlu0 %v998, 32
  %v1052 = vpop.permute.xlu0 %1051
  %1053 = vrot.lane.b32.xlu0 %v999, 32
  %v1054 = vpop.permute.xlu0 %1053
  %1055 = vrot.lane.b32.xlu0 %v1000, 32
  %v1056 = vpop.permute.xlu0 %1055
  %1063 = vrot.lane.b32.xlu0 %v1038, 64
  %v1064 = vpop.permute.xlu0 %1063
  %1065 = vrot.lane.b32.xlu0 %v1047, 64
  %v1066 = vpop.permute.xlu0 %1065
  %1067 = vrot.lane.b32.xlu0 %v1043, 64
  %v1068 = vpop.permute.xlu0 %1067
  %1069 = vrot.lane.b32.xlu0 %v1048, 64
  %v1070 = vpop.permute.xlu0 %1069
  %vm1075 = vcmask 261120
  %v1076 = vsel %vm1075, %v1031, %v1050
  %v1077 = vsel %vm1075, %v1034, %v1052
  %v1078 = vsel %vm1075, %v1025, %v1054
  %v1079 = vsel %vm1075, %v1027, %v1056
  %vm1080 = vcmask 523264
  %v1081 = vsel %vm1080, %v1076, %v1064
  %v1082 = vsel %vm1080, %v1077, %v1066
  %v1083 = vsel %vm1080, %v1078, %v1068
  %v1084 = vsel %vm1080, %v1079, %v1070
  %v1085 = vpack.c.bf16 %v1082, %v1081
  %v1086 = vpack.c.bf16 %v1084, %v1083
  %v1087 = vlaneseq
  %v1088 = vshrl.u32 %v1087, 7
  %v1089 = vsub.s32 0, %v1088
  %v1090 = vrot.slane %v1013, %v1089
  %v1103 = vunpack.c.l.b16 %v1001
  %v1104 = vunpack.c.l.b16 %v1002
  %v1105 = vunpack.c.l.b16 %v1003
  %v1106 = vunpack.c.l.b16 %v1004
  %v1107 = vunpack.c.l.b16 %v1005
  %v1108 = vunpack.c.l.b16 %v1006
  %v1109 = vunpack.c.l.b16 %v1007
  %v1110 = vunpack.c.l.b16 %v1008
  %v1111 = vunpack.c.l.b16 %v1009
  %v1112 = vunpack.c.l.b16 %v1010
  %v1113 = vunpack.c.l.b16 %v1011
  %v1114 = vunpack.c.l.b16 %v1012
  %v1115 = vpack.c.b16 %v1104, %v1103
  %v1116 = vpack.c.b16 %v1106, %v1105
  %v1117 = vpack.c.b16 %v1108, %v1107
  %v1118 = vpack.c.b16 %v1110, %v1109
  %v1119 = vpack.c.b16 %v1112, %v1111
  %v1120 = vpack.c.b16 %v1114, %v1113
  %vm1127 = vcmask 785408
  %v1129 = vsel %vm1127, %v1085, 0
  %v1132 = vsel %vm1127, %v1086, 0
  %1134 = vmatprep.subr.bf16.mxu0 0
  %1135 = vmatpush1.bf16.msra.mxu0 %v1115
  %1136 = vmatprep.subr.bf16.mxu0 0
  %1137 = vmatpush1.bf16.msra.mxu0 %v1116
  %1138 = vmatprep.subr.bf16.mxu0 0
  %1139 = vmatpush1.bf16.msra.mxu0 %v1117
  %1140 = vmatprep.subr.bf16.mxu0 0
  %1141 = vmatpush1.bf16.msra.mxu0 %v1118
  %1142 = vmatprep.subr.bf16.mxu0 0
  %1143 = vmatpush1.bf16.msra.mxu0 %v1119
  %1144 = vmatprep.subr.bf16.mxu0 0
  %1145 = vmatpush1.bf16.msra.mxu0 %v1120
  %1146 = vmatprep.subr.bf16.mxu0 0
  %1147 = vmatpush1.bf16.msra.mxu0 0
  %1148 = vmatprep.subr.bf16.mxu0 0
  %1149 = vmatpush1.bf16.msra.mxu0 0
  %1150 = vmatprep.subr.bf16.mxu0 0
  %1151 = vmatpush1.bf16.msra.mxu0 0
  %1152 = vmatprep.subr.bf16.mxu0 0
  %1153 = vmatpush1.bf16.msra.mxu0 0
  %1154 = vmatprep.subr.bf16.mxu0 0
  %1155 = vmatpush1.bf16.msra.mxu0 0
  %1156 = vmatprep.subr.bf16.mxu0 0
  %1157 = vmatpush1.bf16.msra.mxu0 0
  %1158 = vmatprep.subr.bf16.mxu0 0
  %1159 = vmatpush1.bf16.msra.mxu0 0
  %1160 = vmatprep.subr.bf16.mxu0 0
  %1161 = vmatpush1.bf16.msra.mxu0 0
  %1162 = vmatprep.subr.bf16.mxu0 0
  %1163 = vmatpush1.bf16.msra.mxu0 0
  %1164 = vmatprep.subr.bf16.mxu0 0
  %1165 = vmatpush1.bf16.msra.mxu0 0
  %1166 = vmatprep.mubr.bf16.mxu0 0
  %1167 = vmatmul.mubr.bf16.gmra.mrb[0].mxu0 %v1129
  %v1168 = vpop.f32.mrb[0].mxu0
  %v1169 = vadd.f32 %v1090, %v1168
  %v1170 = vpop.f32.mrb[0].mxu0
  %v1171 = vpop.f32.mrb[0].mxu0
  %v1172 = vadd.f32 %v1090, %v1171
  %v1173 = vpop.f32.mrb[0].mxu0
  %1174 = vmatprep.mubr.bf16.mxu0 0
  %1175 = vmatmul.mubr.bf16.gmra.mrb[0].mxu0 %v1132
  %v1176 = vpop.f32.mrb[0].mxu0
  %v1177 = vadd.f32 %v1090, %v1176
  %v1178 = vpop.f32.mrb[0].mxu0
  %v1179 = vpop.f32.mrb[0].mxu0
  %v1180 = vadd.f32 %v1090, %v1179
  %v1181 = vpop.f32.mrb[0].mxu0
  %1182 = vdwg.mxu0
  %v1183 = vmax.f32 %v1169, 0.0
  %v1184 = vmax.f32 %v1172, 0.0
  %v1185 = vmax.f32 %v1177, 0.0
  %v1186 = vmax.f32 %v1180, 0.0
  %v1187 = vld [vmem:[%s1 + $0x48] sm:$0xf]
  %v1188 = vld [vmem:[%s1 + $0x4c] sm:$0xf]
  %v1189 = vld [vmem:[%s1 + $0x50] sm:$0xf]
  %v1190 = vld [vmem:[%s1 + $0x54] sm:$0xf]
  %v1191 = vld [vmem:[%s1 + $0x58] sm:$0xf]
  %v1192 = vld [vmem:[%s1 + $0x5c] sm:$0xf]
  %v1193 = vld [vmem:[%s1 + $0x60] sm:$0xf]
  %v1194 = vld [vmem:[%s1 + $0x64] sm:$0xf]
  %v1195 = vld [vmem:[%s1 + $0x68] sm:$0xf]
  %v1196 = vld [vmem:[%s1 + $0x6c] sm:$0xf]
  %v1197 = vld [vmem:[%s1 + $0x70] sm:$0xf]
  %v1198 = vld [vmem:[%s1 + $0x74] sm:$0xf]
  %v1199 = vld [vmem:[%s1 + $0x78] sm:$0xf]
  %v1200 = vld [vmem:[%s1 + $0x7c] sm:$0xf]
  %v1201 = vld [vmem:[%s1 + $0x80] sm:$0xf]
  %v1202 = vld [vmem:[%s1 + $0x84] sm:$0xf]
  %v1203 = vld [vmem:[%s1 + $0x88] sm:$0xf]
  %v1204 = vld [vmem:[%s1 + $0x8c] sm:$0xf]
  %v1205 = vld [vmem:[%s1 + $0x90] sm:$0xf]
  %v1206 = vld [vmem:[%s1 + $0x94] sm:$0xf]
  %v1207 = vld [vmem:[%s1 + $0x98] sm:$0xf]
  %v1208 = vld [vmem:[%s1 + $0x9c] sm:$0xf]
  %v1209 = vld [vmem:[%s1 + $0xa0] sm:$0xf]
  %v1210 = vld [vmem:[%s1 + $0xa4] sm:$0xf]
  %v1211 = vld [vmem:[%s2 + $0x40] sm:$0x1]
  %v1214 = vrot.slane %v1183, 7
  %v1215 = vrot.slane %v1184, 7
  %v1216 = vsel %vm1016, %v1214, %v1215
  %v1221 = vrot.slane %v1185, 7
  %v1222 = vsel %vm1016, %v1215, %v1221
  %v1223 = vrot.slane %v1186, 7
  %v1224 = vsel %vm1016, %v1221, %v1223
  %v1228 = vsel %vm1016, 0.0, %v1214
  %v1229 = vsel %vm1032, %v1216, 0.0
  %v1230 = vsel %vm829, %v1229, %v1215
  %v1231 = vrot.slane %v1183, 1
  %v1232 = vrot.slane %v1184, 1
  %v1233 = vsel %vm1035, %v1231, %v1232
  %v1236 = vrot.slane %v1185, 1
  %v1237 = vsel %vm1035, %v1232, %v1236
  %v1238 = vrot.slane %v1186, 1
  %v1239 = vsel %vm1035, %v1236, %v1238
  %v1243 = vsel %vm852, %v1232, 0.0
  %v1244 = vsel %vm1032, %v1243, %v1237
  %v1245 = vsel %vm1016, %v1238, 0.0
  %1246 = vrot.lane.b32.xlu0 %v1183, 64
  %v1247 = vpop.permute.xlu0 %1246
  %1248 = vrot.lane.b32.xlu0 %v1184, 64
  %v1249 = vpop.permute.xlu0 %1248
  %1250 = vrot.lane.b32.xlu0 %v1185, 64
  %v1251 = vpop.permute.xlu0 %1250
  %1252 = vrot.lane.b32.xlu0 %v1186, 64
  %v1253 = vpop.permute.xlu0 %1252
  %v1258 = vsel %vm1080, %v1228, %v1247
  %v1259 = vsel %vm1080, %v1230, %v1249
  %v1260 = vsel %vm1080, %v1222, %v1251
  %v1261 = vsel %vm1080, %v1224, %v1253
  %v1262 = vpack.c.bf16 %v1259, %v1258
  %v1263 = vpack.c.bf16 %v1244, %v1233
  %v1264 = vpack.c.bf16 %v1261, %v1260
  %v1265 = vpack.c.bf16 %v1245, %v1239
  %v1266 = vlaneseq
  %v1267 = vshrl.u32 %v1266, 7
  %v1268 = vsub.s32 0, %v1267
  %v1269 = vrot.slane %v1211, %v1268
  %v1294 = vunpack.c.l.b16 %v1187
  %v1295 = vunpack.c.l.b16 %v1188
  %v1296 = vunpack.c.l.b16 %v1189
  %v1297 = vunpack.c.l.b16 %v1190
  %v1298 = vunpack.c.l.b16 %v1191
  %v1299 = vunpack.c.l.b16 %v1192
  %v1300 = vunpack.c.l.b16 %v1193
  %v1301 = vunpack.c.l.b16 %v1194
  %v1302 = vunpack.c.l.b16 %v1195
  %v1303 = vunpack.c.l.b16 %v1196
  %v1304 = vunpack.c.l.b16 %v1197
  %v1305 = vunpack.c.l.b16 %v1198
  %v1306 = vunpack.c.l.b16 %v1199
  %v1307 = vunpack.c.l.b16 %v1200
  %v1308 = vunpack.c.l.b16 %v1201
  %v1309 = vunpack.c.l.b16 %v1202
  %v1310 = vunpack.c.l.b16 %v1203
  %v1311 = vunpack.c.l.b16 %v1204
  %v1312 = vunpack.c.l.b16 %v1205
  %v1313 = vunpack.c.l.b16 %v1206
  %v1314 = vunpack.c.l.b16 %v1207
  %v1315 = vunpack.c.l.b16 %v1208
  %v1316 = vunpack.c.l.b16 %v1209
  %v1317 = vunpack.c.l.b16 %v1210
  %v1318 = vpack.c.b16 %v1295, %v1294
  %v1319 = vpack.c.b16 %v1297, %v1296
  %v1320 = vpack.c.b16 %v1299, %v1298
  %v1321 = vpack.c.b16 %v1301, %v1300
  %v1322 = vpack.c.b16 %v1303, %v1302
  %v1323 = vpack.c.b16 %v1305, %v1304
  %v1324 = vpack.c.b16 %v1307, %v1306
  %v1325 = vpack.c.b16 %v1309, %v1308
  %v1326 = vpack.c.b16 %v1311, %v1310
  %v1327 = vpack.c.b16 %v1313, %v1312
  %v1328 = vpack.c.b16 %v1315, %v1314
  %v1329 = vpack.c.b16 %v1317, %v1316
  %v1343 = vsel %vm1080, %v1263, 0
  %v1346 = vsel %vm1080, %v1265, 0
  %1348 = vmatprep.subr.bf16.mxu0 0
  %1349 = vmatpush1.bf16.msra.mxu0 %v1318
  %1350 = vmatprep.subr.bf16.mxu0 0
  %1351 = vmatpush1.bf16.msra.mxu0 %v1319
  %1352 = vmatprep.subr.bf16.mxu0 0
  %1353 = vmatpush1.bf16.msra.mxu0 %v1320
  %1354 = vmatprep.subr.bf16.mxu0 0
  %1355 = vmatpush1.bf16.msra.mxu0 %v1321
  %1356 = vmatprep.subr.bf16.mxu0 0
  %1357 = vmatpush1.bf16.msra.mxu0 %v1322
  %1358 = vmatprep.subr.bf16.mxu0 0
  %1359 = vmatpush1.bf16.msra.mxu0 %v1323
  %1360 = vmatprep.subr.bf16.mxu0 0
  %1361 = vmatpush1.bf16.msra.mxu0 %v1324
  %1362 = vmatprep.subr.bf16.mxu0 0
  %1363 = vmatpush1.bf16.msra.mxu0 %v1325
  %1364 = vmatprep.subr.bf16.mxu0 0
  %1365 = vmatpush1.bf16.msra.mxu0 %v1326
  %1366 = vmatprep.subr.bf16.mxu0 0
  %1367 = vmatpush1.bf16.msra.mxu0 %v1327
  %1368 = vmatprep.subr.bf16.mxu0 0
  %1369 = vmatpush1.bf16.msra.mxu0 %v1328
  %1370 = vmatprep.subr.bf16.mxu0 0
  %1371 = vmatpush1.bf16.msra.mxu0 %v1329
  %1372 = vmatprep.subr.bf16.mxu0 0
  %1373 = vmatpush1.bf16.msra.mxu0 0
  %1374 = vmatprep.subr.bf16.mxu0 0
  %1375 = vmatpush1.bf16.msra.mxu0 0
  %1376 = vmatprep.subr.bf16.mxu0 0
  %1377 = vmatpush1.bf16.msra.mxu0 0
  %1378 = vmatprep.subr.bf16.mxu0 0
  %1379 = vmatpush1.bf16.msra.mxu0 0
  %1380 = vmatprep.mubr.bf16.mxu0 %v1343
  %1381 = vmatmul.mubr.bf16.gmra.mrb[0].mxu0 %v1262
  %v1382 = vpop.f32.mrb[0].mxu0
  %v1383 = vadd.f32 %v1269, %v1382
  %v1384 = vpop.f32.mrb[0].mxu0
  %v1385 = vpop.f32.mrb[0].mxu0
  %v1386 = vadd.f32 %v1269, %v1385
  %v1387 = vpop.f32.mrb[0].mxu0
  %1388 = vmatprep.mubr.bf16.mxu0 %v1346
  %1389 = vmatmul.mubr.bf16.gmra.mrb[0].mxu0 %v1264
  %v1390 = vpop.f32.mrb[0].mxu0
  %v1391 = vadd.f32 %v1269, %v1390
  %v1392 = vpop.f32.mrb[0].mxu0
  %v1393 = vpop.f32.mrb[0].mxu0
  %v1394 = vadd.f32 %v1269, %v1393
  %v1395 = vpop.f32.mrb[0].mxu0
  %1396 = vdwg.mxu0
  %v1397 = vadd.f32 %v1383, %v997
  %v1398 = vadd.f32 %v1386, %v998
  %v1399 = vadd.f32 %v1391, %v999
  %v1400 = vadd.f32 %v1394, %v1000
  %v1401 = vmax.f32 %v1397, 0.0
  %v1402 = vmax.f32 %v1398, 0.0
  %v1403 = vmax.f32 %v1399, 0.0
  %v1404 = vmax.f32 %v1400, 0.0
  %v1405 = vld [vmem:[%s1 + $0xa8] sm:$0xf]
  %v1406 = vld [vmem:[%s1 + $0xac] sm:$0xf]
  %v1407 = vld [vmem:[%s1 + $0xb0] sm:$0xf]
  %v1408 = vld [vmem:[%s1 + $0xb4] sm:$0xf]
  %v1409 = vpack.c.bf16 %v1402, %v1401
  %v1410 = vpack.c.bf16 %v1404, %v1403
  %v1411 = vld [vmem:[%s2 + $0x50] sm:$0x1]
  %v1412 = vlaneseq
  %v1413 = vshrl.u32 %v1412, 7
  %v1414 = vsub.s32 0, %v1413
  %v1415 = vrot.slane %v1411, %v1414
  %v1420 = vunpack.c.l.b16 %v1405
  %v1421 = vunpack.c.l.b16 %v1406
  %v1422 = vunpack.c.l.b16 %v1407
  %v1423 = vunpack.c.l.b16 %v1408
  %v1424 = vpack.c.b16 %v1421, %v1420
  %v1425 = vpack.c.b16 %v1423, %v1422
  %v1429 = vsel %vm1075, %v1409, 0
  %v1432 = vsel %vm1075, %v1410, 0
  %1434 = vmatprep.subr.bf16.mxu0 0
  %1435 = vmatpush1.bf16.msra.mxu0 %v1424
  %1436 = vmatprep.subr.bf16.mxu0 0
  %1437 = vmatpush1.bf16.msra.mxu0 %v1425
  %1438 = vmatprep.subr.bf16.mxu0 0
  %1439 = vmatpush1.bf16.msra.mxu0 0
  %1440 = vmatprep.subr.bf16.mxu0 0
  %1441 = vmatpush1.bf16.msra.mxu0 0
  %1442 = vmatprep.subr.bf16.mxu0 0
  %1443 = vmatpush1.bf16.msra.mxu0 0
  %1444 = vmatprep.subr.bf16.mxu0 0
  %1445 = vmatpush1.bf16.msra.mxu0 0
  %1446 = vmatprep.subr.bf16.mxu0 0
  %1447 = vmatpush1.bf16.msra.mxu0 0
  %1448 = vmatprep.subr.bf16.mxu0 0
  %1449 = vmatpush1.bf16.msra.mxu0 0
  %1450 = vmatprep.subr.bf16.mxu0 0
  %1451 = vmatpush1.bf16.msra.mxu0 0
  %1452 = vmatprep.subr.bf16.mxu0 0
  %1453 = vmatpush1.bf16.msra.mxu0 0
  %1454 = vmatprep.subr.bf16.mxu0 0
  %1455 = vmatpush1.bf16.msra.mxu0 0
  %1456 = vmatprep.subr.bf16.mxu0 0
  %1457 = vmatpush1.bf16.msra.mxu0 0
  %1458 = vmatprep.subr.bf16.mxu0 0
  %1459 = vmatpush1.bf16.msra.mxu0 0
  %1460 = vmatprep.subr.bf16.mxu0 0
  %1461 = vmatpush1.bf16.msra.mxu0 0
  %1462 = vmatprep.subr.bf16.mxu0 0
  %1463 = vmatpush1.bf16.msra.mxu0 0
  %1464 = vmatprep.subr.bf16.mxu0 0
  %1465 = vmatpush1.bf16.msra.mxu0 0
  %1466 = vmatprep.mubr.bf16.mxu0 0
  %1467 = vmatmul.mubr.bf16.gmra.mrb[0].mxu0 %v1429
  %v1468 = vpop.f32.mrb[0].mxu0
  %v1469 = vadd.f32 %v1415, %v1468
  %v1470 = vpop.f32.mrb[0].mxu0
  %v1471 = vpop.f32.mrb[0].mxu0
  %v1472 = vadd.f32 %v1415, %v1471
  %v1473 = vpop.f32.mrb[0].mxu0
  %1474 = vmatprep.mubr.bf16.mxu0 0
  %1475 = vmatmul.mubr.bf16.gmra.mrb[0].mxu0 %v1432
  %v1476 = vpop.f32.mrb[0].mxu0
  %v1477 = vadd.f32 %v1415, %v1476
  %v1478 = vpop.f32.mrb[0].mxu0
  %v1479 = vpop.f32.mrb[0].mxu0
  %v1480 = vadd.f32 %v1415, %v1479
  %v1481 = vpop.f32.mrb[0].mxu0
  %1482 = vdwg.mxu0
  %v1484 = vrot.slane %v1469, 1
  %v1486 = vadd.f32 %v1469, %v1484
  %v1488 = vrot.slane %v1472, 1
  %v1490 = vadd.f32 %v1472, %v1488
  %v1492 = vrot.slane %v1477, 1
  %v1494 = vadd.f32 %v1472, %v1492
  %v1495 = vadd.f32 %v1477, %v1492
  %v1497 = vrot.slane %v1480, 1
  %v1499 = vadd.f32 %v1477, %v1497
  %v1501 = vrot.slane %v1486, 1
  %v1503 = vrot.slane %v1486, 2
  %v1505 = vrot.slane %v1486, 3
  %v1508 = vrot.slane %v1490, 4
  %v1510 = vrot.slane %v1490, 5
  %v1512 = vrot.slane %v1490, 7
  %v1515 = vrot.slane %v1495, 1
  %v1517 = vrot.slane %v1495, 2
  %v1519 = vrot.slane %v1495, 3
  %v1522 = vrot.slane %v1499, 4
  %v1524 = vsel %vm1016, %v1486, %v1501
  %v1525 = vsel %vm875, %v1524, %v1503
  %vm1526 = vcmask 1042432
  %v1527 = vsel %vm1526, %v1525, %v1505
  %v1528 = vsel %vm852, %v1527, %v1508
  %v1529 = vsel %vm1032, %v1528, %v1510
  %v1530 = vsel %vm829, %v1529, %v1512
  %v1531 = vsel %vm1035, %v1530, %v1494
  %v1532 = vsel %vm1016, %v1515, %v1517
  %v1533 = vsel %vm875, %v1532, %v1519
  %v1534 = vsel %vm1526, %v1533, %v1522
  %v1535 = vmul.f32 %v1531, 0.5
  %v1536 = vmul.f32 %v1534, 0.5
  %v1537 = vld [vmem:[%s1 + $0xb8] sm:$0xf]
  %v1538 = vld [vmem:[%s1 + $0xbc] sm:$0xf]
  %v1539 = vld [vmem:[%s1 + $0xc0] sm:$0xf]
  %v1540 = vld [vmem:[%s1 + $0xc4] sm:$0xf]
  %v1541 = vld [vmem:[%s1 + $0xc8] sm:$0xf]
  %v1542 = vld [vmem:[%s1 + $0xcc] sm:$0xf]
  %v1543 = vld [vmem:[%s1 + $0xd0] sm:$0xf]
  %v1544 = vld [vmem:[%s1 + $0xd4] sm:$0xf]
  %v1545 = vld [vmem:[%s1 + $0xd8] sm:$0xf]
  %v1546 = vld [vmem:[%s1 + $0xdc] sm:$0xf]
  %v1547 = vld [vmem:[%s1 + $0xe0] sm:$0xf]
  %v1548 = vld [vmem:[%s1 + $0xe4] sm:$0xf]
  %v1549 = vld [vmem:[%s1 + $0xe8] sm:$0xf]
  %v1550 = vld [vmem:[%s1 + $0xec] sm:$0xf]
  %v1551 = vld [vmem:[%s1 + $0xf0] sm:$0xf]
  %v1552 = vld [vmem:[%s1 + $0xf4] sm:$0xf]
  %v1553 = vld [vmem:[%s1 + $0xf8] sm:$0xf]
  %v1554 = vld [vmem:[%s1 + $0xfc] sm:$0xf]
  %v1555 = vld [vmem:[%s1 + $0x100] sm:$0xf]
  %v1556 = vld [vmem:[%s1 + $0x104] sm:$0xf]
  %v1557 = vld [vmem:[%s1 + $0x108] sm:$0xf]
  %v1558 = vld [vmem:[%s1 + $0x10c] sm:$0xf]
  %v1559 = vld [vmem:[%s1 + $0x110] sm:$0xf]
  %v1560 = vld [vmem:[%s1 + $0x114] sm:$0xf]
  %v1561 = vld [vmem:[%s2 + $0x60] sm:$0x1]
  %v1563 = vrot.slane %v1535, 7
  %v1566 = vrot.slane %v1536, 7
  %v1567 = vsel %vm1016, %v1563, %v1566
  %v1569 = vsel %vm1016, 0.0, %v1563
  %v1570 = vsel %vm829, %v1569, 0.0
  %v1571 = vsel %vm1035, %v1570, %v1563
  %v1572 = vrot.slane %v1535, 1
  %v1574 = vrot.slane %v1536, 1
  %v1575 = vsel %vm1035, %v1572, %v1574
  %v1578 = vsel %vm1032, %v1572, 0.0
  %v1579 = vsel %vm829, %v1578, %v1575
  %v1580 = vsel %vm1526, %v1574, 0.0
  %1581 = vrot.lane.b32.xlu0 %v1535, 64
  %v1582 = vpop.permute.xlu0 %1581
  %1583 = vrot.lane.b32.xlu0 %v1536, 64
  %v1584 = vpop.permute.xlu0 %1583
  %v1587 = vsel %vm1080, %v1571, %v1582
  %v1588 = vsel %vm1080, %v1567, %v1584
  %v1589 = vpack.c.bf16 %v1588, %v1587
  %v1590 = vpack.c.bf16 %v1580, %v1579
  %v1591 = vlaneseq
  %v1592 = vshrl.u32 %v1591, 7
  %v1593 = vsub.s32 0, %v1592
  %v1594 = vrot.slane %v1561, %v1593
  %v1619 = vunpack.c.l.b16 %v1537
  %v1620 = vunpack.c.l.b16 %v1538
  %v1621 = vunpack.c.l.b16 %v1539
  %v1622 = vunpack.c.l.b16 %v1540
  %v1623 = vunpack.c.l.b16 %v1541
  %v1624 = vunpack.c.l.b16 %v1542
  %v1625 = vunpack.c.l.b16 %v1543
  %v1626 = vunpack.c.l.b16 %v1544
  %v1627 = vunpack.c.l.b16 %v1545
  %v1628 = vunpack.c.l.b16 %v1546
  %v1629 = vunpack.c.l.b16 %v1547
  %v1630 = vunpack.c.l.b16 %v1548
  %v1631 = vunpack.c.l.b16 %v1549
  %v1632 = vunpack.c.l.b16 %v1550
  %v1633 = vunpack.c.l.b16 %v1551
  %v1634 = vunpack.c.l.b16 %v1552
  %v1635 = vunpack.c.l.b16 %v1553
  %v1636 = vunpack.c.l.b16 %v1554
  %v1637 = vunpack.c.l.b16 %v1555
  %v1638 = vunpack.c.l.b16 %v1556
  %v1639 = vunpack.c.l.b16 %v1557
  %v1640 = vunpack.c.l.b16 %v1558
  %v1641 = vunpack.c.l.b16 %v1559
  %v1642 = vunpack.c.l.b16 %v1560
  %v1643 = vpack.c.b16 %v1620, %v1619
  %v1644 = vpack.c.b16 %v1622, %v1621
  %v1645 = vpack.c.b16 %v1624, %v1623
  %v1646 = vpack.c.b16 %v1626, %v1625
  %v1647 = vpack.c.b16 %v1628, %v1627
  %v1648 = vpack.c.b16 %v1630, %v1629
  %v1649 = vpack.c.b16 %v1632, %v1631
  %v1650 = vpack.c.b16 %v1634, %v1633
  %v1651 = vpack.c.b16 %v1636, %v1635
  %v1652 = vpack.c.b16 %v1638, %v1637
  %v1653 = vpack.c.b16 %v1640, %v1639
  %v1654 = vpack.c.b16 %v1642, %v1641
  %v1668 = vsel %vm1080, %v1590, 0
  %1670 = vmatprep.subr.bf16.mxu0 0
  %1671 = vmatpush1.bf16.msra.mxu0 %v1643
  %1672 = vmatprep.subr.bf16.mxu0 0
  %1673 = vmatpush1.bf16.msra.mxu0 %v1644
  %1674 = vmatprep.subr.bf16.mxu0 0
  %1675 = vmatpush1.bf16.msra.mxu0 %v1645
  %1676 = vmatprep.subr.bf16.mxu0 0
  %1677 = vmatpush1.bf16.msra.mxu0 %v1646
  %1678 = vmatprep.subr.bf16.mxu0 0
  %1679 = vmatpush1.bf16.msra.mxu0 %v1647
  %1680 = vmatprep.subr.bf16.mxu0 0
  %1681 = vmatpush1.bf16.msra.mxu0 %v1648
  %1682 = vmatprep.subr.bf16.mxu0 0
  %1683 = vmatpush1.bf16.msra.mxu0 %v1649
  %1684 = vmatprep.subr.bf16.mxu0 0
  %1685 = vmatpush1.bf16.msra.mxu0 %v1650
  %1686 = vmatprep.subr.bf16.mxu0 0
  %1687 = vmatpush1.bf16.msra.mxu0 %v1651
  %1688 = vmatprep.subr.bf16.mxu0 0
  %1689 = vmatpush1.bf16.msra.mxu0 %v1652
  %1690 = vmatprep.subr.bf16.mxu0 0
  %1691 = vmatpush1.bf16.msra.mxu0 %v1653
  %1692 = vmatprep.subr.bf16.mxu0 0
  %1693 = vmatpush1.bf16.msra.mxu0 %v1654
  %1694 = vmatprep.subr.bf16.mxu0 0
  %1695 = vmatpush1.bf16.msra.mxu0 0
  %1696 = vmatprep.subr.bf16.mxu0 0
  %1697 = vmatpush1.bf16.msra.mxu0 0
  %1698 = vmatprep.subr.bf16.mxu0 0
  %1699 = vmatpush1.bf16.msra.mxu0 0
  %1700 = vmatprep.subr.bf16.mxu0 0
  %1701 = vmatpush1.bf16.msra.mxu0 0
  %1702 = vmatprep.mubr.bf16.mxu0 %v1668
  %1703 = vmatmul.mubr.bf16.gmra.mrb[0].mxu0 %v1589
  %v1704 = vpop.f32.mrb[0].mxu0
  %v1705 = vadd.f32 %v1594, %v1704
  %v1706 = vpop.f32.mrb[0].mxu0
  %v1707 = vpop.f32.mrb[0].mxu0
  %v1708 = vadd.f32 %v1594, %v1707
  %v1709 = vpop.f32.mrb[0].mxu0
  %1710 = vdwg.mxu0
  %v1711 = vmax.f32 %v1705, 0.0
  %v1712 = vmax.f32 %v1708, 0.0
  %v1713 = vld [vmem:[%s1 + $0x118] sm:$0xf]
  %v1714 = vld [vmem:[%s1 + $0x11c] sm:$0xf]
  %v1715 = vld [vmem:[%s1 + $0x120] sm:$0xf]
  %v1716 = vld [vmem:[%s1 + $0x124] sm:$0xf]
  %v1717 = vld [vmem:[%s1 + $0x128] sm:$0xf]
  %v1718 = vld [vmem:[%s1 + $0x12c] sm:$0xf]
  %v1719 = vld [vmem:[%s1 + $0x130] sm:$0xf]
  %v1720 = vld [vmem:[%s1 + $0x134] sm:$0xf]
  %v1721 = vld [vmem:[%s1 + $0x138] sm:$0xf]
  %v1722 = vld [vmem:[%s1 + $0x13c] sm:$0xf]
  %v1723 = vld [vmem:[%s1 + $0x140] sm:$0xf]
  %v1724 = vld [vmem:[%s1 + $0x144] sm:$0xf]
  %v1725 = vld [vmem:[%s1 + $0x148] sm:$0xf]
  %v1726 = vld [vmem:[%s1 + $0x14c] sm:$0xf]
  %v1727 = vld [vmem:[%s1 + $0x150] sm:$0xf]
  %v1728 = vld [vmem:[%s1 + $0x154] sm:$0xf]
  %v1729 = vld [vmem:[%s1 + $0x158] sm:$0xf]
  %v1730 = vld [vmem:[%s1 + $0x15c] sm:$0xf]
  %v1731 = vld [vmem:[%s1 + $0x160] sm:$0xf]
  %v1732 = vld [vmem:[%s1 + $0x164] sm:$0xf]
  %v1733 = vld [vmem:[%s1 + $0x168] sm:$0xf]
  %v1734 = vld [vmem:[%s1 + $0x16c] sm:$0xf]
  %v1735 = vld [vmem:[%s1 + $0x170] sm:$0xf]
  %v1736 = vld [vmem:[%s1 + $0x174] sm:$0xf]
  %v1737 = vld [vmem:[%s1 + $0x178] sm:$0xf]
  %v1738 = vld [vmem:[%s1 + $0x17c] sm:$0xf]
  %v1739 = vld [vmem:[%s1 + $0x180] sm:$0xf]
  %v1740 = vld [vmem:[%s1 + $0x184] sm:$0xf]
  %v1741 = vld [vmem:[%s1 + $0x188] sm:$0xf]
  %v1742 = vld [vmem:[%s1 + $0x18c] sm:$0xf]
  %v1743 = vld [vmem:[%s1 + $0x190] sm:$0xf]
  %v1744 = vld [vmem:[%s1 + $0x194] sm:$0xf]
  %v1745 = vld [vmem:[%s1 + $0x198] sm:$0xf]
  %v1746 = vld [vmem:[%s1 + $0x19c] sm:$0xf]
  %v1747 = vld [vmem:[%s1 + $0x1a0] sm:$0xf]
  %v1748 = vld [vmem:[%s1 + $0x1a4] sm:$0xf]
  %v1749 = vld [vmem:[%s1 + $0x1a8] sm:$0xf]
  %v1750 = vld [vmem:[%s1 + $0x1ac] sm:$0xf]
  %v1751 = vld [vmem:[%s1 + $0x1b0] sm:$0xf]
  %v1752 = vld [vmem:[%s1 + $0x1b4] sm:$0xf]
  %v1753 = vld [vmem:[%s1 + $0x1b8] sm:$0xf]
  %v1754 = vld [vmem:[%s1 + $0x1bc] sm:$0xf]
  %v1755 = vld [vmem:[%s1 + $0x1c0] sm:$0xf]
  %v1756 = vld [vmem:[%s1 + $0x1c4] sm:$0xf]
  %v1757 = vld [vmem:[%s1 + $0x1c8] sm:$0xf]
  %v1758 = vld [vmem:[%s1 + $0x1cc] sm:$0xf]
  %v1759 = vld [vmem:[%s1 + $0x1d0] sm:$0xf]
  %v1760 = vld [vmem:[%s1 + $0x1d4] sm:$0xf]
  %v1761 = vld [vmem:[%s2 + $0x70] sm:$0x1]
  %v1763 = vrot.slane %v1711, 7
  %v1766 = vrot.slane %v1712, 7
  %v1767 = vsel %vm1016, %v1763, %v1766
  %v1769 = vsel %vm1016, 0.0, %v1763
  %v1770 = vsel %vm829, %v1769, 0.0
  %v1771 = vsel %vm1035, %v1770, %v1763
  %v1772 = vrot.slane %v1711, 1
  %v1774 = vrot.slane %v1712, 1
  %v1775 = vsel %vm1035, %v1772, %v1774
  %v1778 = vsel %vm1032, %v1772, 0.0
  %v1779 = vsel %vm829, %v1778, %v1775
  %v1780 = vsel %vm1526, %v1774, 0.0
  %v1781 = vpack.c.bf16 %v1767, %v1771
  %v1782 = vpack.c.bf16 %v1712, %v1711
  %v1783 = vpack.c.bf16 %v1780, %v1779
  %v1784 = vlaneseq
  %v1785 = vshrl.u32 %v1784, 7
  %v1786 = vsub.s32 0, %v1785
  %v1787 = vrot.slane %v1761, %v1786
  %v1836 = vunpack.c.l.b16 %v1713
  %v1837 = vunpack.c.l.b16 %v1714
  %v1838 = vunpack.c.l.b16 %v1715
  %v1839 = vunpack.c.l.b16 %v1716
  %v1840 = vunpack.c.l.b16 %v1717
  %v1841 = vunpack.c.l.b16 %v1718
  %v1842 = vunpack.c.l.b16 %v1719
  %v1843 = vunpack.c.l.b16 %v1720
  %v1844 = vunpack.c.l.b16 %v1721
  %v1845 = vunpack.c.l.b16 %v1722
  %v1846 = vunpack.c.l.b16 %v1723
  %v1847 = vunpack.c.l.b16 %v1724
  %v1848 = vunpack.c.l.b16 %v1725
  %v1849 = vunpack.c.l.b16 %v1726
  %v1850 = vunpack.c.l.b16 %v1727
  %v1851 = vunpack.c.l.b16 %v1728
  %v1852 = vunpack.c.l.b16 %v1729
  %v1853 = vunpack.c.l.b16 %v1730
  %v1854 = vunpack.c.l.b16 %v1731
  %v1855 = vunpack.c.l.b16 %v1732
  %v1856 = vunpack.c.l.b16 %v1733
  %v1857 = vunpack.c.l.b16 %v1734
  %v1858 = vunpack.c.l.b16 %v1735
  %v1859 = vunpack.c.l.b16 %v1736
  %v1860 = vunpack.c.l.b16 %v1737
  %v1861 = vunpack.c.l.b16 %v1738
  %v1862 = vunpack.c.l.b16 %v1739
  %v1863 = vunpack.c.l.b16 %v1740
  %v1864 = vunpack.c.l.b16 %v1741
  %v1865 = vunpack.c.l.b16 %v1742
  %v1866 = vunpack.c.l.b16 %v1743
  %v1867 = vunpack.c.l.b16 %v1744
  %v1868 = vunpack.c.l.b16 %v1745
  %v1869 = vunpack.c.l.b16 %v1746
  %v1870 = vunpack.c.l.b16 %v1747
  %v1871 = vunpack.c.l.b16 %v1748
  %v1872 = vunpack.c.l.b16 %v1749
  %v1873 = vunpack.c.l.b16 %v1750
  %v1874 = vunpack.c.l.b16 %v1751
  %v1875 = vunpack.c.l.b16 %v1752
  %v1876 = vunpack.c.l.b16 %v1753
  %v1877 = vunpack.c.l.b16 %v1754
  %v1878 = vunpack.c.l.b16 %v1755
  %v1879 = vunpack.c.l.b16 %v1756
  %v1880 = vunpack.c.l.b16 %v1757
  %v1881 = vunpack.c.l.b16 %v1758
  %v1882 = vunpack.c.l.b16 %v1759
  %v1883 = vunpack.c.l.b16 %v1760
  %v1884 = vpack.c.b16 %v1837, %v1836
  %v1885 = vpack.c.b16 %v1839, %v1838
  %v1886 = vpack.c.b16 %v1841, %v1840
  %v1887 = vpack.c.b16 %v1843, %v1842
  %v1888 = vpack.c.b16 %v1845, %v1844
  %v1889 = vpack.c.b16 %v1847, %v1846
  %v1890 = vpack.c.b16 %v1849, %v1848
  %v1891 = vpack.c.b16 %v1851, %v1850
  %v1892 = vpack.c.b16 %v1853, %v1852
  %v1893 = vpack.c.b16 %v1855, %v1854
  %v1894 = vpack.c.b16 %v1857, %v1856
  %v1895 = vpack.c.b16 %v1859, %v1858
  %v1896 = vpack.c.b16 %v1861, %v1860
  %v1897 = vpack.c.b16 %v1863, %v1862
  %v1898 = vpack.c.b16 %v1865, %v1864
  %v1899 = vpack.c.b16 %v1867, %v1866
  %v1900 = vpack.c.b16 %v1869, %v1868
  %v1901 = vpack.c.b16 %v1871, %v1870
  %v1902 = vpack.c.b16 %v1873, %v1872
  %v1903 = vpack.c.b16 %v1875, %v1874
  %v1904 = vpack.c.b16 %v1877, %v1876
  %v1905 = vpack.c.b16 %v1879, %v1878
  %v1906 = vpack.c.b16 %v1881, %v1880
  %v1907 = vpack.c.b16 %v1883, %v1882
  %1932 = vmatprep.subr.bf16.mxu0 0
  %1933 = vmatpush1.bf16.msra.mxu0 %v1884
  %1934 = vmatprep.subr.bf16.mxu0 0
  %1935 = vmatpush1.bf16.msra.mxu0 %v1885
  %1936 = vmatprep.subr.bf16.mxu0 0
  %1937 = vmatpush1.bf16.msra.mxu0 %v1886
  %1938 = vmatprep.subr.bf16.mxu0 0
  %1939 = vmatpush1.bf16.msra.mxu0 %v1887
  %1940 = vmatprep.subr.bf16.mxu0 0
  %1941 = vmatpush1.bf16.msra.mxu0 %v1888
  %1942 = vmatprep.subr.bf16.mxu0 0
  %1943 = vmatpush1.bf16.msra.mxu0 %v1889
  %1944 = vmatprep.subr.bf16.mxu0 0
  %1945 = vmatpush1.bf16.msra.mxu0 %v1890
  %1946 = vmatprep.subr.bf16.mxu0 0
  %1947 = vmatpush1.bf16.msra.mxu0 %v1891
  %1948 = vmatprep.subr.bf16.mxu0 0
  %1949 = vmatpush1.bf16.msra.mxu0 %v1892
  %1950 = vmatprep.subr.bf16.mxu0 0
  %1951 = vmatpush1.bf16.msra.mxu0 %v1893
  %1952 = vmatprep.subr.bf16.mxu0 0
  %1953 = vmatpush1.bf16.msra.mxu0 %v1894
  %1954 = vmatprep.subr.bf16.mxu0 0
  %1955 = vmatpush1.bf16.msra.mxu0 %v1895
  %1956 = vmatprep.subr.bf16.mxu0 0
  %1957 = vmatpush1.bf16.msra.mxu0 %v1896
  %1958 = vmatprep.subr.bf16.mxu0 0
  %1959 = vmatpush1.bf16.msra.mxu0 %v1897
  %1960 = vmatprep.subr.bf16.mxu0 0
  %1961 = vmatpush1.bf16.msra.mxu0 %v1898
  %1962 = vmatprep.subr.bf16.mxu0 0
  %1963 = vmatpush1.bf16.msra.mxu0 %v1899
  %1964 = vmatprep.mubr.bf16.mxu0 %v1782
  %1965 = vmatmul.mubr.bf16.gmra.mrb[0].mxu0 %v1781
  %v1966 = vpop.f32.mrb[0].mxu0
  %v1967 = vadd.f32 %v1787, %v1966
  %v1968 = vpop.f32.mrb[0].mxu0
  %v1969 = vpop.f32.mrb[0].mxu0
  %v1970 = vadd.f32 %v1787, %v1969
  %v1971 = vpop.f32.mrb[0].mxu0
  %1972 = vdwg.mxu0
  %1973 = vmatprep.subr.bf16.mxu0 0
  %1974 = vmatpush1.bf16.msra.mxu0 %v1900
  %1975 = vmatprep.subr.bf16.mxu0 0
  %1976 = vmatpush1.bf16.msra.mxu0 %v1901
  %1977 = vmatprep.subr.bf16.mxu0 0
  %1978 = vmatpush1.bf16.msra.mxu0 %v1902
  %1979 = vmatprep.subr.bf16.mxu0 0
  %1980 = vmatpush1.bf16.msra.mxu0 %v1903
  %1981 = vmatprep.subr.bf16.mxu0 0
  %1982 = vmatpush1.bf16.msra.mxu0 %v1904
  %1983 = vmatprep.subr.bf16.mxu0 0
  %1984 = vmatpush1.bf16.msra.mxu0 %v1905
  %1985 = vmatprep.subr.bf16.mxu0 0
  %1986 = vmatpush1.bf16.msra.mxu0 %v1906
  %1987 = vmatprep.subr.bf16.mxu0 0
  %1988 = vmatpush1.bf16.msra.mxu0 %v1907
  %1989 = vmatprep.subr.bf16.mxu0 0
  %1990 = vmatpush1.bf16.msra.mxu0 0
  %1991 = vmatprep.subr.bf16.mxu0 0
  %1992 = vmatpush1.bf16.msra.mxu0 0
  %1993 = vmatprep.subr.bf16.mxu0 0
  %1994 = vmatpush1.bf16.msra.mxu0 0
  %1995 = vmatprep.subr.bf16.mxu0 0
  %1996 = vmatpush1.bf16.msra.mxu0 0
  %1997 = vmatprep.subr.bf16.mxu0 0
  %1998 = vmatpush1.bf16.msra.mxu0 0
  %1999 = vmatprep.subr.bf16.mxu0 0
  %2000 = vmatpush1.bf16.msra.mxu0 0
  %2001 = vmatprep.subr.bf16.mxu0 0
  %2002 = vmatpush1.bf16.msra.mxu0 0
  %2003 = vmatprep.subr.bf16.mxu0 0
  %2004 = vmatpush1.bf16.msra.mxu0 0
  %2005 = vmatprep.mubr.bf16.mxu0 0
  %2006 = vmatmul.mubr.bf16.gmra.mrb[0].mxu0 %v1783
  %v2007 = vpop.f32.mrb[0].mxu0
  %v2008 = vadd.f32 %v1967, %v2007
  %v2009 = vpop.f32.mrb[0].mxu0
  %v2010 = vpop.f32.mrb[0].mxu0
  %v2011 = vadd.f32 %v1970, %v2010
  %v2012 = vpop.f32.mrb[0].mxu0
  %2013 = vdwg.mxu0
  %v2014 = vadd.f32 %v2008, %v1535
  %v2015 = vadd.f32 %v2011, %v1536
  %v2016 = vmax.f32 %v2014, 0.0
  %v2017 = vmax.f32 %v2015, 0.0
  %v2019 = vrot.slane %v2016, 1
  %v2021 = vadd.f32 %v2016, %v2019
  %v2023 = vrot.slane %v2017, 1
  %v2025 = vadd.f32 %v2017, %v2023
  %v2027 = vrot.slane %v2021, 1
  %v2029 = vrot.slane %v2021, 2
  %v2031 = vrot.slane %v2021, 3
  %v2034 = vrot.slane %v2025, 4
  %v2036 = vrot.slane %v2025, 5
  %v2038 = vsel %vm1016, %v2021, %v2027
  %v2039 = vsel %vm875, %v2038, %v2029
  %v2040 = vsel %vm1526, %v2039, %v2031
  %v2041 = vsel %vm852, %v2040, %v2034
  %v2042 = vsel %vm1032, %v2041, %v2036
  %v2043 = vmul.f32 %v2042, 0.5
  %v2044 = vld [vmem:[%s1 + $0x1d8] sm:$0xf]
  %v2045 = vld [vmem:[%s1 + $0x1dc] sm:$0xf]
  %v2046 = vld [vmem:[%s1 + $0x1e0] sm:$0xf]
  %v2047 = vld [vmem:[%s1 + $0x1e4] sm:$0xf]
  %v2048 = vld [vmem:[%s1 + $0x1e8] sm:$0xf]
  %v2049 = vld [vmem:[%s1 + $0x1ec] sm:$0xf]
  %v2050 = vld [vmem:[%s1 + $0x1f0] sm:$0xf]
  %v2051 = vld [vmem:[%s1 + $0x1f4] sm:$0xf]
  %v2052 = vld [vmem:[%s1 + $0x1f8] sm:$0xf]
  %v2053 = vld [vmem:[%s1 + $0x1fc] sm:$0xf]
  %v2054 = vld [vmem:[%s1 + $0x200] sm:$0xf]
  %v2055 = vld [vmem:[%s1 + $0x204] sm:$0xf]
  %v2056 = vld [vmem:[%s1 + $0x208] sm:$0xf]
  %v2057 = vld [vmem:[%s1 + $0x20c] sm:$0xf]
  %v2058 = vld [vmem:[%s1 + $0x210] sm:$0xf]
  %v2059 = vld [vmem:[%s1 + $0x214] sm:$0xf]
  %v2060 = vld [vmem:[%s1 + $0x218] sm:$0xf]
  %v2061 = vld [vmem:[%s1 + $0x21c] sm:$0xf]
  %v2062 = vld [vmem:[%s1 + $0x220] sm:$0xf]
  %v2063 = vld [vmem:[%s1 + $0x224] sm:$0xf]
  %v2064 = vld [vmem:[%s1 + $0x228] sm:$0xf]
  %v2065 = vld [vmem:[%s1 + $0x22c] sm:$0xf]
  %v2066 = vld [vmem:[%s1 + $0x230] sm:$0xf]
  %v2067 = vld [vmem:[%s1 + $0x234] sm:$0xf]
  %v2068 = vld [vmem:[%s2 + $0x80] sm:$0x1]
  %v2070 = vrot.slane %v2043, 7
  %v2072 = vsel %vm1016, 0.0, %v2070
  %v2073 = vsel %vm1526, %v2072, 0.0
  %v2074 = vsel %vm852, %v2073, %v2070
  %v2075 = vrot.slane %v2043, 1
  %v2077 = vsel %vm875, %v2075, 0.0
  %v2078 = vsel %vm1526, %v2077, %v2075
  %v2079 = vsel %vm1032, %v2078, 0.0
  %2080 = vrot.lane.b32.xlu0 %v2043, 64
  %v2081 = vpop.permute.xlu0 %2080
  %v2083 = vsel %vm1080, %v2074, %v2081
  %v2084 = vpack.c.bf16 %v2083, %v2083
  %v2085 = vpack.c.bf16 %v2079, %v2079
  %v2086 = vlaneseq
  %v2087 = vshrl.u32 %v2086, 7
  %v2088 = vsub.s32 0, %v2087
  %v2089 = vrot.slane %v2068, %v2088
  %v2114 = vunpack.c.l.b16 %v2044
  %v2115 = vunpack.c.l.b16 %v2045
  %v2116 = vunpack.c.l.b16 %v2046
  %v2117 = vunpack.c.l.b16 %v2047
  %v2118 = vunpack.c.l.b16 %v2048
  %v2119 = vunpack.c.l.b16 %v2049
  %v2120 = vunpack.c.l.b16 %v2050
  %v2121 = vunpack.c.l.b16 %v2051
  %v2122 = vunpack.c.l.b16 %v2052
  %v2123 = vunpack.c.l.b16 %v2053
  %v2124 = vunpack.c.l.b16 %v2054
  %v2125 = vunpack.c.l.b16 %v2055
  %v2126 = vunpack.c.l.b16 %v2056
  %v2127 = vunpack.c.l.b16 %v2057
  %v2128 = vunpack.c.l.b16 %v2058
  %v2129 = vunpack.c.l.b16 %v2059
  %v2130 = vunpack.c.l.b16 %v2060
  %v2131 = vunpack.c.l.b16 %v2061
  %v2132 = vunpack.c.l.b16 %v2062
  %v2133 = vunpack.c.l.b16 %v2063
  %v2134 = vunpack.c.l.b16 %v2064
  %v2135 = vunpack.c.l.b16 %v2065
  %v2136 = vunpack.c.l.b16 %v2066
  %v2137 = vunpack.c.l.b16 %v2067
  %v2138 = vpack.c.b16 %v2115, %v2114
  %v2139 = vpack.c.b16 %v2117, %v2116
  %v2140 = vpack.c.b16 %v2119, %v2118
  %v2141 = vpack.c.b16 %v2121, %v2120
  %v2142 = vpack.c.b16 %v2123, %v2122
  %v2143 = vpack.c.b16 %v2125, %v2124
  %v2144 = vpack.c.b16 %v2127, %v2126
  %v2145 = vpack.c.b16 %v2129, %v2128
  %v2146 = vpack.c.b16 %v2131, %v2130
  %v2147 = vpack.c.b16 %v2133, %v2132
  %v2148 = vpack.c.b16 %v2135, %v2134
  %v2149 = vpack.c.b16 %v2137, %v2136
  %v2163 = vsel %vm1080, %v2085, 0
  %2165 = vmatprep.subr.bf16.mxu0 0
  %2166 = vmatpush1.bf16.msra.mxu0 %v2138
  %2167 = vmatprep.subr.bf16.mxu0 0
  %2168 = vmatpush1.bf16.msra.mxu0 %v2139
  %2169 = vmatprep.subr.bf16.mxu0 0
  %2170 = vmatpush1.bf16.msra.mxu0 %v2140
  %2171 = vmatprep.subr.bf16.mxu0 0
  %2172 = vmatpush1.bf16.msra.mxu0 %v2141
  %2173 = vmatprep.subr.bf16.mxu0 0
  %2174 = vmatpush1.bf16.msra.mxu0 %v2142
  %2175 = vmatprep.subr.bf16.mxu0 0
  %2176 = vmatpush1.bf16.msra.mxu0 %v2143
  %2177 = vmatprep.subr.bf16.mxu0 0
  %2178 = vmatpush1.bf16.msra.mxu0 %v2144
  %2179 = vmatprep.subr.bf16.mxu0 0
  %2180 = vmatpush1.bf16.msra.mxu0 %v2145
  %2181 = vmatprep.subr.bf16.mxu0 0
  %2182 = vmatpush1.bf16.msra.mxu0 %v2146
  %2183 = vmatprep.subr.bf16.mxu0 0
  %2184 = vmatpush1.bf16.msra.mxu0 %v2147
  %2185 = vmatprep.subr.bf16.mxu0 0
  %2186 = vmatpush1.bf16.msra.mxu0 %v2148
  %2187 = vmatprep.subr.bf16.mxu0 0
  %2188 = vmatpush1.bf16.msra.mxu0 %v2149
  %2189 = vmatprep.subr.bf16.mxu0 0
  %2190 = vmatpush1.bf16.msra.mxu0 0
  %2191 = vmatprep.subr.bf16.mxu0 0
  %2192 = vmatpush1.bf16.msra.mxu0 0
  %2193 = vmatprep.subr.bf16.mxu0 0
  %2194 = vmatpush1.bf16.msra.mxu0 0
  %2195 = vmatprep.subr.bf16.mxu0 0
  %2196 = vmatpush1.bf16.msra.mxu0 0
  %2197 = vmatprep.mubr.bf16.mxu0 %v2163
  %2198 = vmatmul.mubr.bf16.gmra.mrb[0].mxu0 %v2084
  %v2199 = vpop.f32.mrb[0].mxu0
  %v2200 = vadd.f32 %v2089, %v2199
  %v2201 = vpop.f32.mrb[0].mxu0
  %v2202 = vpop.f32.mrb[0].mxu0
  %v2203 = vpop.f32.mrb[0].mxu0
  %2204 = vdwg.mxu0
  %v2205 = vmax.f32 %v2200, 0.0
  %v2206 = vld [vmem:[%s1 + $0x238] sm:$0xf]
  %v2207 = vld [vmem:[%s1 + $0x23c] sm:$0xf]
  %v2208 = vld [vmem:[%s1 + $0x240] sm:$0xf]
  %v2209 = vld [vmem:[%s1 + $0x244] sm:$0xf]
  %v2210 = vld [vmem:[%s1 + $0x248] sm:$0xf]
  %v2211 = vld [vmem:[%s1 + $0x24c] sm:$0xf]
  %v2212 = vld [vmem:[%s1 + $0x250] sm:$0xf]
  %v2213 = vld [vmem:[%s1 + $0x254] sm:$0xf]
  %v2214 = vld [vmem:[%s1 + $0x258] sm:$0xf]
  %v2215 = vld [vmem:[%s1 + $0x25c] sm:$0xf]
  %v2216 = vld [vmem:[%s1 + $0x260] sm:$0xf]
  %v2217 = vld [vmem:[%s1 + $0x264] sm:$0xf]
  %v2218 = vld [vmem:[%s1 + $0x268] sm:$0xf]
  %v2219 = vld [vmem:[%s1 + $0x26c] sm:$0xf]
  %v2220 = vld [vmem:[%s1 + $0x270] sm:$0xf]
  %v2221 = vld [vmem:[%s1 + $0x274] sm:$0xf]
  %v2222 = vld [vmem:[%s1 + $0x278] sm:$0xf]
  %v2223 = vld [vmem:[%s1 + $0x27c] sm:$0xf]
  %v2224 = vld [vmem:[%s1 + $0x280] sm:$0xf]
  %v2225 = vld [vmem:[%s1 + $0x284] sm:$0xf]
  %v2226 = vld [vmem:[%s1 + $0x288] sm:$0xf]
  %v2227 = vld [vmem:[%s1 + $0x28c] sm:$0xf]
  %v2228 = vld [vmem:[%s1 + $0x290] sm:$0xf]
  %v2229 = vld [vmem:[%s1 + $0x294] sm:$0xf]
  %v2230 = vld [vmem:[%s1 + $0x298] sm:$0xf]
  %v2231 = vld [vmem:[%s1 + $0x29c] sm:$0xf]
  %v2232 = vld [vmem:[%s1 + $0x2a0] sm:$0xf]
  %v2233 = vld [vmem:[%s1 + $0x2a4] sm:$0xf]
  %v2234 = vld [vmem:[%s1 + $0x2a8] sm:$0xf]
  %v2235 = vld [vmem:[%s1 + $0x2ac] sm:$0xf]
  %v2236 = vld [vmem:[%s1 + $0x2b0] sm:$0xf]
  %v2237 = vld [vmem:[%s1 + $0x2b4] sm:$0xf]
  %v2238 = vld [vmem:[%s1 + $0x2b8] sm:$0xf]
  %v2239 = vld [vmem:[%s1 + $0x2bc] sm:$0xf]
  %v2240 = vld [vmem:[%s1 + $0x2c0] sm:$0xf]
  %v2241 = vld [vmem:[%s1 + $0x2c4] sm:$0xf]
  %v2242 = vld [vmem:[%s1 + $0x2c8] sm:$0xf]
  %v2243 = vld [vmem:[%s1 + $0x2cc] sm:$0xf]
  %v2244 = vld [vmem:[%s1 + $0x2d0] sm:$0xf]
  %v2245 = vld [vmem:[%s1 + $0x2d4] sm:$0xf]
  %v2246 = vld [vmem:[%s1 + $0x2d8] sm:$0xf]
  %v2247 = vld [vmem:[%s1 + $0x2dc] sm:$0xf]
  %v2248 = vld [vmem:[%s1 + $0x2e0] sm:$0xf]
  %v2249 = vld [vmem:[%s1 + $0x2e4] sm:$0xf]
  %v2250 = vld [vmem:[%s1 + $0x2e8] sm:$0xf]
  %v2251 = vld [vmem:[%s1 + $0x2ec] sm:$0xf]
  %v2252 = vld [vmem:[%s1 + $0x2f0] sm:$0xf]
  %v2253 = vld [vmem:[%s1 + $0x2f4] sm:$0xf]
  %v2254 = vld [vmem:[%s2 + $0x90] sm:$0x1]
  %v2256 = vrot.slane %v2205, 7
  %v2258 = vsel %vm1016, 0.0, %v2256
  %v2259 = vsel %vm1526, %v2258, 0.0
  %v2260 = vsel %vm852, %v2259, %v2256
  %v2261 = vrot.slane %v2205, 1
  %v2263 = vsel %vm875, %v2261, 0.0
  %v2264 = vsel %vm1526, %v2263, %v2261
  %v2265 = vsel %vm1032, %v2264, 0.0
  %v2266 = vpack.c.bf16 %v2260, %v2260
  %v2267 = vpack.c.bf16 %v2205, %v2205
  %v2268 = vpack.c.bf16 %v2265, %v2265
  %v2269 = vlaneseq
  %v2270 = vshrl.u32 %v2269, 7
  %v2271 = vsub.s32 0, %v2270
  %v2272 = vrot.slane %v2254, %v2271
  %v2321 = vunpack.c.l.b16 %v2206
  %v2322 = vunpack.c.l.b16 %v2207
  %v2323 = vunpack.c.l.b16 %v2208
  %v2324 = vunpack.c.l.b16 %v2209
  %v2325 = vunpack.c.l.b16 %v2210
  %v2326 = vunpack.c.l.b16 %v2211
  %v2327 = vunpack.c.l.b16 %v2212
  %v2328 = vunpack.c.l.b16 %v2213
  %v2329 = vunpack.c.l.b16 %v2214
  %v2330 = vunpack.c.l.b16 %v2215
  %v2331 = vunpack.c.l.b16 %v2216
  %v2332 = vunpack.c.l.b16 %v2217
  %v2333 = vunpack.c.l.b16 %v2218
  %v2334 = vunpack.c.l.b16 %v2219
  %v2335 = vunpack.c.l.b16 %v2220
  %v2336 = vunpack.c.l.b16 %v2221
  %v2337 = vunpack.c.l.b16 %v2222
  %v2338 = vunpack.c.l.b16 %v2223
  %v2339 = vunpack.c.l.b16 %v2224
  %v2340 = vunpack.c.l.b16 %v2225
  %v2341 = vunpack.c.l.b16 %v2226
  %v2342 = vunpack.c.l.b16 %v2227
  %v2343 = vunpack.c.l.b16 %v2228
  %v2344 = vunpack.c.l.b16 %v2229
  %v2345 = vunpack.c.l.b16 %v2230
  %v2346 = vunpack.c.l.b16 %v2231
  %v2347 = vunpack.c.l.b16 %v2232
  %v2348 = vunpack.c.l.b16 %v2233
  %v2349 = vunpack.c.l.b16 %v2234
  %v2350 = vunpack.c.l.b16 %v2235
  %v2351 = vunpack.c.l.b16 %v2236
  %v2352 = vunpack.c.l.b16 %v2237
  %v2353 = vunpack.c.l.b16 %v2238
  %v2354 = vunpack.c.l.b16 %v2239
  %v2355 = vunpack.c.l.b16 %v2240
  %v2356 = vunpack.c.l.b16 %v2241
  %v2357 = vunpack.c.l.b16 %v2242
  %v2358 = vunpack.c.l.b16 %v2243
  %v2359 = vunpack.c.l.b16 %v2244
  %v2360 = vunpack.c.l.b16 %v2245
  %v2361 = vunpack.c.l.b16 %v2246
  %v2362 = vunpack.c.l.b16 %v2247
  %v2363 = vunpack.c.l.b16 %v2248
  %v2364 = vunpack.c.l.b16 %v2249
  %v2365 = vunpack.c.l.b16 %v2250
  %v2366 = vunpack.c.l.b16 %v2251
  %v2367 = vunpack.c.l.b16 %v2252
  %v2368 = vunpack.c.l.b16 %v2253
  %v2369 = vpack.c.b16 %v2322, %v2321
  %v2370 = vpack.c.b16 %v2324, %v2323
  %v2371 = vpack.c.b16 %v2326, %v2325
  %v2372 = vpack.c.b16 %v2328, %v2327
  %v2373 = vpack.c.b16 %v2330, %v2329
  %v2374 = vpack.c.b16 %v2332, %v2331
  %v2375 = vpack.c.b16 %v2334, %v2333
  %v2376 = vpack.c.b16 %v2336, %v2335
  %v2377 = vpack.c.b16 %v2338, %v2337
  %v2378 = vpack.c.b16 %v2340, %v2339
  %v2379 = vpack.c.b16 %v2342, %v2341
  %v2380 = vpack.c.b16 %v2344, %v2343
  %v2381 = vpack.c.b16 %v2346, %v2345
  %v2382 = vpack.c.b16 %v2348, %v2347
  %v2383 = vpack.c.b16 %v2350, %v2349
  %v2384 = vpack.c.b16 %v2352, %v2351
  %v2385 = vpack.c.b16 %v2354, %v2353
  %v2386 = vpack.c.b16 %v2356, %v2355
  %v2387 = vpack.c.b16 %v2358, %v2357
  %v2388 = vpack.c.b16 %v2360, %v2359
  %v2389 = vpack.c.b16 %v2362, %v2361
  %v2390 = vpack.c.b16 %v2364, %v2363
  %v2391 = vpack.c.b16 %v2366, %v2365
  %v2392 = vpack.c.b16 %v2368, %v2367
  %2417 = vmatprep.subr.bf16.mxu0 0
  %2418 = vmatpush1.bf16.msra.mxu0 %v2369
  %2419 = vmatprep.subr.bf16.mxu0 0
  %2420 = vmatpush1.bf16.msra.mxu0 %v2370
  %2421 = vmatprep.subr.bf16.mxu0 0
  %2422 = vmatpush1.bf16.msra.mxu0 %v2371
  %2423 = vmatprep.subr.bf16.mxu0 0
  %2424 = vmatpush1.bf16.msra.mxu0 %v2372
  %2425 = vmatprep.subr.bf16.mxu0 0
  %2426 = vmatpush1.bf16.msra.mxu0 %v2373
  %2427 = vmatprep.subr.bf16.mxu0 0
  %2428 = vmatpush1.bf16.msra.mxu0 %v2374
  %2429 = vmatprep.subr.bf16.mxu0 0
  %2430 = vmatpush1.bf16.msra.mxu0 %v2375
  %2431 = vmatprep.subr.bf16.mxu0 0
  %2432 = vmatpush1.bf16.msra.mxu0 %v2376
  %2433 = vmatprep.subr.bf16.mxu0 0
  %2434 = vmatpush1.bf16.msra.mxu0 %v2377
  %2435 = vmatprep.subr.bf16.mxu0 0
  %2436 = vmatpush1.bf16.msra.mxu0 %v2378
  %2437 = vmatprep.subr.bf16.mxu0 0
  %2438 = vmatpush1.bf16.msra.mxu0 %v2379
  %2439 = vmatprep.subr.bf16.mxu0 0
  %2440 = vmatpush1.bf16.msra.mxu0 %v2380
  %2441 = vmatprep.subr.bf16.mxu0 0
  %2442 = vmatpush1.bf16.msra.mxu0 %v2381
  %2443 = vmatprep.subr.bf16.mxu0 0
  %2444 = vmatpush1.bf16.msra.mxu0 %v2382
  %2445 = vmatprep.subr.bf16.mxu0 0
  %2446 = vmatpush1.bf16.msra.mxu0 %v2383
  %2447 = vmatprep.subr.bf16.mxu0 0
  %2448 = vmatpush1.bf16.msra.mxu0 %v2384
  %2449 = vmatprep.mubr.bf16.mxu0 %v2267
  %2450 = vmatmul.mubr.bf16.gmra.mrb[0].mxu0 %v2266
  %v2451 = vpop.f32.mrb[0].mxu0
  %v2452 = vadd.f32 %v2272, %v2451
  %v2453 = vpop.f32.mrb[0].mxu0
  %v2454 = vpop.f32.mrb[0].mxu0
  %v2455 = vpop.f32.mrb[0].mxu0
  %2456 = vdwg.mxu0
  %2457 = vmatprep.subr.bf16.mxu0 0
  %2458 = vmatpush1.bf16.msra.mxu0 %v2385
  %2459 = vmatprep.subr.bf16.mxu0 0
  %2460 = vmatpush1.bf16.msra.mxu0 %v2386
  %2461 = vmatprep.subr.bf16.mxu0 0
  %2462 = vmatpush1.bf16.msra.mxu0 %v2387
  %2463 = vmatprep.subr.bf16.mxu0 0
  %2464 = vmatpush1.bf16.msra.mxu0 %v2388
  %2465 = vmatprep.subr.bf16.mxu0 0
  %2466 = vmatpush1.bf16.msra.mxu0 %v2389
  %2467 = vmatprep.subr.bf16.mxu0 0
  %2468 = vmatpush1.bf16.msra.mxu0 %v2390
  %2469 = vmatprep.subr.bf16.mxu0 0
  %2470 = vmatpush1.bf16.msra.mxu0 %v2391
  %2471 = vmatprep.subr.bf16.mxu0 0
  %2472 = vmatpush1.bf16.msra.mxu0 %v2392
  %2473 = vmatprep.subr.bf16.mxu0 0
  %2474 = vmatpush1.bf16.msra.mxu0 0
  %2475 = vmatprep.subr.bf16.mxu0 0
  %2476 = vmatpush1.bf16.msra.mxu0 0
  %2477 = vmatprep.subr.bf16.mxu0 0
  %2478 = vmatpush1.bf16.msra.mxu0 0
  %2479 = vmatprep.subr.bf16.mxu0 0
  %2480 = vmatpush1.bf16.msra.mxu0 0
  %2481 = vmatprep.subr.bf16.mxu0 0
  %2482 = vmatpush1.bf16.msra.mxu0 0
  %2483 = vmatprep.subr.bf16.mxu0 0
  %2484 = vmatpush1.bf16.msra.mxu0 0
  %2485 = vmatprep.subr.bf16.mxu0 0
  %2486 = vmatpush1.bf16.msra.mxu0 0
  %2487 = vmatprep.subr.bf16.mxu0 0
  %2488 = vmatpush1.bf16.msra.mxu0 0
  %2489 = vmatprep.mubr.bf16.mxu0 0
  %2490 = vmatmul.mubr.bf16.gmra.mrb[0].mxu0 %v2268
  %v2491 = vpop.f32.mrb[0].mxu0
  %v2492 = vadd.f32 %v2452, %v2491
  %v2493 = vpop.f32.mrb[0].mxu0
  %v2494 = vpop.f32.mrb[0].mxu0
  %v2495 = vpop.f32.mrb[0].mxu0
  %2496 = vdwg.mxu0
  %v2497 = vadd.f32 %v2492, %v2043
  %v2498 = vmax.f32 %v2497, 0.0
  %v2500 = vrot.slane %v2498, 1
  %v2502 = vadd.f32 %v2498, %v2500
  %v2504 = vrot.slane %v2502, 2
  %v2506 = vsel %vm1016, %v2502, %v2504
  %v2507 = vmul.f32 %v2506, 0.5
  %v2508 = vld [vmem:[%s1 + $0x2f8] sm:$0xf]
  %v2509 = vld [vmem:[%s1 + $0x2fc] sm:$0xf]
  %v2510 = vld [vmem:[%s1 + $0x300] sm:$0xf]
  %v2511 = vld [vmem:[%s1 + $0x304] sm:$0xf]
  %v2512 = vld [vmem:[%s1 + $0x308] sm:$0xf]
  %v2513 = vld [vmem:[%s1 + $0x30c] sm:$0xf]
  %v2514 = vld [vmem:[%s1 + $0x310] sm:$0xf]
  %v2515 = vld [vmem:[%s1 + $0x314] sm:$0xf]
  %v2516 = vpack.c.bf16 %v2507, %v2507
  %v2517 = vld [vmem:[%s2 + $0xa0] sm:$0x1]
  %v2518 = vlaneseq
  %v2519 = vshrl.u32 %v2518, 7
  %v2520 = vsub.s32 0, %v2519
  %v2521 = vrot.slane %v2517, %v2520
  %v2530 = vunpack.c.l.b16 %v2508
  %v2531 = vunpack.c.l.b16 %v2509
  %v2532 = vunpack.c.l.b16 %v2510
  %v2533 = vunpack.c.l.b16 %v2511
  %v2534 = vunpack.c.l.b16 %v2512
  %v2535 = vunpack.c.l.b16 %v2513
  %v2536 = vunpack.c.l.b16 %v2514
  %v2537 = vunpack.c.l.b16 %v2515
  %v2538 = vpack.c.b16 %v2531, %v2530
  %v2539 = vpack.c.b16 %v2533, %v2532
  %v2540 = vpack.c.b16 %v2535, %v2534
  %v2541 = vpack.c.b16 %v2537, %v2536
  %v2547 = vsel %vm1080, %v2516, 0
  %2549 = vmatprep.subr.bf16.mxu0 0
  %2550 = vmatpush1.bf16.msra.mxu0 %v2538
  %2551 = vmatprep.subr.bf16.mxu0 0
  %2552 = vmatpush1.bf16.msra.mxu0 %v2539
  %2553 = vmatprep.subr.bf16.mxu0 0
  %2554 = vmatpush1.bf16.msra.mxu0 %v2540
  %2555 = vmatprep.subr.bf16.mxu0 0
  %2556 = vmatpush1.bf16.msra.mxu0 %v2541
  %2557 = vmatprep.subr.bf16.mxu0 0
  %2558 = vmatpush1.bf16.msra.mxu0 0
  %2559 = vmatprep.subr.bf16.mxu0 0
  %2560 = vmatpush1.bf16.msra.mxu0 0
  %2561 = vmatprep.subr.bf16.mxu0 0
  %2562 = vmatpush1.bf16.msra.mxu0 0
  %2563 = vmatprep.subr.bf16.mxu0 0
  %2564 = vmatpush1.bf16.msra.mxu0 0
  %2565 = vmatprep.subr.bf16.mxu0 0
  %2566 = vmatpush1.bf16.msra.mxu0 0
  %2567 = vmatprep.subr.bf16.mxu0 0
  %2568 = vmatpush1.bf16.msra.mxu0 0
  %2569 = vmatprep.subr.bf16.mxu0 0
  %2570 = vmatpush1.bf16.msra.mxu0 0
  %2571 = vmatprep.subr.bf16.mxu0 0
  %2572 = vmatpush1.bf16.msra.mxu0 0
  %2573 = vmatprep.subr.bf16.mxu0 0
  %2574 = vmatpush1.bf16.msra.mxu0 0
  %2575 = vmatprep.subr.bf16.mxu0 0
  %2576 = vmatpush1.bf16.msra.mxu0 0
  %2577 = vmatprep.subr.bf16.mxu0 0
  %2578 = vmatpush1.bf16.msra.mxu0 0
  %2579 = vmatprep.subr.bf16.mxu0 0
  %2580 = vmatpush1.bf16.msra.mxu0 0
  %2581 = vmatprep.mubr.bf16.mxu0 0
  %2582 = vmatmul.mubr.bf16.gmra.mrb[0].mxu0 %v2547
  %v2583 = vpop.f32.mrb[0].mxu0
  %v2584 = vadd.f32 %v2521, %v2583
  %v2585 = vpop.f32.mrb[0].mxu0
  %v2586 = vpop.f32.mrb[0].mxu0
  %v2587 = vpop.f32.mrb[0].mxu0
  %2588 = vdwg.mxu0
  %v2589 = vmax.f32 %v2584, 0.0
  %v2590 = vsel %vm1075, %v2589, 0.0
  %2591 = vst [vmem:[%s3] sm:$0x3] %v2590
  // Predicated region
  $region14: #{_lambda_.2} parent=0 // pred_check
    _
  $region15: #{_lambda_.2} parent=0 // pred_check_branch
    %2593 = sbr.rel (0) target = $region17
  $region16: #{_lambda_.2} parent=0 // pred_region
    _
  $region17: #{_lambda_.2} parent=0 // pred_fallthru
    _
  // Predicated region
  $region18: #{_lambda_.2} parent=0 // pred_check
    _
  $region19: #{_lambda_.2} parent=0 // pred_check_branch
    %2595 = sbr.rel (0) target = $region21
  $region20: #{_lambda_.2} parent=0 // pred_region
    _
  $region21: #{_lambda_.2} parent=0 // pred_fallthru
    _

</llo_original>
